<compile_context>
chip_gen: v7x
topology: tpu7x:2x2x1
jax: 0.10.0
libtpu: 0.0.40
codegen_flags: <defaults>
</compile_context>

<pallas_src>
import functools

import jax
import jax.numpy as jnp
from jax import lax
from jax.experimental import pallas as pl
from jax.experimental.pallas import tpu as pltpu

LANE = 128          # TPU lane width
B_TILE_CAP = 32     # vreg-pressure-safe max batch rows per tile


def _round_up(x, m):
    return (x + m - 1) // m * m


def _num_tensorcores():
    """TensorCores one pallas_call can shard a "parallel" grid axis across."""
    try:
        kind = (getattr(jax.devices()[0], "device_kind", "") or "").lower()
        if "v7" in kind:
            return 2
    except Exception:
        pass
    return 1


def _vmem_budget_bytes():
    """~85% of physical VMEM (128 MiB v5e/v6e, 64 MiB v7x); conservative fallback."""
    try:
        phys = int(pltpu.get_tpu_info().vmem_capacity_bytes)
    except Exception:
        phys = 64 << 20
    return int(phys * 0.85)


def _pick_b_tile(B):
    """Batch rows per grid program (multiple of 8, <= B_TILE_CAP).

    v5e/v6e (1 TC): maximize the tile (fewer serial re-runs of the recurrence).
    v7x (2 TC): shrink until the grid has >= 2 programs so both TCs get work.
    """
    b8 = _round_up(max(B, 1), 8)
    bt = min(B_TILE_CAP, b8)
    ncores = _num_tensorcores()
    while ncores > 1 and bt > 8 and pl.cdiv(b8, bt) < ncores:
        bt //= 2
    return bt


def make_lstm_kernel(num_layers, T, b_tile, Hpad, mm_dtype, seq_dtype):
    """Pallas kernel body: stacked LSTM + FC head for one batch tile."""

    def kernel(*refs):
        # refs = (x, [w_ih, w_hh, b] * L, w_fc, b_fc, out, gates_buf[, y_buf])
        x_ref = refs[0]
        layer_refs = refs[1:1 + 3 * num_layers]
        w_fc_ref = refs[1 + 3 * num_layers]
        b_fc_ref = refs[2 + 3 * num_layers]
        out_ref = refs[3 + 3 * num_layers]
        gates_buf = refs[4 + 3 * num_layers]                           # (T*b_tile, 4*Hpad) f32
        y_buf = refs[5 + 3 * num_layers] if num_layers > 1 else None   # (T*b_tile, Hpad)

        def run_layer(layer_idx, src, w_ih_ref, w_hh_ref, b_ref):
            if src.ndim == 3:                                   # (T, b_tile, D) -> (T*b_tile, D)
                src = src.reshape(T * b_tile, src.shape[-1])

            # (1) Hoisted input projection: ONE MXU GEMM over all timesteps (+ bias).
            gates_buf[...] = (
                jnp.dot(src.astype(mm_dtype), w_ih_ref[...],
                        preferred_element_type=jnp.float32)
                + b_ref[...])

            write_seq = layer_idx < num_layers - 1              # top layer: skip seq write

            # (2) Serial recurrence: only h @ W_hh remains on the critical path.
            def step(t, carry):
                h, c = carry
                row = pl.multiple_of(t * b_tile, b_tile)
                gates = gates_buf[pl.ds(row, b_tile), :] + jnp.dot(
                    h.astype(mm_dtype), w_hh_ref[...],
                    preferred_element_type=jnp.float32)
                # Lane-aligned gate slots (Hpad is a multiple of 128 lanes).
                i_g = jax.nn.sigmoid(gates[:, 0 * Hpad:1 * Hpad])
                f_g = jax.nn.sigmoid(gates[:, 1 * Hpad:2 * Hpad])
                g_g = jnp.tanh(gates[:, 2 * Hpad:3 * Hpad])
                o_g = jax.nn.sigmoid(gates[:, 3 * Hpad:4 * Hpad])
                c_new = f_g * c + i_g * g_g
                h_new = o_g * jnp.tanh(c_new)
                if write_seq:
                    y_buf[pl.ds(row, b_tile), :] = h_new.astype(seq_dtype)
                return h_new, c_new

            h0 = jnp.zeros((b_tile, Hpad), jnp.float32)
            c0 = jnp.zeros((b_tile, Hpad), jnp.float32)
            unroll = True if T <= 16 else 8                     # LLO cross-iter visibility
            h_last, _ = lax.fori_loop(0, T, step, (h0, c0), unroll=unroll)
            return h_last

        h_last = None
        for l in range(num_layers):
            w_ih_ref, w_hh_ref, b_ref = layer_refs[3 * l:3 * l + 3]
            # y_buf is fully consumed into gates_buf by the hoisted GEMM before the
            # recurrence starts overwriting it in place (program-order effects).
            src = x_ref[...] if l == 0 else y_buf[...]
            h_last = run_layer(l, src, w_ih_ref, w_hh_ref, b_ref)

        # fc(lstm_out[:, -1, :]): lane-padded (Hpad, LANE) weight -> lane-dense store.
        out_ref[...] = (jnp.dot(h_last.astype(mm_dtype), w_fc_ref[...],
                                preferred_element_type=jnp.float32)
                        + b_fc_ref[...]).astype(out_ref.dtype)

    return kernel


def init_params(key, input_size, hidden_size, num_layers):
    """PyTorch-layout params, U(-1/sqrt(H), 1/sqrt(H)) like torch.nn.LSTM / nn.Linear."""
    k = 1.0 / float(hidden_size) ** 0.5
    params = {"w_ih": [], "w_hh": [], "b_ih": [], "b_hh": []}
    for l in range(num_layers):
        in_l = input_size if l == 0 else hidden_size
        key, k1, k2, k3, k4 = jax.random.split(key, 5)
        params["w_ih"].append(jax.random.uniform(k1, (4 * hidden_size, in_l), jnp.float32, -k, k))
        params["w_hh"].append(jax.random.uniform(k2, (4 * hidden_size, hidden_size), jnp.float32, -k, k))
        params["b_ih"].append(jax.random.uniform(k3, (4 * hidden_size,), jnp.float32, -k, k))
        params["b_hh"].append(jax.random.uniform(k4, (4 * hidden_size,), jnp.float32, -k, k))
    key, k5, k6 = jax.random.split(key, 3)
    params["w_fc"] = jax.random.uniform(k5, (1, hidden_size), jnp.float32, -k, k)
    params["b_fc"] = jax.random.uniform(k6, (1,), jnp.float32, -k, k)
    return params


def _prepare_kernel_params(params, D, H, Hpad, num_layers, compute_dtype):
    """Transpose to (in, 4H); place each PyTorch gate block [i,f,g,o] in its own
    128-lane slot.  Layer 0's input dim stays un-padded (D)."""

    def place_gates(w_t):                                   # (Din, 4H) -> (Din, 4*Hpad)
        din = w_t.shape[0]
        out = jnp.zeros((din, 4 * Hpad), jnp.float32)
        for g in range(4):
            out = out.at[:, g * Hpad:g * Hpad + H].set(w_t[:, g * H:(g + 1) * H])
        return out

    args = []
    for l in range(num_layers):
        w_ih = place_gates(params["w_ih"][l].T)             # (D or H, 4*Hpad)
        if l > 0:                                           # hidden-input layers pad H -> Hpad
            w_ih = jnp.zeros((Hpad, 4 * Hpad), jnp.float32).at[:H].set(w_ih)
        w_hh = place_gates(params["w_hh"][l].T)             # (H, 4*Hpad)
        w_hh = jnp.zeros((Hpad, 4 * Hpad), jnp.float32).at[:H].set(w_hh)
        b = place_gates((params["b_ih"][l] + params["b_hh"][l]).reshape(1, 4 * H))
        args += [w_ih.astype(compute_dtype), w_hh.astype(compute_dtype), b]
    w_fc = jnp.zeros((Hpad, LANE), jnp.float32).at[:H, 0].set(params["w_fc"][0])
    b_fc = jnp.zeros((1, LANE), jnp.float32).at[0, 0].set(params["b_fc"][0])
    args += [w_fc.astype(compute_dtype), b_fc]
    return args


@functools.partial(jax.jit, static_argnames=("num_layers", "compute_dtype"))
def lstm_anomaly_forward(x, params, *, num_layers, compute_dtype=jnp.float32):
    B, T, D = x.shape
    H = params["w_hh"][0].shape[1]
    Hpad = _round_up(H, LANE)

    b_tile = _pick_b_tile(B)
    B_pad = _round_up(B, b_tile)
    grid = B_pad // b_tile

    mm_dtype = jnp.dtype(compute_dtype)
    # Store x / y_buf in the matmul dtype only when the tile layout stays (16,128)-legal
    # for sub-32-bit dtypes; otherwise keep f32 and cast inside the kernel.
    aligned16 = (b_tile % 16 == 0)
    x_dtype = mm_dtype if (mm_dtype != jnp.float32 and (aligned16 or b_tile == B_pad)) else jnp.float32
    seq_dtype = mm_dtype if (mm_dtype != jnp.float32 and aligned16) else jnp.float32

    # Time-major input; batch zero-padded to whole tiles; feature dim NOT padded
    # (block last dim == full array dim) -> no 8x HBM inflation.  Padding is exact.
    x_tm = jnp.transpose(x, (1, 0, 2)).astype(x_dtype)              # (T, B, D)
    x_p = jnp.zeros((T, B_pad, D), x_dtype).at[:, :B, :].set(x_tm)

    w_args = _prepare_kernel_params(params, D, H, Hpad, num_layers, compute_dtype)
    args = [x_p] + w_args

    def full_spec(shape):
        nd = len(shape)
        return pl.BlockSpec(shape, lambda b, _nd=nd: (0,) * _nd)

    in_specs = [pl.BlockSpec((T, b_tile, D), lambda b: (0, b, 0))]
    in_specs += [full_spec(a.shape) for a in w_args]
    out_specs = pl.BlockSpec((b_tile, LANE), lambda b: (b, 0))

    scratch = [pltpu.VMEM((T * b_tile, 4 * Hpad), jnp.float32)]      # per-step gate inputs
    if num_layers > 1:
        scratch.append(pltpu.VMEM((T * b_tile, Hpad), seq_dtype))    # in-place layer output seq

    # VMEM budget: 2x (double-buffered) blocks + scratch + margin, clipped per generation.
    wbytes = jnp.dtype(compute_dtype).itemsize
    blk = T * b_tile * D * jnp.dtype(x_dtype).itemsize + b_tile * LANE * 4
    for l in range(num_layers):
        d_in = D if l == 0 else Hpad
        blk += (d_in + Hpad) * 4 * Hpad * wbytes + 4 * Hpad * 4
    blk += Hpad * LANE * wbytes + LANE * 4
    scratch_bytes = T * b_tile * 4 * Hpad * 4
    if num_layers > 1:
        scratch_bytes += T * b_tile * Hpad * jnp.dtype(seq_dtype).itemsize
    est = 2 * blk + scratch_bytes + (4 << 20)
    vmem_limit = int(min(max(est, 16 << 20), _vmem_budget_bytes()))

    out_pad = pl.pallas_call(
        make_lstm_kernel(num_layers, T, b_tile, Hpad, mm_dtype, seq_dtype),
        out_shape=jax.ShapeDtypeStruct((B_pad, LANE), jnp.float32),
        grid=(grid,),
        in_specs=in_specs,
        out_specs=out_specs,
        scratch_shapes=scratch,
        compiler_params=pltpu.CompilerParams(
            dimension_semantics=("parallel",),
            vmem_limit_bytes=vmem_limit),
    )(*args)
    return out_pad[:B, :1]


def lstm_anomaly_ref(x, params, num_layers):
    """Pure-JAX f32 reference mirroring torch.nn.LSTM semantics (HIGHEST matmul precision)."""
    B, T, _ = x.shape
    H = params["w_hh"][0].shape[1]
    hi = jax.lax.Precision.HIGHEST
    seq = x
    for l in range(num_layers):
        w_ih = params["w_ih"][l].T
        w_hh = params["w_hh"][l].T
        b = (params["b_ih"][l] + params["b_hh"][l])[None, :]
        h = jnp.zeros((B, H), jnp.float32)
        c = jnp.zeros((B, H), jnp.float32)
        outs = []
        for t in range(T):
            g = jnp.dot(seq[:, t, :], w_ih, precision=hi) + jnp.dot(h, w_hh, precision=hi) + b
            i_g = jax.nn.sigmoid(g[:, :H])
            f_g = jax.nn.sigmoid(g[:, H:2 * H])
            g_g = jnp.tanh(g[:, 2 * H:3 * H])
            o_g = jax.nn.sigmoid(g[:, 3 * H:])
            c = f_g * c + i_g * g_g
            h = o_g * jnp.tanh(c)
            outs.append(h)
        seq = jnp.stack(outs, axis=1)
    return jnp.dot(seq[:, -1, :], params["w_fc"].T, precision=hi) + params["b_fc"][None, :]


if __name__ == "__main__":
    input_size, hidden_size, num_layers = 16, 32, 2
    B, T = 2, 8

    key = jax.random.PRNGKey(0)
    key, xkey = jax.random.split(key)
    x = jax.random.normal(xkey, (B, T, input_size), jnp.float32)
    params = init_params(key, input_size, hidden_size, num_layers)

    ref = lstm_anomaly_ref(x, params, num_layers)

    # f32 path — must closely match the f32 reference.
    out = jax.block_until_ready(
        lstm_anomaly_forward(x, params, num_layers=num_layers, compute_dtype=jnp.float32))
    assert out.shape == (B, 1), out.shape
    assert jnp.allclose(out, ref, atol=2e-3, rtol=2e-3), (out, ref)

    # bf16-matmul path (recommended on v5e/v6e/v7x): f32 accumulation + f32 gate math.
    out_bf16 = jax.block_until_ready(
        lstm_anomaly_forward(x, params, num_layers=num_layers, compute_dtype=jnp.bfloat16))
    assert out_bf16.shape == (B, 1), out_bf16.shape
    assert bool(jnp.all(jnp.isfinite(out_bf16)))
    assert jnp.allclose(out_bf16, ref, atol=1e-1, rtol=1e-1), (out_bf16, ref)

    # Multi-tile batch path: exercises the batch grid / index_maps with B_pad > B_TILE.
    B2 = 40
    key, xkey2 = jax.random.split(key)
    x2 = jax.random.normal(xkey2, (B2, T, input_size), jnp.float32)
    ref2 = lstm_anomaly_ref(x2, params, num_layers)
    out2 = jax.block_until_ready(
        lstm_anomaly_forward(x2, params, num_layers=num_layers, compute_dtype=jnp.float32))
    assert out2.shape == (B2, 1), out2.shape
    assert jnp.allclose(out2, ref2, atol=2e-3, rtol=2e-3), (out2, ref2)

    print("KERNEL_OK")
</pallas_src>

<mosaic_0001>
module attributes {stable_mosaic.version = 11 : i64} {
  func.func @kernel(%arg0: i32, %arg1: memref<8x8x16xf32, #tpu.memory_space<vmem>>, %arg2: memref<16x512xf32, #tpu.memory_space<vmem>>, %arg3: memref<128x512xf32, #tpu.memory_space<vmem>>, %arg4: memref<1x512xf32, #tpu.memory_space<vmem>>, %arg5: memref<128x512xf32, #tpu.memory_space<vmem>>, %arg6: memref<128x512xf32, #tpu.memory_space<vmem>>, %arg7: memref<1x512xf32, #tpu.memory_space<vmem>>, %arg8: memref<128x128xf32, #tpu.memory_space<vmem>>, %arg9: memref<1x128xf32, #tpu.memory_space<vmem>>, %arg10: memref<8x128xf32, #tpu.memory_space<vmem>>, %arg11: memref<64x512xf32, #tpu.memory_space<vmem>>, %arg12: memref<64x128xf32, #tpu.memory_space<vmem>>) attributes {dimension_semantics = [#tpu.dimension_semantics<parallel>], iteration_bounds = array<i64: 1>, scalar_prefetch = 0 : i64, scratch_operands = 2 : i64, tpu.core_type = #tpu.core_type<tc>, window_params = [{transform_indices = @transform_0, window_bounds = array<i64: 8, 8, 16>}, {pipeline_mode = #tpu.pipeline_mode<synchronous>, transform_indices = @transform_1, window_bounds = array<i64: 16, 512>}, {pipeline_mode = #tpu.pipeline_mode<synchronous>, transform_indices = @transform_2, window_bounds = array<i64: 128, 512>}, {pipeline_mode = #tpu.pipeline_mode<synchronous>, transform_indices = @transform_3, window_bounds = array<i64: 1, 512>}, {pipeline_mode = #tpu.pipeline_mode<synchronous>, transform_indices = @transform_4, window_bounds = array<i64: 128, 512>}, {pipeline_mode = #tpu.pipeline_mode<synchronous>, transform_indices = @transform_5, window_bounds = array<i64: 128, 512>}, {pipeline_mode = #tpu.pipeline_mode<synchronous>, transform_indices = @transform_6, window_bounds = array<i64: 1, 512>}, {pipeline_mode = #tpu.pipeline_mode<synchronous>, transform_indices = @transform_7, window_bounds = array<i64: 128, 128>}, {pipeline_mode = #tpu.pipeline_mode<synchronous>, transform_indices = @transform_8, window_bounds = array<i64: 1, 128>}, {transform_indices = @transform_9, window_bounds = array<i64: 8, 128>}]} {
    %c0 = arith.constant 0 : index
    %c0_0 = arith.constant 0 : index
    %c0_1 = arith.constant 0 : index
    %0 = vector.load %arg1[%c0, %c0_0, %c0_1] : memref<8x8x16xf32, #tpu.memory_space<vmem>>, vector<8x8x16xf32>
    %1 = vector.shape_cast %0 : vector<8x8x16xf32> to vector<64x16xf32>
    %c0_2 = arith.constant 0 : index
    %c0_3 = arith.constant 0 : index
    %2 = vector.load %arg2[%c0_2, %c0_3] : memref<16x512xf32, #tpu.memory_space<vmem>>, vector<16x512xf32>
    %cst = arith.constant dense<0.000000e+00> : vector<64x512xf32>
    %3 = tpu.matmul %1, %2, %cst {dimension_numbers = #tpu.dot_dimension_numbers<[1], [0], [0], [1], [0, 0, 1, 1], [], []>} : vector<64x16xf32>, vector<16x512xf32>, vector<64x512xf32> -> vector<64x512xf32>
    %c0_4 = arith.constant 0 : index
    %c0_5 = arith.constant 0 : index
    %4 = vector.load %arg4[%c0_4, %c0_5] : memref<1x512xf32, #tpu.memory_space<vmem>>, vector<1x512xf32>
    %5 = vector.broadcast %4 : vector<1x512xf32> to vector<64x512xf32>
    %6 = arith.addf %3, %5 : vector<64x512xf32>
    %c0_6 = arith.constant 0 : index
    %c0_7 = arith.constant 0 : index
    %7 = vector.load %arg11[%c0_6, %c0_7] : memref<64x512xf32, #tpu.memory_space<vmem>>, vector<64x512xf32>
    tpu.vector_store %arg11[%c0_6, %c0_7], %6 {strides = array<i32>} : memref<64x512xf32, #tpu.memory_space<vmem>>, vector<64x512xf32>,
    %cst_8 = arith.constant 0.000000e+00 : f32
    %8 = vector.broadcast %cst_8 : f32 to vector<8x128xf32>
    %cst_9 = arith.constant 0.000000e+00 : f32
    %9 = vector.broadcast %cst_9 : f32 to vector<8x128xf32>
    %c0_i32 = arith.constant 0 : i32
    %c8_i32 = arith.constant 8 : i32
    %10 = arith.muli %c0_i32, %c8_i32 : i32
    %11 = tpu.assume_multiple %10, 8 : i32
    %12 = arith.index_cast %11 : i32 to index
    %c0_10 = arith.constant 0 : index
    %13 = vector.load %arg11[%12, %c0_10] : memref<64x512xf32, #tpu.memory_space<vmem>>, vector<8x512xf32>
    %c0_11 = arith.constant 0 : index
    %c0_12 = arith.constant 0 : index
    %14 = vector.load %arg3[%c0_11, %c0_12] : memref<128x512xf32, #tpu.memory_space<vmem>>, vector<128x512xf32>
    %cst_13 = arith.constant dense<0.000000e+00> : vector<8x512xf32>
    %15 = tpu.matmul %8, %14, %cst_13 {dimension_numbers = #tpu.dot_dimension_numbers<[1], [0], [0], [1], [0, 0, 1, 1], [], []>} : vector<8x128xf32>, vector<128x512xf32>, vector<8x512xf32> -> vector<8x512xf32>
    %16 = arith.addf %13, %15 : vector<8x512xf32>
    %17 = vector.extract_strided_slice %16 {offsets = [0, 0], sizes = [8, 128], strides = [1, 1]} : vector<8x512xf32> to vector<8x128xf32>
    %18 = arith.negf %17 : vector<8x128xf32>
    %19 = math.exp %18 : vector<8x128xf32>
    %cst_14 = arith.constant 1.000000e+00 : f32
    %20 = vector.broadcast %cst_14 : f32 to vector<8x128xf32>
    %21 = arith.addf %20, %19 : vector<8x128xf32>
    %22 = arith.divf %20, %21 : vector<8x128xf32>
    %23 = vector.extract_strided_slice %16 {offsets = [0, 128], sizes = [8, 128], strides = [1, 1]} : vector<8x512xf32> to vector<8x128xf32>
    %24 = arith.negf %23 : vector<8x128xf32>
    %25 = math.exp %24 : vector<8x128xf32>
    %cst_15 = arith.constant 1.000000e+00 : f32
    %26 = vector.broadcast %cst_15 : f32 to vector<8x128xf32>
    %27 = arith.addf %26, %25 : vector<8x128xf32>
    %28 = arith.divf %26, %27 : vector<8x128xf32>
    %29 = vector.extract_strided_slice %16 {offsets = [0, 256], sizes = [8, 128], strides = [1, 1]} : vector<8x512xf32> to vector<8x128xf32>
    %30 = math.tanh %29 : vector<8x128xf32>
    %31 = vector.extract_strided_slice %16 {offsets = [0, 384], sizes = [8, 128], strides = [1, 1]} : vector<8x512xf32> to vector<8x128xf32>
    %32 = arith.negf %31 : vector<8x128xf32>
    %33 = math.exp %32 : vector<8x128xf32>
    %cst_16 = arith.constant 1.000000e+00 : f32
    %34 = vector.broadcast %cst_16 : f32 to vector<8x128xf32>
    %35 = arith.addf %34, %33 : vector<8x128xf32>
    %36 = arith.divf %34, %35 : vector<8x128xf32>
    %37 = arith.mulf %28, %9 : vector<8x128xf32>
    %38 = arith.mulf %22, %30 : vector<8x128xf32>
    %39 = arith.addf %37, %38 : vector<8x128xf32>
    %40 = math.tanh %39 : vector<8x128xf32>
    %41 = arith.mulf %36, %40 : vector<8x128xf32>
    %42 = arith.index_cast %11 : i32 to index
    %c0_17 = arith.constant 0 : index
    %43 = vector.load %arg12[%42, %c0_17] : memref<64x128xf32, #tpu.memory_space<vmem>>, vector<8x128xf32>
    tpu.vector_store %arg12[%42, %c0_17], %41 {strides = array<i32>} : memref<64x128xf32, #tpu.memory_space<vmem>>, vector<8x128xf32>,
    %c1_i32 = arith.constant 1 : i32
    %c8_i32_18 = arith.constant 8 : i32
    %44 = arith.muli %c1_i32, %c8_i32_18 : i32
    %45 = tpu.assume_multiple %44, 8 : i32
    %46 = arith.index_cast %45 : i32 to index
    %c0_19 = arith.constant 0 : index
    %47 = vector.load %arg11[%46, %c0_19] : memref<64x512xf32, #tpu.memory_space<vmem>>, vector<8x512xf32>
    %c0_20 = arith.constant 0 : index
    %c0_21 = arith.constant 0 : index
    %48 = vector.load %arg3[%c0_20, %c0_21] : memref<128x512xf32, #tpu.memory_space<vmem>>, vector<128x512xf32>
    %cst_22 = arith.constant dense<0.000000e+00> : vector<8x512xf32>
    %49 = tpu.matmul %41, %48, %cst_22 {dimension_numbers = #tpu.dot_dimension_numbers<[1], [0], [0], [1], [0, 0, 1, 1], [], []>} : vector<8x128xf32>, vector<128x512xf32>, vector<8x512xf32> -> vector<8x512xf32>
    %50 = arith.addf %47, %49 : vector<8x512xf32>
    %51 = vector.extract_strided_slice %50 {offsets = [0, 0], sizes = [8, 128], strides = [1, 1]} : vector<8x512xf32> to vector<8x128xf32>
    %52 = arith.negf %51 : vector<8x128xf32>
    %53 = math.exp %52 : vector<8x128xf32>
    %cst_23 = arith.constant 1.000000e+00 : f32
    %54 = vector.broadcast %cst_23 : f32 to vector<8x128xf32>
    %55 = arith.addf %54, %53 : vector<8x128xf32>
    %56 = arith.divf %54, %55 : vector<8x128xf32>
    %57 = vector.extract_strided_slice %50 {offsets = [0, 128], sizes = [8, 128], strides = [1, 1]} : vector<8x512xf32> to vector<8x128xf32>
    %58 = arith.negf %57 : vector<8x128xf32>
    %59 = math.exp %58 : vector<8x128xf32>
    %cst_24 = arith.constant 1.000000e+00 : f32
    %60 = vector.broadcast %cst_24 : f32 to vector<8x128xf32>
    %61 = arith.addf %60, %59 : vector<8x128xf32>
    %62 = arith.divf %60, %61 : vector<8x128xf32>
    %63 = vector.extract_strided_slice %50 {offsets = [0, 256], sizes = [8, 128], strides = [1, 1]} : vector<8x512xf32> to vector<8x128xf32>
    %64 = math.tanh %63 : vector<8x128xf32>
    %65 = vector.extract_strided_slice %50 {offsets = [0, 384], sizes = [8, 128], strides = [1, 1]} : vector<8x512xf32> to vector<8x128xf32>
    %66 = arith.negf %65 : vector<8x128xf32>
    %67 = math.exp %66 : vector<8x128xf32>
    %cst_25 = arith.constant 1.000000e+00 : f32
    %68 = vector.broadcast %cst_25 : f32 to vector<8x128xf32>
    %69 = arith.addf %68, %67 : vector<8x128xf32>
    %70 = arith.divf %68, %69 : vector<8x128xf32>
    %71 = arith.mulf %62, %39 : vector<8x128xf32>
    %72 = arith.mulf %56, %64 : vector<8x128xf32>
    %73 = arith.addf %71, %72 : vector<8x128xf32>
    %74 = math.tanh %73 : vector<8x128xf32>
    %75 = arith.mulf %70, %74 : vector<8x128xf32>
    %76 = arith.index_cast %45 : i32 to index
    %c0_26 = arith.constant 0 : index
    %77 = vector.load %arg12[%76, %c0_26] : memref<64x128xf32, #tpu.memory_space<vmem>>, vector<8x128xf32>
    tpu.vector_store %arg12[%76, %c0_26], %75 {strides = array<i32>} : memref<64x128xf32, #tpu.memory_space<vmem>>, vector<8x128xf32>,
    %c2_i32 = arith.constant 2 : i32
    %c8_i32_27 = arith.constant 8 : i32
    %78 = arith.muli %c2_i32, %c8_i32_27 : i32
    %79 = tpu.assume_multiple %78, 8 : i32
    %80 = arith.index_cast %79 : i32 to index
    %c0_28 = arith.constant 0 : index
    %81 = vector.load %arg11[%80, %c0_28] : memref<64x512xf32, #tpu.memory_space<vmem>>, vector<8x512xf32>
    %c0_29 = arith.constant 0 : index
    %c0_30 = arith.constant 0 : index
    %82 = vector.load %arg3[%c0_29, %c0_30] : memref<128x512xf32, #tpu.memory_space<vmem>>, vector<128x512xf32>
    %cst_31 = arith.constant dense<0.000000e+00> : vector<8x512xf32>
    %83 = tpu.matmul %75, %82, %cst_31 {dimension_numbers = #tpu.dot_dimension_numbers<[1], [0], [0], [1], [0, 0, 1, 1], [], []>} : vector<8x128xf32>, vector<128x512xf32>, vector<8x512xf32> -> vector<8x512xf32>
    %84 = arith.addf %81, %83 : vector<8x512xf32>
    %85 = vector.extract_strided_slice %84 {offsets = [0, 0], sizes = [8, 128], strides = [1, 1]} : vector<8x512xf32> to vector<8x128xf32>
    %86 = arith.negf %85 : vector<8x128xf32>
    %87 = math.exp %86 : vector<8x128xf32>
    %cst_32 = arith.constant 1.000000e+00 : f32
    %88 = vector.broadcast %cst_32 : f32 to vector<8x128xf32>
    %89 = arith.addf %88, %87 : vector<8x128xf32>
    %90 = arith.divf %88, %89 : vector<8x128xf32>
    %91 = vector.extract_strided_slice %84 {offsets = [0, 128], sizes = [8, 128], strides = [1, 1]} : vector<8x512xf32> to vector<8x128xf32>
    %92 = arith.negf %91 : vector<8x128xf32>
    %93 = math.exp %92 : vector<8x128xf32>
    %cst_33 = arith.constant 1.000000e+00 : f32
    %94 = vector.broadcast %cst_33 : f32 to vector<8x128xf32>
    %95 = arith.addf %94, %93 : vector<8x128xf32>
    %96 = arith.divf %94, %95 : vector<8x128xf32>
    %97 = vector.extract_strided_slice %84 {offsets = [0, 256], sizes = [8, 128], strides = [1, 1]} : vector<8x512xf32> to vector<8x128xf32>
    %98 = math.tanh %97 : vector<8x128xf32>
    %99 = vector.extract_strided_slice %84 {offsets = [0, 384], sizes = [8, 128], strides = [1, 1]} : vector<8x512xf32> to vector<8x128xf32>
    %100 = arith.negf %99 : vector<8x128xf32>
    %101 = math.exp %100 : vector<8x128xf32>
    %cst_34 = arith.constant 1.000000e+00 : f32
    %102 = vector.broadcast %cst_34 : f32 to vector<8x128xf32>
    %103 = arith.addf %102, %101 : vector<8x128xf32>
    %104 = arith.divf %102, %103 : vector<8x128xf32>
    %105 = arith.mulf %96, %73 : vector<8x128xf32>
    %106 = arith.mulf %90, %98 : vector<8x128xf32>
    %107 = arith.addf %105, %106 : vector<8x128xf32>
    %108 = math.tanh %107 : vector<8x128xf32>
    %109 = arith.mulf %104, %108 : vector<8x128xf32>
    %110 = arith.index_cast %79 : i32 to index
    %c0_35 = arith.constant 0 : index
    %111 = vector.load %arg12[%110, %c0_35] : memref<64x128xf32, #tpu.memory_space<vmem>>, vector<8x128xf32>
    tpu.vector_store %arg12[%110, %c0_35], %109 {strides = array<i32>} : memref<64x128xf32, #tpu.memory_space<vmem>>, vector<8x128xf32>,
    %c3_i32 = arith.constant 3 : i32
    %c8_i32_36 = arith.constant 8 : i32
    %112 = arith.muli %c3_i32, %c8_i32_36 : i32
    %113 = tpu.assume_multiple %112, 8 : i32
    %114 = arith.index_cast %113 : i32 to index
    %c0_37 = arith.constant 0 : index
    %115 = vector.load %arg11[%114, %c0_37] : memref<64x512xf32, #tpu.memory_space<vmem>>, vector<8x512xf32>
    %c0_38 = arith.constant 0 : index
    %c0_39 = arith.constant 0 : index
    %116 = vector.load %arg3[%c0_38, %c0_39] : memref<128x512xf32, #tpu.memory_space<vmem>>, vector<128x512xf32>
    %cst_40 = arith.constant dense<0.000000e+00> : vector<8x512xf32>
    %117 = tpu.matmul %109, %116, %cst_40 {dimension_numbers = #tpu.dot_dimension_numbers<[1], [0], [0], [1], [0, 0, 1, 1], [], []>} : vector<8x128xf32>, vector<128x512xf32>, vector<8x512xf32> -> vector<8x512xf32>
    %118 = arith.addf %115, %117 : vector<8x512xf32>
    %119 = vector.extract_strided_slice %118 {offsets = [0, 0], sizes = [8, 128], strides = [1, 1]} : vector<8x512xf32> to vector<8x128xf32>
    %120 = arith.negf %119 : vector<8x128xf32>
    %121 = math.exp %120 : vector<8x128xf32>
    %cst_41 = arith.constant 1.000000e+00 : f32
    %122 = vector.broadcast %cst_41 : f32 to vector<8x128xf32>
    %123 = arith.addf %122, %121 : vector<8x128xf32>
    %124 = arith.divf %122, %123 : vector<8x128xf32>
    %125 = vector.extract_strided_slice %118 {offsets = [0, 128], sizes = [8, 128], strides = [1, 1]} : vector<8x512xf32> to vector<8x128xf32>
    %126 = arith.negf %125 : vector<8x128xf32>
    %127 = math.exp %126 : vector<8x128xf32>
    %cst_42 = arith.constant 1.000000e+00 : f32
    %128 = vector.broadcast %cst_42 : f32 to vector<8x128xf32>
    %129 = arith.addf %128, %127 : vector<8x128xf32>
    %130 = arith.divf %128, %129 : vector<8x128xf32>
    %131 = vector.extract_strided_slice %118 {offsets = [0, 256], sizes = [8, 128], strides = [1, 1]} : vector<8x512xf32> to vector<8x128xf32>
    %132 = math.tanh %131 : vector<8x128xf32>
    %133 = vector.extract_strided_slice %118 {offsets = [0, 384], sizes = [8, 128], strides = [1, 1]} : vector<8x512xf32> to vector<8x128xf32>
    %134 = arith.negf %133 : vector<8x128xf32>
    %135 = math.exp %134 : vector<8x128xf32>
    %cst_43 = arith.constant 1.000000e+00 : f32
    %136 = vector.broadcast %cst_43 : f32 to vector<8x128xf32>
    %137 = arith.addf %136, %135 : vector<8x128xf32>
    %138 = arith.divf %136, %137 : vector<8x128xf32>
    %139 = arith.mulf %130, %107 : vector<8x128xf32>
    %140 = arith.mulf %124, %132 : vector<8x128xf32>
    %141 = arith.addf %139, %140 : vector<8x128xf32>
    %142 = math.tanh %141 : vector<8x128xf32>
    %143 = arith.mulf %138, %142 : vector<8x128xf32>
    %144 = arith.index_cast %113 : i32 to index
    %c0_44 = arith.constant 0 : index
    %145 = vector.load %arg12[%144, %c0_44] : memref<64x128xf32, #tpu.memory_space<vmem>>, vector<8x128xf32>
    tpu.vector_store %arg12[%144, %c0_44], %143 {strides = array<i32>} : memref<64x128xf32, #tpu.memory_space<vmem>>, vector<8x128xf32>,
    %c4_i32 = arith.constant 4 : i32
    %c8_i32_45 = arith.constant 8 : i32
    %146 = arith.muli %c4_i32, %c8_i32_45 : i32
    %147 = tpu.assume_multiple %146, 8 : i32
    %148 = arith.index_cast %147 : i32 to index
    %c0_46 = arith.constant 0 : index
    %149 = vector.load %arg11[%148, %c0_46] : memref<64x512xf32, #tpu.memory_space<vmem>>, vector<8x512xf32>
    %c0_47 = arith.constant 0 : index
    %c0_48 = arith.constant 0 : index
    %150 = vector.load %arg3[%c0_47, %c0_48] : memref<128x512xf32, #tpu.memory_space<vmem>>, vector<128x512xf32>
    %cst_49 = arith.constant dense<0.000000e+00> : vector<8x512xf32>
    %151 = tpu.matmul %143, %150, %cst_49 {dimension_numbers = #tpu.dot_dimension_numbers<[1], [0], [0], [1], [0, 0, 1, 1], [], []>} : vector<8x128xf32>, vector<128x512xf32>, vector<8x512xf32> -> vector<8x512xf32>
    %152 = arith.addf %149, %151 : vector<8x512xf32>
    %153 = vector.extract_strided_slice %152 {offsets = [0, 0], sizes = [8, 128], strides = [1, 1]} : vector<8x512xf32> to vector<8x128xf32>
    %154 = arith.negf %153 : vector<8x128xf32>
    %155 = math.exp %154 : vector<8x128xf32>
    %cst_50 = arith.constant 1.000000e+00 : f32
    %156 = vector.broadcast %cst_50 : f32 to vector<8x128xf32>
    %157 = arith.addf %156, %155 : vector<8x128xf32>
    %158 = arith.divf %156, %157 : vector<8x128xf32>
    %159 = vector.extract_strided_slice %152 {offsets = [0, 128], sizes = [8, 128], strides = [1, 1]} : vector<8x512xf32> to vector<8x128xf32>
    %160 = arith.negf %159 : vector<8x128xf32>
    %161 = math.exp %160 : vector<8x128xf32>
    %cst_51 = arith.constant 1.000000e+00 : f32
    %162 = vector.broadcast %cst_51 : f32 to vector<8x128xf32>
    %163 = arith.addf %162, %161 : vector<8x128xf32>
    %164 = arith.divf %162, %163 : vector<8x128xf32>
    %165 = vector.extract_strided_slice %152 {offsets = [0, 256], sizes = [8, 128], strides = [1, 1]} : vector<8x512xf32> to vector<8x128xf32>
    %166 = math.tanh %165 : vector<8x128xf32>
    %167 = vector.extract_strided_slice %152 {offsets = [0, 384], sizes = [8, 128], strides = [1, 1]} : vector<8x512xf32> to vector<8x128xf32>
    %168 = arith.negf %167 : vector<8x128xf32>
    %169 = math.exp %168 : vector<8x128xf32>
    %cst_52 = arith.constant 1.000000e+00 : f32
    %170 = vector.broadcast %cst_52 : f32 to vector<8x128xf32>
    %171 = arith.addf %170, %169 : vector<8x128xf32>
    %172 = arith.divf %170, %171 : vector<8x128xf32>
    %173 = arith.mulf %164, %141 : vector<8x128xf32>
    %174 = arith.mulf %158, %166 : vector<8x128xf32>
    %175 = arith.addf %173, %174 : vector<8x128xf32>
    %176 = math.tanh %175 : vector<8x128xf32>
    %177 = arith.mulf %172, %176 : vector<8x128xf32>
    %178 = arith.index_cast %147 : i32 to index
    %c0_53 = arith.constant 0 : index
    %179 = vector.load %arg12[%178, %c0_53] : memref<64x128xf32, #tpu.memory_space<vmem>>, vector<8x128xf32>
    tpu.vector_store %arg12[%178, %c0_53], %177 {strides = array<i32>} : memref<64x128xf32, #tpu.memory_space<vmem>>, vector<8x128xf32>,
    %c5_i32 = arith.constant 5 : i32
    %c8_i32_54 = arith.constant 8 : i32
    %180 = arith.muli %c5_i32, %c8_i32_54 : i32
    %181 = tpu.assume_multiple %180, 8 : i32
    %182 = arith.index_cast %181 : i32 to index
    %c0_55 = arith.constant 0 : index
    %183 = vector.load %arg11[%182, %c0_55] : memref<64x512xf32, #tpu.memory_space<vmem>>, vector<8x512xf32>
    %c0_56 = arith.constant 0 : index
    %c0_57 = arith.constant 0 : index
    %184 = vector.load %arg3[%c0_56, %c0_57] : memref<128x512xf32, #tpu.memory_space<vmem>>, vector<128x512xf32>
    %cst_58 = arith.constant dense<0.000000e+00> : vector<8x512xf32>
    %185 = tpu.matmul %177, %184, %cst_58 {dimension_numbers = #tpu.dot_dimension_numbers<[1], [0], [0], [1], [0, 0, 1, 1], [], []>} : vector<8x128xf32>, vector<128x512xf32>, vector<8x512xf32> -> vector<8x512xf32>
    %186 = arith.addf %183, %185 : vector<8x512xf32>
    %187 = vector.extract_strided_slice %186 {offsets = [0, 0], sizes = [8, 128], strides = [1, 1]} : vector<8x512xf32> to vector<8x128xf32>
    %188 = arith.negf %187 : vector<8x128xf32>
    %189 = math.exp %188 : vector<8x128xf32>
    %cst_59 = arith.constant 1.000000e+00 : f32
    %190 = vector.broadcast %cst_59 : f32 to vector<8x128xf32>
    %191 = arith.addf %190, %189 : vector<8x128xf32>
    %192 = arith.divf %190, %191 : vector<8x128xf32>
    %193 = vector.extract_strided_slice %186 {offsets = [0, 128], sizes = [8, 128], strides = [1, 1]} : vector<8x512xf32> to vector<8x128xf32>
    %194 = arith.negf %193 : vector<8x128xf32>
    %195 = math.exp %194 : vector<8x128xf32>
    %cst_60 = arith.constant 1.000000e+00 : f32
    %196 = vector.broadcast %cst_60 : f32 to vector<8x128xf32>
    %197 = arith.addf %196, %195 : vector<8x128xf32>
    %198 = arith.divf %196, %197 : vector<8x128xf32>
    %199 = vector.extract_strided_slice %186 {offsets = [0, 256], sizes = [8, 128], strides = [1, 1]} : vector<8x512xf32> to vector<8x128xf32>
    %200 = math.tanh %199 : vector<8x128xf32>
    %201 = vector.extract_strided_slice %186 {offsets = [0, 384], sizes = [8, 128], strides = [1, 1]} : vector<8x512xf32> to vector<8x128xf32>
    %202 = arith.negf %201 : vector<8x128xf32>
    %203 = math.exp %202 : vector<8x128xf32>
    %cst_61 = arith.constant 1.000000e+00 : f32
    %204 = vector.broadcast %cst_61 : f32 to vector<8x128xf32>
    %205 = arith.addf %204, %203 : vector<8x128xf32>
    %206 = arith.divf %204, %205 : vector<8x128xf32>
    %207 = arith.mulf %198, %175 : vector<8x128xf32>
    %208 = arith.mulf %192, %200 : vector<8x128xf32>
    %209 = arith.addf %207, %208 : vector<8x128xf32>
    %210 = math.tanh %209 : vector<8x128xf32>
    %211 = arith.mulf %206, %210 : vector<8x128xf32>
    %212 = arith.index_cast %181 : i32 to index
    %c0_62 = arith.constant 0 : index
    %213 = vector.load %arg12[%212, %c0_62] : memref<64x128xf32, #tpu.memory_space<vmem>>, vector<8x128xf32>
    tpu.vector_store %arg12[%212, %c0_62], %211 {strides = array<i32>} : memref<64x128xf32, #tpu.memory_space<vmem>>, vector<8x128xf32>,
    %c6_i32 = arith.constant 6 : i32
    %c8_i32_63 = arith.constant 8 : i32
    %214 = arith.muli %c6_i32, %c8_i32_63 : i32
    %215 = tpu.assume_multiple %214, 8 : i32
    %216 = arith.index_cast %215 : i32 to index
    %c0_64 = arith.constant 0 : index
    %217 = vector.load %arg11[%216, %c0_64] : memref<64x512xf32, #tpu.memory_space<vmem>>, vector<8x512xf32>
    %c0_65 = arith.constant 0 : index
    %c0_66 = arith.constant 0 : index
    %218 = vector.load %arg3[%c0_65, %c0_66] : memref<128x512xf32, #tpu.memory_space<vmem>>, vector<128x512xf32>
    %cst_67 = arith.constant dense<0.000000e+00> : vector<8x512xf32>
    %219 = tpu.matmul %211, %218, %cst_67 {dimension_numbers = #tpu.dot_dimension_numbers<[1], [0], [0], [1], [0, 0, 1, 1], [], []>} : vector<8x128xf32>, vector<128x512xf32>, vector<8x512xf32> -> vector<8x512xf32>
    %220 = arith.addf %217, %219 : vector<8x512xf32>
    %221 = vector.extract_strided_slice %220 {offsets = [0, 0], sizes = [8, 128], strides = [1, 1]} : vector<8x512xf32> to vector<8x128xf32>
    %222 = arith.negf %221 : vector<8x128xf32>
    %223 = math.exp %222 : vector<8x128xf32>
    %cst_68 = arith.constant 1.000000e+00 : f32
    %224 = vector.broadcast %cst_68 : f32 to vector<8x128xf32>
    %225 = arith.addf %224, %223 : vector<8x128xf32>
    %226 = arith.divf %224, %225 : vector<8x128xf32>
    %227 = vector.extract_strided_slice %220 {offsets = [0, 128], sizes = [8, 128], strides = [1, 1]} : vector<8x512xf32> to vector<8x128xf32>
    %228 = arith.negf %227 : vector<8x128xf32>
    %229 = math.exp %228 : vector<8x128xf32>
    %cst_69 = arith.constant 1.000000e+00 : f32
    %230 = vector.broadcast %cst_69 : f32 to vector<8x128xf32>
    %231 = arith.addf %230, %229 : vector<8x128xf32>
    %232 = arith.divf %230, %231 : vector<8x128xf32>
    %233 = vector.extract_strided_slice %220 {offsets = [0, 256], sizes = [8, 128], strides = [1, 1]} : vector<8x512xf32> to vector<8x128xf32>
    %234 = math.tanh %233 : vector<8x128xf32>
    %235 = vector.extract_strided_slice %220 {offsets = [0, 384], sizes = [8, 128], strides = [1, 1]} : vector<8x512xf32> to vector<8x128xf32>
    %236 = arith.negf %235 : vector<8x128xf32>
    %237 = math.exp %236 : vector<8x128xf32>
    %cst_70 = arith.constant 1.000000e+00 : f32
    %238 = vector.broadcast %cst_70 : f32 to vector<8x128xf32>
    %239 = arith.addf %238, %237 : vector<8x128xf32>
    %240 = arith.divf %238, %239 : vector<8x128xf32>
    %241 = arith.mulf %232, %209 : vector<8x128xf32>
    %242 = arith.mulf %226, %234 : vector<8x128xf32>
    %243 = arith.addf %241, %242 : vector<8x128xf32>
    %244 = math.tanh %243 : vector<8x128xf32>
    %245 = arith.mulf %240, %244 : vector<8x128xf32>
    %246 = arith.index_cast %215 : i32 to index
    %c0_71 = arith.constant 0 : index
    %247 = vector.load %arg12[%246, %c0_71] : memref<64x128xf32, #tpu.memory_space<vmem>>, vector<8x128xf32>
    tpu.vector_store %arg12[%246, %c0_71], %245 {strides = array<i32>} : memref<64x128xf32, #tpu.memory_space<vmem>>, vector<8x128xf32>,
    %c7_i32 = arith.constant 7 : i32
    %c8_i32_72 = arith.constant 8 : i32
    %248 = arith.muli %c7_i32, %c8_i32_72 : i32
    %249 = tpu.assume_multiple %248, 8 : i32
    %250 = arith.index_cast %249 : i32 to index
    %c0_73 = arith.constant 0 : index
    %251 = vector.load %arg11[%250, %c0_73] : memref<64x512xf32, #tpu.memory_space<vmem>>, vector<8x512xf32>
    %c0_74 = arith.constant 0 : index
    %c0_75 = arith.constant 0 : index
    %252 = vector.load %arg3[%c0_74, %c0_75] : memref<128x512xf32, #tpu.memory_space<vmem>>, vector<128x512xf32>
    %cst_76 = arith.constant dense<0.000000e+00> : vector<8x512xf32>
    %253 = tpu.matmul %245, %252, %cst_76 {dimension_numbers = #tpu.dot_dimension_numbers<[1], [0], [0], [1], [0, 0, 1, 1], [], []>} : vector<8x128xf32>, vector<128x512xf32>, vector<8x512xf32> -> vector<8x512xf32>
    %254 = arith.addf %251, %253 : vector<8x512xf32>
    %255 = vector.extract_strided_slice %254 {offsets = [0, 0], sizes = [8, 128], strides = [1, 1]} : vector<8x512xf32> to vector<8x128xf32>
    %256 = arith.negf %255 : vector<8x128xf32>
    %257 = math.exp %256 : vector<8x128xf32>
    %cst_77 = arith.constant 1.000000e+00 : f32
    %258 = vector.broadcast %cst_77 : f32 to vector<8x128xf32>
    %259 = arith.addf %258, %257 : vector<8x128xf32>
    %260 = arith.divf %258, %259 : vector<8x128xf32>
    %261 = vector.extract_strided_slice %254 {offsets = [0, 128], sizes = [8, 128], strides = [1, 1]} : vector<8x512xf32> to vector<8x128xf32>
    %262 = arith.negf %261 : vector<8x128xf32>
    %263 = math.exp %262 : vector<8x128xf32>
    %cst_78 = arith.constant 1.000000e+00 : f32
    %264 = vector.broadcast %cst_78 : f32 to vector<8x128xf32>
    %265 = arith.addf %264, %263 : vector<8x128xf32>
    %266 = arith.divf %264, %265 : vector<8x128xf32>
    %267 = vector.extract_strided_slice %254 {offsets = [0, 256], sizes = [8, 128], strides = [1, 1]} : vector<8x512xf32> to vector<8x128xf32>
    %268 = math.tanh %267 : vector<8x128xf32>
    %269 = vector.extract_strided_slice %254 {offsets = [0, 384], sizes = [8, 128], strides = [1, 1]} : vector<8x512xf32> to vector<8x128xf32>
    %270 = arith.negf %269 : vector<8x128xf32>
    %271 = math.exp %270 : vector<8x128xf32>
    %cst_79 = arith.constant 1.000000e+00 : f32
    %272 = vector.broadcast %cst_79 : f32 to vector<8x128xf32>
    %273 = arith.addf %272, %271 : vector<8x128xf32>
    %274 = arith.divf %272, %273 : vector<8x128xf32>
    %275 = arith.mulf %266, %243 : vector<8x128xf32>
    %276 = arith.mulf %260, %268 : vector<8x128xf32>
    %277 = arith.addf %275, %276 : vector<8x128xf32>
    %278 = math.tanh %277 : vector<8x128xf32>
    %279 = arith.mulf %274, %278 : vector<8x128xf32>
    %280 = arith.index_cast %249 : i32 to index
    %c0_80 = arith.constant 0 : index
    %281 = vector.load %arg12[%280, %c0_80] : memref<64x128xf32, #tpu.memory_space<vmem>>, vector<8x128xf32>
    tpu.vector_store %arg12[%280, %c0_80], %279 {strides = array<i32>} : memref<64x128xf32, #tpu.memory_space<vmem>>, vector<8x128xf32>,
    %c8_i32_81 = arith.constant 8 : i32
    %c0_82 = arith.constant 0 : index
    %c0_83 = arith.constant 0 : index
    %282 = vector.load %arg12[%c0_82, %c0_83] : memref<64x128xf32, #tpu.memory_space<vmem>>, vector<64x128xf32>
    %c0_84 = arith.constant 0 : index
    %c0_85 = arith.constant 0 : index
    %283 = vector.load %arg5[%c0_84, %c0_85] : memref<128x512xf32, #tpu.memory_space<vmem>>, vector<128x512xf32>
    %cst_86 = arith.constant dense<0.000000e+00> : vector<64x512xf32>
    %284 = tpu.matmul %282, %283, %cst_86 {dimension_numbers = #tpu.dot_dimension_numbers<[1], [0], [0], [1], [0, 0, 1, 1], [], []>} : vector<64x128xf32>, vector<128x512xf32>, vector<64x512xf32> -> vector<64x512xf32>
    %c0_87 = arith.constant 0 : index
    %c0_88 = arith.constant 0 : index
    %285 = vector.load %arg7[%c0_87, %c0_88] : memref<1x512xf32, #tpu.memory_space<vmem>>, vector<1x512xf32>
    %286 = vector.broadcast %285 : vector<1x512xf32> to vector<64x512xf32>
    %287 = arith.addf %284, %286 : vector<64x512xf32>
    %c0_89 = arith.constant 0 : index
    %c0_90 = arith.constant 0 : index
    %288 = vector.load %arg11[%c0_89, %c0_90] : memref<64x512xf32, #tpu.memory_space<vmem>>, vector<64x512xf32>
    tpu.vector_store %arg11[%c0_89, %c0_90], %287 {strides = array<i32>} : memref<64x512xf32, #tpu.memory_space<vmem>>, vector<64x512xf32>,
    %cst_91 = arith.constant 0.000000e+00 : f32
    %289 = vector.broadcast %cst_91 : f32 to vector<8x128xf32>
    %cst_92 = arith.constant 0.000000e+00 : f32
    %290 = vector.broadcast %cst_92 : f32 to vector<8x128xf32>
    %c0_i32_93 = arith.constant 0 : i32
    %c8_i32_94 = arith.constant 8 : i32
    %291 = arith.muli %c0_i32_93, %c8_i32_94 : i32
    %292 = tpu.assume_multiple %291, 8 : i32
    %293 = arith.index_cast %292 : i32 to index
    %c0_95 = arith.constant 0 : index
    %294 = vector.load %arg11[%293, %c0_95] : memref<64x512xf32, #tpu.memory_space<vmem>>, vector<8x512xf32>
    %c0_96 = arith.constant 0 : index
    %c0_97 = arith.constant 0 : index
    %295 = vector.load %arg6[%c0_96, %c0_97] : memref<128x512xf32, #tpu.memory_space<vmem>>, vector<128x512xf32>
    %cst_98 = arith.constant dense<0.000000e+00> : vector<8x512xf32>
    %296 = tpu.matmul %289, %295, %cst_98 {dimension_numbers = #tpu.dot_dimension_numbers<[1], [0], [0], [1], [0, 0, 1, 1], [], []>} : vector<8x128xf32>, vector<128x512xf32>, vector<8x512xf32> -> vector<8x512xf32>
    %297 = arith.addf %294, %296 : vector<8x512xf32>
    %298 = vector.extract_strided_slice %297 {offsets = [0, 0], sizes = [8, 128], strides = [1, 1]} : vector<8x512xf32> to vector<8x128xf32>
    %299 = arith.negf %298 : vector<8x128xf32>
    %300 = math.exp %299 : vector<8x128xf32>
    %cst_99 = arith.constant 1.000000e+00 : f32
    %301 = vector.broadcast %cst_99 : f32 to vector<8x128xf32>
    %302 = arith.addf %301, %300 : vector<8x128xf32>
    %303 = arith.divf %301, %302 : vector<8x128xf32>
    %304 = vector.extract_strided_slice %297 {offsets = [0, 128], sizes = [8, 128], strides = [1, 1]} : vector<8x512xf32> to vector<8x128xf32>
    %305 = arith.negf %304 : vector<8x128xf32>
    %306 = math.exp %305 : vector<8x128xf32>
    %cst_100 = arith.constant 1.000000e+00 : f32
    %307 = vector.broadcast %cst_100 : f32 to vector<8x128xf32>
    %308 = arith.addf %307, %306 : vector<8x128xf32>
    %309 = arith.divf %307, %308 : vector<8x128xf32>
    %310 = vector.extract_strided_slice %297 {offsets = [0, 256], sizes = [8, 128], strides = [1, 1]} : vector<8x512xf32> to vector<8x128xf32>
    %311 = math.tanh %310 : vector<8x128xf32>
    %312 = vector.extract_strided_slice %297 {offsets = [0, 384], sizes = [8, 128], strides = [1, 1]} : vector<8x512xf32> to vector<8x128xf32>
    %313 = arith.negf %312 : vector<8x128xf32>
    %314 = math.exp %313 : vector<8x128xf32>
    %cst_101 = arith.constant 1.000000e+00 : f32
    %315 = vector.broadcast %cst_101 : f32 to vector<8x128xf32>
    %316 = arith.addf %315, %314 : vector<8x128xf32>
    %317 = arith.divf %315, %316 : vector<8x128xf32>
    %318 = arith.mulf %309, %290 : vector<8x128xf32>
    %319 = arith.mulf %303, %311 : vector<8x128xf32>
    %320 = arith.addf %318, %319 : vector<8x128xf32>
    %321 = math.tanh %320 : vector<8x128xf32>
    %322 = arith.mulf %317, %321 : vector<8x128xf32>
    %c1_i32_102 = arith.constant 1 : i32
    %c8_i32_103 = arith.constant 8 : i32
    %323 = arith.muli %c1_i32_102, %c8_i32_103 : i32
    %324 = tpu.assume_multiple %323, 8 : i32
    %325 = arith.index_cast %324 : i32 to index
    %c0_104 = arith.constant 0 : index
    %326 = vector.load %arg11[%325, %c0_104] : memref<64x512xf32, #tpu.memory_space<vmem>>, vector<8x512xf32>
    %c0_105 = arith.constant 0 : index
    %c0_106 = arith.constant 0 : index
    %327 = vector.load %arg6[%c0_105, %c0_106] : memref<128x512xf32, #tpu.memory_space<vmem>>, vector<128x512xf32>
    %cst_107 = arith.constant dense<0.000000e+00> : vector<8x512xf32>
    %328 = tpu.matmul %322, %327, %cst_107 {dimension_numbers = #tpu.dot_dimension_numbers<[1], [0], [0], [1], [0, 0, 1, 1], [], []>} : vector<8x128xf32>, vector<128x512xf32>, vector<8x512xf32> -> vector<8x512xf32>
    %329 = arith.addf %326, %328 : vector<8x512xf32>
    %330 = vector.extract_strided_slice %329 {offsets = [0, 0], sizes = [8, 128], strides = [1, 1]} : vector<8x512xf32> to vector<8x128xf32>
    %331 = arith.negf %330 : vector<8x128xf32>
    %332 = math.exp %331 : vector<8x128xf32>
    %cst_108 = arith.constant 1.000000e+00 : f32
    %333 = vector.broadcast %cst_108 : f32 to vector<8x128xf32>
    %334 = arith.addf %333, %332 : vector<8x128xf32>
    %335 = arith.divf %333, %334 : vector<8x128xf32>
    %336 = vector.extract_strided_slice %329 {offsets = [0, 128], sizes = [8, 128], strides = [1, 1]} : vector<8x512xf32> to vector<8x128xf32>
    %337 = arith.negf %336 : vector<8x128xf32>
    %338 = math.exp %337 : vector<8x128xf32>
    %cst_109 = arith.constant 1.000000e+00 : f32
    %339 = vector.broadcast %cst_109 : f32 to vector<8x128xf32>
    %340 = arith.addf %339, %338 : vector<8x128xf32>
    %341 = arith.divf %339, %340 : vector<8x128xf32>
    %342 = vector.extract_strided_slice %329 {offsets = [0, 256], sizes = [8, 128], strides = [1, 1]} : vector<8x512xf32> to vector<8x128xf32>
    %343 = math.tanh %342 : vector<8x128xf32>
    %344 = vector.extract_strided_slice %329 {offsets = [0, 384], sizes = [8, 128], strides = [1, 1]} : vector<8x512xf32> to vector<8x128xf32>
    %345 = arith.negf %344 : vector<8x128xf32>
    %346 = math.exp %345 : vector<8x128xf32>
    %cst_110 = arith.constant 1.000000e+00 : f32
    %347 = vector.broadcast %cst_110 : f32 to vector<8x128xf32>
    %348 = arith.addf %347, %346 : vector<8x128xf32>
    %349 = arith.divf %347, %348 : vector<8x128xf32>
    %350 = arith.mulf %341, %320 : vector<8x128xf32>
    %351 = arith.mulf %335, %343 : vector<8x128xf32>
    %352 = arith.addf %350, %351 : vector<8x128xf32>
    %353 = math.tanh %352 : vector<8x128xf32>
    %354 = arith.mulf %349, %353 : vector<8x128xf32>
    %c2_i32_111 = arith.constant 2 : i32
    %c8_i32_112 = arith.constant 8 : i32
    %355 = arith.muli %c2_i32_111, %c8_i32_112 : i32
    %356 = tpu.assume_multiple %355, 8 : i32
    %357 = arith.index_cast %356 : i32 to index
    %c0_113 = arith.constant 0 : index
    %358 = vector.load %arg11[%357, %c0_113] : memref<64x512xf32, #tpu.memory_space<vmem>>, vector<8x512xf32>
    %c0_114 = arith.constant 0 : index
    %c0_115 = arith.constant 0 : index
    %359 = vector.load %arg6[%c0_114, %c0_115] : memref<128x512xf32, #tpu.memory_space<vmem>>, vector<128x512xf32>
    %cst_116 = arith.constant dense<0.000000e+00> : vector<8x512xf32>
    %360 = tpu.matmul %354, %359, %cst_116 {dimension_numbers = #tpu.dot_dimension_numbers<[1], [0], [0], [1], [0, 0, 1, 1], [], []>} : vector<8x128xf32>, vector<128x512xf32>, vector<8x512xf32> -> vector<8x512xf32>
    %361 = arith.addf %358, %360 : vector<8x512xf32>
    %362 = vector.extract_strided_slice %361 {offsets = [0, 0], sizes = [8, 128], strides = [1, 1]} : vector<8x512xf32> to vector<8x128xf32>
    %363 = arith.negf %362 : vector<8x128xf32>
    %364 = math.exp %363 : vector<8x128xf32>
    %cst_117 = arith.constant 1.000000e+00 : f32
    %365 = vector.broadcast %cst_117 : f32 to vector<8x128xf32>
    %366 = arith.addf %365, %364 : vector<8x128xf32>
    %367 = arith.divf %365, %366 : vector<8x128xf32>
    %368 = vector.extract_strided_slice %361 {offsets = [0, 128], sizes = [8, 128], strides = [1, 1]} : vector<8x512xf32> to vector<8x128xf32>
    %369 = arith.negf %368 : vector<8x128xf32>
    %370 = math.exp %369 : vector<8x128xf32>
    %cst_118 = arith.constant 1.000000e+00 : f32
    %371 = vector.broadcast %cst_118 : f32 to vector<8x128xf32>
    %372 = arith.addf %371, %370 : vector<8x128xf32>
    %373 = arith.divf %371, %372 : vector<8x128xf32>
    %374 = vector.extract_strided_slice %361 {offsets = [0, 256], sizes = [8, 128], strides = [1, 1]} : vector<8x512xf32> to vector<8x128xf32>
    %375 = math.tanh %374 : vector<8x128xf32>
    %376 = vector.extract_strided_slice %361 {offsets = [0, 384], sizes = [8, 128], strides = [1, 1]} : vector<8x512xf32> to vector<8x128xf32>
    %377 = arith.negf %376 : vector<8x128xf32>
    %378 = math.exp %377 : vector<8x128xf32>
    %cst_119 = arith.constant 1.000000e+00 : f32
    %379 = vector.broadcast %cst_119 : f32 to vector<8x128xf32>
    %380 = arith.addf %379, %378 : vector<8x128xf32>
    %381 = arith.divf %379, %380 : vector<8x128xf32>
    %382 = arith.mulf %373, %352 : vector<8x128xf32>
    %383 = arith.mulf %367, %375 : vector<8x128xf32>
    %384 = arith.addf %382, %383 : vector<8x128xf32>
    %385 = math.tanh %384 : vector<8x128xf32>
    %386 = arith.mulf %381, %385 : vector<8x128xf32>
    %c3_i32_120 = arith.constant 3 : i32
    %c8_i32_121 = arith.constant 8 : i32
    %387 = arith.muli %c3_i32_120, %c8_i32_121 : i32
    %388 = tpu.assume_multiple %387, 8 : i32
    %389 = arith.index_cast %388 : i32 to index
    %c0_122 = arith.constant 0 : index
    %390 = vector.load %arg11[%389, %c0_122] : memref<64x512xf32, #tpu.memory_space<vmem>>, vector<8x512xf32>
    %c0_123 = arith.constant 0 : index
    %c0_124 = arith.constant 0 : index
    %391 = vector.load %arg6[%c0_123, %c0_124] : memref<128x512xf32, #tpu.memory_space<vmem>>, vector<128x512xf32>
    %cst_125 = arith.constant dense<0.000000e+00> : vector<8x512xf32>
    %392 = tpu.matmul %386, %391, %cst_125 {dimension_numbers = #tpu.dot_dimension_numbers<[1], [0], [0], [1], [0, 0, 1, 1], [], []>} : vector<8x128xf32>, vector<128x512xf32>, vector<8x512xf32> -> vector<8x512xf32>
    %393 = arith.addf %390, %392 : vector<8x512xf32>
    %394 = vector.extract_strided_slice %393 {offsets = [0, 0], sizes = [8, 128], strides = [1, 1]} : vector<8x512xf32> to vector<8x128xf32>
    %395 = arith.negf %394 : vector<8x128xf32>
    %396 = math.exp %395 : vector<8x128xf32>
    %cst_126 = arith.constant 1.000000e+00 : f32
    %397 = vector.broadcast %cst_126 : f32 to vector<8x128xf32>
    %398 = arith.addf %397, %396 : vector<8x128xf32>
    %399 = arith.divf %397, %398 : vector<8x128xf32>
    %400 = vector.extract_strided_slice %393 {offsets = [0, 128], sizes = [8, 128], strides = [1, 1]} : vector<8x512xf32> to vector<8x128xf32>
    %401 = arith.negf %400 : vector<8x128xf32>
    %402 = math.exp %401 : vector<8x128xf32>
    %cst_127 = arith.constant 1.000000e+00 : f32
    %403 = vector.broadcast %cst_127 : f32 to vector<8x128xf32>
    %404 = arith.addf %403, %402 : vector<8x128xf32>
    %405 = arith.divf %403, %404 : vector<8x128xf32>
    %406 = vector.extract_strided_slice %393 {offsets = [0, 256], sizes = [8, 128], strides = [1, 1]} : vector<8x512xf32> to vector<8x128xf32>
    %407 = math.tanh %406 : vector<8x128xf32>
    %408 = vector.extract_strided_slice %393 {offsets = [0, 384], sizes = [8, 128], strides = [1, 1]} : vector<8x512xf32> to vector<8x128xf32>
    %409 = arith.negf %408 : vector<8x128xf32>
    %410 = math.exp %409 : vector<8x128xf32>
    %cst_128 = arith.constant 1.000000e+00 : f32
    %411 = vector.broadcast %cst_128 : f32 to vector<8x128xf32>
    %412 = arith.addf %411, %410 : vector<8x128xf32>
    %413 = arith.divf %411, %412 : vector<8x128xf32>
    %414 = arith.mulf %405, %384 : vector<8x128xf32>
    %415 = arith.mulf %399, %407 : vector<8x128xf32>
    %416 = arith.addf %414, %415 : vector<8x128xf32>
    %417 = math.tanh %416 : vector<8x128xf32>
    %418 = arith.mulf %413, %417 : vector<8x128xf32>
    %c4_i32_129 = arith.constant 4 : i32
    %c8_i32_130 = arith.constant 8 : i32
    %419 = arith.muli %c4_i32_129, %c8_i32_130 : i32
    %420 = tpu.assume_multiple %419, 8 : i32
    %421 = arith.index_cast %420 : i32 to index
    %c0_131 = arith.constant 0 : index
    %422 = vector.load %arg11[%421, %c0_131] : memref<64x512xf32, #tpu.memory_space<vmem>>, vector<8x512xf32>
    %c0_132 = arith.constant 0 : index
    %c0_133 = arith.constant 0 : index
    %423 = vector.load %arg6[%c0_132, %c0_133] : memref<128x512xf32, #tpu.memory_space<vmem>>, vector<128x512xf32>
    %cst_134 = arith.constant dense<0.000000e+00> : vector<8x512xf32>
    %424 = tpu.matmul %418, %423, %cst_134 {dimension_numbers = #tpu.dot_dimension_numbers<[1], [0], [0], [1], [0, 0, 1, 1], [], []>} : vector<8x128xf32>, vector<128x512xf32>, vector<8x512xf32> -> vector<8x512xf32>
    %425 = arith.addf %422, %424 : vector<8x512xf32>
    %426 = vector.extract_strided_slice %425 {offsets = [0, 0], sizes = [8, 128], strides = [1, 1]} : vector<8x512xf32> to vector<8x128xf32>
    %427 = arith.negf %426 : vector<8x128xf32>
    %428 = math.exp %427 : vector<8x128xf32>
    %cst_135 = arith.constant 1.000000e+00 : f32
    %429 = vector.broadcast %cst_135 : f32 to vector<8x128xf32>
    %430 = arith.addf %429, %428 : vector<8x128xf32>
    %431 = arith.divf %429, %430 : vector<8x128xf32>
    %432 = vector.extract_strided_slice %425 {offsets = [0, 128], sizes = [8, 128], strides = [1, 1]} : vector<8x512xf32> to vector<8x128xf32>
    %433 = arith.negf %432 : vector<8x128xf32>
    %434 = math.exp %433 : vector<8x128xf32>
    %cst_136 = arith.constant 1.000000e+00 : f32
    %435 = vector.broadcast %cst_136 : f32 to vector<8x128xf32>
    %436 = arith.addf %435, %434 : vector<8x128xf32>
    %437 = arith.divf %435, %436 : vector<8x128xf32>
    %438 = vector.extract_strided_slice %425 {offsets = [0, 256], sizes = [8, 128], strides = [1, 1]} : vector<8x512xf32> to vector<8x128xf32>
    %439 = math.tanh %438 : vector<8x128xf32>
    %440 = vector.extract_strided_slice %425 {offsets = [0, 384], sizes = [8, 128], strides = [1, 1]} : vector<8x512xf32> to vector<8x128xf32>
    %441 = arith.negf %440 : vector<8x128xf32>
    %442 = math.exp %441 : vector<8x128xf32>
    %cst_137 = arith.constant 1.000000e+00 : f32
    %443 = vector.broadcast %cst_137 : f32 to vector<8x128xf32>
    %444 = arith.addf %443, %442 : vector<8x128xf32>
    %445 = arith.divf %443, %444 : vector<8x128xf32>
    %446 = arith.mulf %437, %416 : vector<8x128xf32>
    %447 = arith.mulf %431, %439 : vector<8x128xf32>
    %448 = arith.addf %446, %447 : vector<8x128xf32>
    %449 = math.tanh %448 : vector<8x128xf32>
    %450 = arith.mulf %445, %449 : vector<8x128xf32>
    %c5_i32_138 = arith.constant 5 : i32
    %c8_i32_139 = arith.constant 8 : i32
    %451 = arith.muli %c5_i32_138, %c8_i32_139 : i32
    %452 = tpu.assume_multiple %451, 8 : i32
    %453 = arith.index_cast %452 : i32 to index
    %c0_140 = arith.constant 0 : index
    %454 = vector.load %arg11[%453, %c0_140] : memref<64x512xf32, #tpu.memory_space<vmem>>, vector<8x512xf32>
    %c0_141 = arith.constant 0 : index
    %c0_142 = arith.constant 0 : index
    %455 = vector.load %arg6[%c0_141, %c0_142] : memref<128x512xf32, #tpu.memory_space<vmem>>, vector<128x512xf32>
    %cst_143 = arith.constant dense<0.000000e+00> : vector<8x512xf32>
    %456 = tpu.matmul %450, %455, %cst_143 {dimension_numbers = #tpu.dot_dimension_numbers<[1], [0], [0], [1], [0, 0, 1, 1], [], []>} : vector<8x128xf32>, vector<128x512xf32>, vector<8x512xf32> -> vector<8x512xf32>
    %457 = arith.addf %454, %456 : vector<8x512xf32>
    %458 = vector.extract_strided_slice %457 {offsets = [0, 0], sizes = [8, 128], strides = [1, 1]} : vector<8x512xf32> to vector<8x128xf32>
    %459 = arith.negf %458 : vector<8x128xf32>
    %460 = math.exp %459 : vector<8x128xf32>
    %cst_144 = arith.constant 1.000000e+00 : f32
    %461 = vector.broadcast %cst_144 : f32 to vector<8x128xf32>
    %462 = arith.addf %461, %460 : vector<8x128xf32>
    %463 = arith.divf %461, %462 : vector<8x128xf32>
    %464 = vector.extract_strided_slice %457 {offsets = [0, 128], sizes = [8, 128], strides = [1, 1]} : vector<8x512xf32> to vector<8x128xf32>
    %465 = arith.negf %464 : vector<8x128xf32>
    %466 = math.exp %465 : vector<8x128xf32>
    %cst_145 = arith.constant 1.000000e+00 : f32
    %467 = vector.broadcast %cst_145 : f32 to vector<8x128xf32>
    %468 = arith.addf %467, %466 : vector<8x128xf32>
    %469 = arith.divf %467, %468 : vector<8x128xf32>
    %470 = vector.extract_strided_slice %457 {offsets = [0, 256], sizes = [8, 128], strides = [1, 1]} : vector<8x512xf32> to vector<8x128xf32>
    %471 = math.tanh %470 : vector<8x128xf32>
    %472 = vector.extract_strided_slice %457 {offsets = [0, 384], sizes = [8, 128], strides = [1, 1]} : vector<8x512xf32> to vector<8x128xf32>
    %473 = arith.negf %472 : vector<8x128xf32>
    %474 = math.exp %473 : vector<8x128xf32>
    %cst_146 = arith.constant 1.000000e+00 : f32
    %475 = vector.broadcast %cst_146 : f32 to vector<8x128xf32>
    %476 = arith.addf %475, %474 : vector<8x128xf32>
    %477 = arith.divf %475, %476 : vector<8x128xf32>
    %478 = arith.mulf %469, %448 : vector<8x128xf32>
    %479 = arith.mulf %463, %471 : vector<8x128xf32>
    %480 = arith.addf %478, %479 : vector<8x128xf32>
    %481 = math.tanh %480 : vector<8x128xf32>
    %482 = arith.mulf %477, %481 : vector<8x128xf32>
    %c6_i32_147 = arith.constant 6 : i32
    %c8_i32_148 = arith.constant 8 : i32
    %483 = arith.muli %c6_i32_147, %c8_i32_148 : i32
    %484 = tpu.assume_multiple %483, 8 : i32
    %485 = arith.index_cast %484 : i32 to index
    %c0_149 = arith.constant 0 : index
    %486 = vector.load %arg11[%485, %c0_149] : memref<64x512xf32, #tpu.memory_space<vmem>>, vector<8x512xf32>
    %c0_150 = arith.constant 0 : index
    %c0_151 = arith.constant 0 : index
    %487 = vector.load %arg6[%c0_150, %c0_151] : memref<128x512xf32, #tpu.memory_space<vmem>>, vector<128x512xf32>
    %cst_152 = arith.constant dense<0.000000e+00> : vector<8x512xf32>
    %488 = tpu.matmul %482, %487, %cst_152 {dimension_numbers = #tpu.dot_dimension_numbers<[1], [0], [0], [1], [0, 0, 1, 1], [], []>} : vector<8x128xf32>, vector<128x512xf32>, vector<8x512xf32> -> vector<8x512xf32>
    %489 = arith.addf %486, %488 : vector<8x512xf32>
    %490 = vector.extract_strided_slice %489 {offsets = [0, 0], sizes = [8, 128], strides = [1, 1]} : vector<8x512xf32> to vector<8x128xf32>
    %491 = arith.negf %490 : vector<8x128xf32>
    %492 = math.exp %491 : vector<8x128xf32>
    %cst_153 = arith.constant 1.000000e+00 : f32
    %493 = vector.broadcast %cst_153 : f32 to vector<8x128xf32>
    %494 = arith.addf %493, %492 : vector<8x128xf32>
    %495 = arith.divf %493, %494 : vector<8x128xf32>
    %496 = vector.extract_strided_slice %489 {offsets = [0, 128], sizes = [8, 128], strides = [1, 1]} : vector<8x512xf32> to vector<8x128xf32>
    %497 = arith.negf %496 : vector<8x128xf32>
    %498 = math.exp %497 : vector<8x128xf32>
    %cst_154 = arith.constant 1.000000e+00 : f32
    %499 = vector.broadcast %cst_154 : f32 to vector<8x128xf32>
    %500 = arith.addf %499, %498 : vector<8x128xf32>
    %501 = arith.divf %499, %500 : vector<8x128xf32>
    %502 = vector.extract_strided_slice %489 {offsets = [0, 256], sizes = [8, 128], strides = [1, 1]} : vector<8x512xf32> to vector<8x128xf32>
    %503 = math.tanh %502 : vector<8x128xf32>
    %504 = vector.extract_strided_slice %489 {offsets = [0, 384], sizes = [8, 128], strides = [1, 1]} : vector<8x512xf32> to vector<8x128xf32>
    %505 = arith.negf %504 : vector<8x128xf32>
    %506 = math.exp %505 : vector<8x128xf32>
    %cst_155 = arith.constant 1.000000e+00 : f32
    %507 = vector.broadcast %cst_155 : f32 to vector<8x128xf32>
    %508 = arith.addf %507, %506 : vector<8x128xf32>
    %509 = arith.divf %507, %508 : vector<8x128xf32>
    %510 = arith.mulf %501, %480 : vector<8x128xf32>
    %511 = arith.mulf %495, %503 : vector<8x128xf32>
    %512 = arith.addf %510, %511 : vector<8x128xf32>
    %513 = math.tanh %512 : vector<8x128xf32>
    %514 = arith.mulf %509, %513 : vector<8x128xf32>
    %c7_i32_156 = arith.constant 7 : i32
    %c8_i32_157 = arith.constant 8 : i32
    %515 = arith.muli %c7_i32_156, %c8_i32_157 : i32
    %516 = tpu.assume_multiple %515, 8 : i32
    %517 = arith.index_cast %516 : i32 to index
    %c0_158 = arith.constant 0 : index
    %518 = vector.load %arg11[%517, %c0_158] : memref<64x512xf32, #tpu.memory_space<vmem>>, vector<8x512xf32>
    %c0_159 = arith.constant 0 : index
    %c0_160 = arith.constant 0 : index
    %519 = vector.load %arg6[%c0_159, %c0_160] : memref<128x512xf32, #tpu.memory_space<vmem>>, vector<128x512xf32>
    %cst_161 = arith.constant dense<0.000000e+00> : vector<8x512xf32>
    %520 = tpu.matmul %514, %519, %cst_161 {dimension_numbers = #tpu.dot_dimension_numbers<[1], [0], [0], [1], [0, 0, 1, 1], [], []>} : vector<8x128xf32>, vector<128x512xf32>, vector<8x512xf32> -> vector<8x512xf32>
    %521 = arith.addf %518, %520 : vector<8x512xf32>
    %522 = vector.extract_strided_slice %521 {offsets = [0, 0], sizes = [8, 128], strides = [1, 1]} : vector<8x512xf32> to vector<8x128xf32>
    %523 = arith.negf %522 : vector<8x128xf32>
    %524 = math.exp %523 : vector<8x128xf32>
    %cst_162 = arith.constant 1.000000e+00 : f32
    %525 = vector.broadcast %cst_162 : f32 to vector<8x128xf32>
    %526 = arith.addf %525, %524 : vector<8x128xf32>
    %527 = arith.divf %525, %526 : vector<8x128xf32>
    %528 = vector.extract_strided_slice %521 {offsets = [0, 128], sizes = [8, 128], strides = [1, 1]} : vector<8x512xf32> to vector<8x128xf32>
    %529 = arith.negf %528 : vector<8x128xf32>
    %530 = math.exp %529 : vector<8x128xf32>
    %cst_163 = arith.constant 1.000000e+00 : f32
    %531 = vector.broadcast %cst_163 : f32 to vector<8x128xf32>
    %532 = arith.addf %531, %530 : vector<8x128xf32>
    %533 = arith.divf %531, %532 : vector<8x128xf32>
    %534 = vector.extract_strided_slice %521 {offsets = [0, 256], sizes = [8, 128], strides = [1, 1]} : vector<8x512xf32> to vector<8x128xf32>
    %535 = math.tanh %534 : vector<8x128xf32>
    %536 = vector.extract_strided_slice %521 {offsets = [0, 384], sizes = [8, 128], strides = [1, 1]} : vector<8x512xf32> to vector<8x128xf32>
    %537 = arith.negf %536 : vector<8x128xf32>
    %538 = math.exp %537 : vector<8x128xf32>
    %cst_164 = arith.constant 1.000000e+00 : f32
    %539 = vector.broadcast %cst_164 : f32 to vector<8x128xf32>
    %540 = arith.addf %539, %538 : vector<8x128xf32>
    %541 = arith.divf %539, %540 : vector<8x128xf32>
    %542 = arith.mulf %533, %512 : vector<8x128xf32>
    %543 = arith.mulf %527, %535 : vector<8x128xf32>
    %544 = arith.addf %542, %543 : vector<8x128xf32>
    %545 = math.tanh %544 : vector<8x128xf32>
    %546 = arith.mulf %541, %545 : vector<8x128xf32>
    %c8_i32_165 = arith.constant 8 : i32
    %c0_166 = arith.constant 0 : index
    %c0_167 = arith.constant 0 : index
    %547 = vector.load %arg8[%c0_166, %c0_167] : memref<128x128xf32, #tpu.memory_space<vmem>>, vector<128x128xf32>
    %cst_168 = arith.constant dense<0.000000e+00> : vector<8x128xf32>
    %548 = tpu.matmul %546, %547, %cst_168 {dimension_numbers = #tpu.dot_dimension_numbers<[1], [0], [0], [1], [0, 0, 1, 1], [], []>} : vector<8x128xf32>, vector<128x128xf32>, vector<8x128xf32> -> vector<8x128xf32>
    %c0_169 = arith.constant 0 : index
    %c0_170 = arith.constant 0 : index
    %549 = vector.load %arg9[%c0_169, %c0_170] : memref<1x128xf32, #tpu.memory_space<vmem>>, vector<1x128xf32>
    %550 = vector.broadcast %549 : vector<1x128xf32> to vector<8x128xf32>
    %551 = arith.addf %548, %550 : vector<8x128xf32>
    %c0_171 = arith.constant 0 : index
    %c0_172 = arith.constant 0 : index
    %552 = vector.load %arg10[%c0_171, %c0_172] : memref<8x128xf32, #tpu.memory_space<vmem>>, vector<8x128xf32>
    tpu.vector_store %arg10[%c0_171, %c0_172], %551 {strides = array<i32>} : memref<8x128xf32, #tpu.memory_space<vmem>>, vector<8x128xf32>,
    return
  }
  func.func @transform_0(%arg0: i32) -> (i32, i32, i32) {
    %c0_i32 = arith.constant 0 : i32
    %c0_i32_0 = arith.constant 0 : i32
    %c0_i32_1 = arith.constant 0 : i32
    return %c0_i32, %arg0, %c0_i32_0 : i32, i32, i32
  }
  func.func @transform_1(%arg0: i32) -> (i32, i32) {
    %c0_i32 = arith.constant 0 : i32
    %c0_i32_0 = arith.constant 0 : i32
    %c0_i32_1 = arith.constant 0 : i32
    return %c0_i32, %c0_i32_0 : i32, i32
  }
  func.func @transform_2(%arg0: i32) -> (i32, i32) {
    %c0_i32 = arith.constant 0 : i32
    %c0_i32_0 = arith.constant 0 : i32
    %c0_i32_1 = arith.constant 0 : i32
    return %c0_i32, %c0_i32_0 : i32, i32
  }
  func.func @transform_3(%arg0: i32) -> (i32, i32) {
    %c0_i32 = arith.constant 0 : i32
    %c0_i32_0 = arith.constant 0 : i32
    %c0_i32_1 = arith.constant 0 : i32
    return %c0_i32, %c0_i32_0 : i32, i32
  }
  func.func @transform_4(%arg0: i32) -> (i32, i32) {
    %c0_i32 = arith.constant 0 : i32
    %c0_i32_0 = arith.constant 0 : i32
    %c0_i32_1 = arith.constant 0 : i32
    return %c0_i32, %c0_i32_0 : i32, i32
  }
  func.func @transform_5(%arg0: i32) -> (i32, i32) {
    %c0_i32 = arith.constant 0 : i32
    %c0_i32_0 = arith.constant 0 : i32
    %c0_i32_1 = arith.constant 0 : i32
    return %c0_i32, %c0_i32_0 : i32, i32
  }
  func.func @transform_6(%arg0: i32) -> (i32, i32) {
    %c0_i32 = arith.constant 0 : i32
    %c0_i32_0 = arith.constant 0 : i32
    %c0_i32_1 = arith.constant 0 : i32
    return %c0_i32, %c0_i32_0 : i32, i32
  }
  func.func @transform_7(%arg0: i32) -> (i32, i32) {
    %c0_i32 = arith.constant 0 : i32
    %c0_i32_0 = arith.constant 0 : i32
    %c0_i32_1 = arith.constant 0 : i32
    return %c0_i32, %c0_i32_0 : i32, i32
  }
  func.func @transform_8(%arg0: i32) -> (i32, i32) {
    %c0_i32 = arith.constant 0 : i32
    %c0_i32_0 = arith.constant 0 : i32
    %c0_i32_1 = arith.constant 0 : i32
    return %c0_i32, %c0_i32_0 : i32, i32
  }
  func.func @transform_9(%arg0: i32) -> (i32, i32) {
    %c0_i32 = arith.constant 0 : i32
    %c0_i32_0 = arith.constant 0 : i32
    return %arg0, %c0_i32 : i32, i32
  }
}

</mosaic_0001>

<llo_original>
// kernel: lstm_anomaly_forward.1
$region0: #{lstm_anomaly_forward.1}
  #allocation0 [shape = 'u32[]', space=smem, size = 0x4, offset = 0x4, fixed_abs, tag = 'smem constant byte address 0x4 - core index']
  #allocation1 [shape = 'u32[144,128]{1,0:T(1,128)}', space=vmem, size = 0x12000, scoped, tag = 'internal scratch']
  #allocation2 [shape = 'f32[64,512]{1,0:T(8,128)}', space=vmem, size = 0x20000, scoped, tag = 'scratch operand']
  #allocation3 [shape = 'f32[64,128]{1,0:T(8,128)}', space=vmem, size = 0x8000, scoped, tag = 'scratch operand']
  %s0 = inlined_call_operand.vmem [shape: f32[8,8,16], index: 0, kind: input, shape index: {}]
  %s1 = inlined_call_operand.vmem [shape: f32[16,512], index: 1, kind: input, shape index: {}]
  %s2 = inlined_call_operand.vmem [shape: f32[128,512], index: 2, kind: input, shape index: {}]
  %s3 = inlined_call_operand.vmem [shape: f32[1,512], index: 3, kind: input, shape index: {}]
  %s4 = inlined_call_operand.vmem [shape: f32[128,512], index: 4, kind: input, shape index: {}]
  %s5 = inlined_call_operand.vmem [shape: f32[128,512], index: 5, kind: input, shape index: {}]
  %s6 = inlined_call_operand.vmem [shape: f32[1,512], index: 6, kind: input, shape index: {}]
  %s7 = inlined_call_operand.vmem [shape: f32[128,128], index: 7, kind: input, shape index: {}]
  %s8 = inlined_call_operand.vmem [shape: f32[1,128], index: 8, kind: input, shape index: {}]
  %s9 = inlined_call_operand.vmem [shape: f32[8,128], index: 9, kind: output, shape index: {}]
  %s10 = sld [smem:[#allocation0]]
  $region46: #{lstm_anomaly_forward.1} parent=0
    _
  %s12 = ssub.s32 1, %s10
  %s13 = scalar_select 0, %s12, %s10
  // Predicated region
  $region2: #{lstm_anomaly_forward.1} parent=0 // pred_check
    _
  $region3: #{lstm_anomaly_forward.1} parent=0 // pred_check_branch
    %15 = sbr.rel (0) target = $region5
  $region4: #{lstm_anomaly_forward.1} parent=0 // pred_region
    _
  $region5: #{lstm_anomaly_forward.1} parent=0 // pred_fallthru
    _
  // Predicated region
  $region6: #{lstm_anomaly_forward.1} parent=0 // pred_check
    _
  $region7: #{lstm_anomaly_forward.1} parent=0 // pred_check_branch
    %17 = sbr.rel (0) target = $region9
  $region8: #{lstm_anomaly_forward.1} parent=0 // pred_region
    _
  $region9: #{lstm_anomaly_forward.1} parent=0 // pred_fallthru
    _
  // Predicated region
  $region10: #{lstm_anomaly_forward.1} parent=0 // pred_check
    _
  $region11: #{lstm_anomaly_forward.1} parent=0 // pred_check_branch
    %19 = sbr.rel (0) target = $region13
  $region12: #{lstm_anomaly_forward.1} parent=0 // pred_region
    _
  $region13: #{lstm_anomaly_forward.1} parent=0 // pred_fallthru
    _
  // Predicated region
  $region14: #{lstm_anomaly_forward.1} parent=0 // pred_check
    _
  $region15: #{lstm_anomaly_forward.1} parent=0 // pred_check_branch
    %21 = sbr.rel (0) target = $region17
  $region16: #{lstm_anomaly_forward.1} parent=0 // pred_region
    _
  $region17: #{lstm_anomaly_forward.1} parent=0 // pred_fallthru
    _
  // Predicated region
  $region18: #{lstm_anomaly_forward.1} parent=0 // pred_check
    _
  $region19: #{lstm_anomaly_forward.1} parent=0 // pred_check_branch
    %23 = sbr.rel (0) target = $region21
  $region20: #{lstm_anomaly_forward.1} parent=0 // pred_region
    _
  $region21: #{lstm_anomaly_forward.1} parent=0 // pred_fallthru
    _
  // Predicated region
  $region22: #{lstm_anomaly_forward.1} parent=0 // pred_check
    _
  $region23: #{lstm_anomaly_forward.1} parent=0 // pred_check_branch
    %25 = sbr.rel (0) target = $region25
  $region24: #{lstm_anomaly_forward.1} parent=0 // pred_region
    _
  $region25: #{lstm_anomaly_forward.1} parent=0 // pred_fallthru
    _
  // Predicated region
  $region26: #{lstm_anomaly_forward.1} parent=0 // pred_check
    _
  $region27: #{lstm_anomaly_forward.1} parent=0 // pred_check_branch
    %27 = sbr.rel (0) target = $region29
  $region28: #{lstm_anomaly_forward.1} parent=0 // pred_region
    _
  $region29: #{lstm_anomaly_forward.1} parent=0 // pred_fallthru
    _
  // Predicated region
  $region30: #{lstm_anomaly_forward.1} parent=0 // pred_check
    _
  $region31: #{lstm_anomaly_forward.1} parent=0 // pred_check_branch
    %29 = sbr.rel (0) target = $region33
  $region32: #{lstm_anomaly_forward.1} parent=0 // pred_region
    _
  $region33: #{lstm_anomaly_forward.1} parent=0 // pred_fallthru
    _
  // Predicated region
  $region34: #{lstm_anomaly_forward.1} parent=0 // pred_check
    _
  $region35: #{lstm_anomaly_forward.1} parent=0 // pred_check_branch
    %31 = sbr.rel (0) target = $region37
  $region36: #{lstm_anomaly_forward.1} parent=0 // pred_region
    _
  $region37: #{lstm_anomaly_forward.1} parent=0 // pred_fallthru
    _
  %v32 = vld [vmem:[%s0] sm:$0xff]
  %v33 = vld [vmem:[%s0 + $0x8] sm:$0xff]
  %v34 = vld [vmem:[%s0 + $0x10] sm:$0xff]
  %v35 = vld [vmem:[%s0 + $0x18] sm:$0xff]
  %v36 = vld [vmem:[%s0 + $0x20] sm:$0xff]
  %v37 = vld [vmem:[%s0 + $0x28] sm:$0xff]
  %v38 = vld [vmem:[%s0 + $0x30] sm:$0xff]
  %v39 = vld [vmem:[%s0 + $0x38] sm:$0xff]
  %v40 = vld [vmem:[%s1] sm:$0xff]
  %v41 = vld [vmem:[%s1 + $0x8] sm:$0xff]
  %v42 = vld [vmem:[%s1 + $0x10] sm:$0xff]
  %v43 = vld [vmem:[%s1 + $0x18] sm:$0xff]
  %v44 = vld [vmem:[%s1 + $0x20] sm:$0xff]
  %v45 = vld [vmem:[%s1 + $0x28] sm:$0xff]
  %v46 = vld [vmem:[%s1 + $0x30] sm:$0xff]
  %v47 = vld [vmem:[%s1 + $0x38] sm:$0xff]
  %v48 = vld [vmem:[%s3] sm:$0xf]
  %v50 = vlaneseq
  %v51 = vshrl.u32 %v50, 7
  %v52 = vsub.s32 0, %v51
  %v53 = vrot.slane %v48, %v52
  %v54 = vlaneseq
  %v55 = vshrl.u32 %v54, 7
  %v56 = vsub.s32 1, %v55
  %v57 = vrot.slane %v48, %v56
  %v58 = vlaneseq
  %v59 = vshrl.u32 %v58, 7
  %v60 = vsub.s32 2, %v59
  %v61 = vrot.slane %v48, %v60
  %v62 = vlaneseq
  %v63 = vshrl.u32 %v62, 7
  %v64 = vsub.s32 3, %v63
  %v65 = vrot.slane %v48, %v64
  %vm70 = vcmask 130048
  %v72 = vsel %vm70, %v32, 0
  %v75 = vsel %vm70, %v33, 0
  %v78 = vsel %vm70, %v34, 0
  %v81 = vsel %vm70, %v35, 0
  %v84 = vsel %vm70, %v36, 0
  %v87 = vsel %vm70, %v37, 0
  %v90 = vsel %vm70, %v38, 0
  %v93 = vsel %vm70, %v39, 0
  %95 = vmatprep.subr.mxu0 %v41
  %96 = vmatpush1.msra.mxu0 %v40
  %97 = vmatprep.subr.mxu0 %v45
  %98 = vmatpush1.msra.mxu0 %v44
  %99 = vmatprep.subr.mxu0 0.0
  %100 = vmatpush1.msra.mxu0 0.0
  %101 = vmatprep.subr.mxu0 0.0
  %102 = vmatpush1.msra.mxu0 0.0
  %103 = vmatprep.subr.mxu0 0.0
  %104 = vmatpush1.msra.mxu0 0.0
  %105 = vmatprep.subr.mxu0 0.0
  %106 = vmatpush1.msra.mxu0 0.0
  %107 = vmatprep.subr.mxu0 0.0
  %108 = vmatpush1.msra.mxu0 0.0
  %109 = vmatprep.subr.mxu0 0.0
  %110 = vmatpush1.msra.mxu0 0.0
  %111 = vmatprep.subr.mxu0 0.0
  %112 = vmatpush1.msra.mxu0 0.0
  %113 = vmatprep.subr.mxu0 0.0
  %114 = vmatpush1.msra.mxu0 0.0
  %115 = vmatprep.subr.mxu0 0.0
  %116 = vmatpush1.msra.mxu0 0.0
  %117 = vmatprep.subr.mxu0 0.0
  %118 = vmatpush1.msra.mxu0 0.0
  %119 = vmatprep.subr.mxu0 0.0
  %120 = vmatpush1.msra.mxu0 0.0
  %121 = vmatprep.subr.mxu0 0.0
  %122 = vmatpush1.msra.mxu0 0.0
  %123 = vmatprep.subr.mxu0 0.0
  %124 = vmatpush1.msra.mxu0 0.0
  %125 = vmatprep.subr.mxu0 0.0
  %126 = vmatpush1.msra.mxu0 0.0
  %127 = vmatprep.subr.mxu0 0.0
  %128 = vmatpush1.msra.mxu0 0.0
  %129 = vmatprep.subr.mxu0 0.0
  %130 = vmatpush1.msra.mxu0 0.0
  %131 = vmatprep.subr.mxu0 0.0
  %132 = vmatpush1.msra.mxu0 0.0
  %133 = vmatprep.subr.mxu0 0.0
  %134 = vmatpush1.msra.mxu0 0.0
  %135 = vmatprep.subr.mxu0 0.0
  %136 = vmatpush1.msra.mxu0 0.0
  %137 = vmatprep.subr.mxu0 0.0
  %138 = vmatpush1.msra.mxu0 0.0
  %139 = vmatprep.subr.mxu0 0.0
  %140 = vmatpush1.msra.mxu0 0.0
  %141 = vmatprep.subr.mxu0 0.0
  %142 = vmatpush1.msra.mxu0 0.0
  %143 = vmatprep.subr.mxu0 0.0
  %144 = vmatpush1.msra.mxu0 0.0
  %145 = vmatprep.subr.mxu0 0.0
  %146 = vmatpush1.msra.mxu0 0.0
  %147 = vmatprep.subr.mxu0 0.0
  %148 = vmatpush1.msra.mxu0 0.0
  %149 = vmatprep.subr.mxu0 0.0
  %150 = vmatpush1.msra.mxu0 0.0
  %151 = vmatprep.subr.mxu0 0.0
  %152 = vmatpush1.msra.mxu0 0.0
  %153 = vmatprep.subr.mxu0 0.0
  %154 = vmatpush1.msra.mxu0 0.0
  %155 = vmatprep.subr.mxu0 0.0
  %156 = vmatpush1.msra.mxu0 0.0
  %157 = vmatprep.subr.mxu0 0.0
  %158 = vmatpush1.msra.mxu0 0.0
  %159 = vmatprep.mubr.f32.mxu0 0.0
  %160 = vmatmul.mubr.f32.gmra.mrb[0].mxu0 %v72
  %v161 = vpop.f32.mrb[0].mxu0
  %v162 = vadd.f32 %v53, %v161
  %v163 = vpop.f32.mrb[0].mxu0
  %v164 = vadd.f32 %v57, %v163
  %165 = vmatprep.mubr.f32.mxu0 0.0
  %166 = vmatmul.mubr.f32.gmra.mrb[0].mxu0 %v75
  %v167 = vpop.f32.mrb[0].mxu0
  %v168 = vadd.f32 %v53, %v167
  %v169 = vpop.f32.mrb[0].mxu0
  %v170 = vadd.f32 %v57, %v169
  %171 = vmatprep.mubr.f32.mxu0 0.0
  %172 = vmatmul.mubr.f32.gmra.mrb[0].mxu0 %v78
  %v173 = vpop.f32.mrb[0].mxu0
  %v174 = vadd.f32 %v53, %v173
  %v175 = vpop.f32.mrb[0].mxu0
  %v176 = vadd.f32 %v57, %v175
  %177 = vmatprep.mubr.f32.mxu0 0.0
  %178 = vmatmul.mubr.f32.gmra.mrb[0].mxu0 %v81
  %v179 = vpop.f32.mrb[0].mxu0
  %v180 = vadd.f32 %v53, %v179
  %v181 = vpop.f32.mrb[0].mxu0
  %v182 = vadd.f32 %v57, %v181
  %183 = vmatprep.mubr.f32.mxu0 0.0
  %184 = vmatmul.mubr.f32.gmra.mrb[0].mxu0 %v84
  %v185 = vpop.f32.mrb[0].mxu0
  %v186 = vadd.f32 %v53, %v185
  %v187 = vpop.f32.mrb[0].mxu0
  %v188 = vadd.f32 %v57, %v187
  %189 = vmatprep.mubr.f32.mxu0 0.0
  %190 = vmatmul.mubr.f32.gmra.mrb[0].mxu0 %v87
  %v191 = vpop.f32.mrb[0].mxu0
  %v192 = vadd.f32 %v53, %v191
  %v193 = vpop.f32.mrb[0].mxu0
  %v194 = vadd.f32 %v57, %v193
  %195 = vmatprep.mubr.f32.mxu0 0.0
  %196 = vmatmul.mubr.f32.gmra.mrb[0].mxu0 %v90
  %v197 = vpop.f32.mrb[0].mxu0
  %v198 = vadd.f32 %v53, %v197
  %v199 = vpop.f32.mrb[0].mxu0
  %v200 = vadd.f32 %v57, %v199
  %201 = vmatprep.mubr.f32.mxu0 0.0
  %202 = vmatmul.mubr.f32.gmra.mrb[0].mxu0 %v93
  %v203 = vpop.f32.mrb[0].mxu0
  %v204 = vadd.f32 %v53, %v203
  %v205 = vpop.f32.mrb[0].mxu0
  %v206 = vadd.f32 %v57, %v205
  %207 = vdwg.mxu0
  %208 = vmatprep.subr.mxu0 %v43
  %209 = vmatpush1.msra.mxu0 %v42
  %210 = vmatprep.subr.mxu0 %v47
  %211 = vmatpush1.msra.mxu0 %v46
  %212 = vmatprep.subr.mxu0 0.0
  %213 = vmatpush1.msra.mxu0 0.0
  %214 = vmatprep.subr.mxu0 0.0
  %215 = vmatpush1.msra.mxu0 0.0
  %216 = vmatprep.subr.mxu0 0.0
  %217 = vmatpush1.msra.mxu0 0.0
  %218 = vmatprep.subr.mxu0 0.0
  %219 = vmatpush1.msra.mxu0 0.0
  %220 = vmatprep.subr.mxu0 0.0
  %221 = vmatpush1.msra.mxu0 0.0
  %222 = vmatprep.subr.mxu0 0.0
  %223 = vmatpush1.msra.mxu0 0.0
  %224 = vmatprep.subr.mxu0 0.0
  %225 = vmatpush1.msra.mxu0 0.0
  %226 = vmatprep.subr.mxu0 0.0
  %227 = vmatpush1.msra.mxu0 0.0
  %228 = vmatprep.subr.mxu0 0.0
  %229 = vmatpush1.msra.mxu0 0.0
  %230 = vmatprep.subr.mxu0 0.0
  %231 = vmatpush1.msra.mxu0 0.0
  %232 = vmatprep.subr.mxu0 0.0
  %233 = vmatpush1.msra.mxu0 0.0
  %234 = vmatprep.subr.mxu0 0.0
  %235 = vmatpush1.msra.mxu0 0.0
  %236 = vmatprep.subr.mxu0 0.0
  %237 = vmatpush1.msra.mxu0 0.0
  %238 = vmatprep.subr.mxu0 0.0
  %239 = vmatpush1.msra.mxu0 0.0
  %240 = vmatprep.subr.mxu0 0.0
  %241 = vmatpush1.msra.mxu0 0.0
  %242 = vmatprep.subr.mxu0 0.0
  %243 = vmatpush1.msra.mxu0 0.0
  %244 = vmatprep.subr.mxu0 0.0
  %245 = vmatpush1.msra.mxu0 0.0
  %246 = vmatprep.subr.mxu0 0.0
  %247 = vmatpush1.msra.mxu0 0.0
  %248 = vmatprep.subr.mxu0 0.0
  %249 = vmatpush1.msra.mxu0 0.0
  %250 = vmatprep.subr.mxu0 0.0
  %251 = vmatpush1.msra.mxu0 0.0
  %252 = vmatprep.subr.mxu0 0.0
  %253 = vmatpush1.msra.mxu0 0.0
  %254 = vmatprep.subr.mxu0 0.0
  %255 = vmatpush1.msra.mxu0 0.0
  %256 = vmatprep.subr.mxu0 0.0
  %257 = vmatpush1.msra.mxu0 0.0
  %258 = vmatprep.subr.mxu0 0.0
  %259 = vmatpush1.msra.mxu0 0.0
  %260 = vmatprep.subr.mxu0 0.0
  %261 = vmatpush1.msra.mxu0 0.0
  %262 = vmatprep.subr.mxu0 0.0
  %263 = vmatpush1.msra.mxu0 0.0
  %264 = vmatprep.subr.mxu0 0.0
  %265 = vmatpush1.msra.mxu0 0.0
  %266 = vmatprep.subr.mxu0 0.0
  %267 = vmatpush1.msra.mxu0 0.0
  %268 = vmatprep.subr.mxu0 0.0
  %269 = vmatpush1.msra.mxu0 0.0
  %270 = vmatprep.subr.mxu0 0.0
  %271 = vmatpush1.msra.mxu0 0.0
  %272 = vmatprep.mubr.f32.mxu0 0.0
  %273 = vmatmul.mubr.f32.gmra.mrb[0].mxu0 %v72
  %v274 = vpop.f32.mrb[0].mxu0
  %v275 = vadd.f32 %v61, %v274
  %v276 = vpop.f32.mrb[0].mxu0
  %v277 = vadd.f32 %v65, %v276
  %278 = vmatprep.mubr.f32.mxu0 0.0
  %279 = vmatmul.mubr.f32.gmra.mrb[0].mxu0 %v75
  %v280 = vpop.f32.mrb[0].mxu0
  %v281 = vadd.f32 %v61, %v280
  %v282 = vpop.f32.mrb[0].mxu0
  %v283 = vadd.f32 %v65, %v282
  %284 = vmatprep.mubr.f32.mxu0 0.0
  %285 = vmatmul.mubr.f32.gmra.mrb[0].mxu0 %v78
  %v286 = vpop.f32.mrb[0].mxu0
  %v287 = vadd.f32 %v61, %v286
  %v288 = vpop.f32.mrb[0].mxu0
  %v289 = vadd.f32 %v65, %v288
  %290 = vmatprep.mubr.f32.mxu0 0.0
  %291 = vmatmul.mubr.f32.gmra.mrb[0].mxu0 %v81
  %v292 = vpop.f32.mrb[0].mxu0
  %v293 = vadd.f32 %v61, %v292
  %v294 = vpop.f32.mrb[0].mxu0
  %v295 = vadd.f32 %v65, %v294
  %296 = vmatprep.mubr.f32.mxu0 0.0
  %297 = vmatmul.mubr.f32.gmra.mrb[0].mxu0 %v84
  %v298 = vpop.f32.mrb[0].mxu0
  %v299 = vadd.f32 %v61, %v298
  %v300 = vpop.f32.mrb[0].mxu0
  %v301 = vadd.f32 %v65, %v300
  %302 = vmatprep.mubr.f32.mxu0 0.0
  %303 = vmatmul.mubr.f32.gmra.mrb[0].mxu0 %v87
  %v304 = vpop.f32.mrb[0].mxu0
  %v305 = vadd.f32 %v61, %v304
  %v306 = vpop.f32.mrb[0].mxu0
  %v307 = vadd.f32 %v65, %v306
  %308 = vmatprep.mubr.f32.mxu0 0.0
  %309 = vmatmul.mubr.f32.gmra.mrb[0].mxu0 %v90
  %v310 = vpop.f32.mrb[0].mxu0
  %v311 = vadd.f32 %v61, %v310
  %v312 = vpop.f32.mrb[0].mxu0
  %v313 = vadd.f32 %v65, %v312
  %314 = vmatprep.mubr.f32.mxu0 0.0
  %315 = vmatmul.mubr.f32.gmra.mrb[0].mxu0 %v93
  %v316 = vpop.f32.mrb[0].mxu0
  %v317 = vadd.f32 %v61, %v316
  %v318 = vpop.f32.mrb[0].mxu0
  %v319 = vadd.f32 %v65, %v318
  %320 = vdwg.mxu0
  %321 = vst [vmem:[#allocation2] sm:$0xff] %v162
  %322 = vst [vmem:[#allocation2 + $0x8] sm:$0xff] %v164
  %323 = vst [vmem:[#allocation2 + $0x10] sm:$0xff] %v275
  %324 = vst [vmem:[#allocation2 + $0x18] sm:$0xff] %v277
  %325 = vst [vmem:[#allocation2 + $0x20] sm:$0xff] %v168
  %326 = vst [vmem:[#allocation2 + $0x28] sm:$0xff] %v170
  %327 = vst [vmem:[#allocation2 + $0x30] sm:$0xff] %v281
  %328 = vst [vmem:[#allocation2 + $0x38] sm:$0xff] %v283
  %329 = vst [vmem:[#allocation2 + $0x40] sm:$0xff] %v174
  %330 = vst [vmem:[#allocation2 + $0x48] sm:$0xff] %v176
  %331 = vst [vmem:[#allocation2 + $0x50] sm:$0xff] %v287
  %332 = vst [vmem:[#allocation2 + $0x58] sm:$0xff] %v289
  %333 = vst [vmem:[#allocation2 + $0x60] sm:$0xff] %v180
  %334 = vst [vmem:[#allocation2 + $0x68] sm:$0xff] %v182
  %335 = vst [vmem:[#allocation2 + $0x70] sm:$0xff] %v293
  %336 = vst [vmem:[#allocation2 + $0x78] sm:$0xff] %v295
  %337 = vst [vmem:[#allocation2 + $0x80] sm:$0xff] %v186
  %338 = vst [vmem:[#allocation2 + $0x88] sm:$0xff] %v188
  %339 = vst [vmem:[#allocation2 + $0x90] sm:$0xff] %v299
  %340 = vst [vmem:[#allocation2 + $0x98] sm:$0xff] %v301
  %341 = vst [vmem:[#allocation2 + $0xa0] sm:$0xff] %v192
  %342 = vst [vmem:[#allocation2 + $0xa8] sm:$0xff] %v194
  %343 = vst [vmem:[#allocation2 + $0xb0] sm:$0xff] %v305
  %344 = vst [vmem:[#allocation2 + $0xb8] sm:$0xff] %v307
  %345 = vst [vmem:[#allocation2 + $0xc0] sm:$0xff] %v198
  %346 = vst [vmem:[#allocation2 + $0xc8] sm:$0xff] %v200
  %347 = vst [vmem:[#allocation2 + $0xd0] sm:$0xff] %v311
  %348 = vst [vmem:[#allocation2 + $0xd8] sm:$0xff] %v313
  %349 = vst [vmem:[#allocation2 + $0xe0] sm:$0xff] %v204
  %350 = vst [vmem:[#allocation2 + $0xe8] sm:$0xff] %v206
  %351 = vst [vmem:[#allocation2 + $0xf0] sm:$0xff] %v317
  %352 = vst [vmem:[#allocation2 + $0xf8] sm:$0xff] %v319
  %s353 = smul.u32 0, 4
  %s354 = smul.addr %s353, 8
  %s355 = scalar_lea.vmem [#allocation2], %s354
  %v356 = vld [vmem:[%s355] sm:$0xff]
  %v357 = vld [vmem:[%s355 + $0x8] sm:$0xff]
  %v358 = vld [vmem:[%s355 + $0x10] sm:$0xff]
  %v359 = vld [vmem:[%s355 + $0x18] sm:$0xff]
  %v360 = vld [vmem:[%s2] sm:$0xff]
  %v361 = vld [vmem:[%s2 + $0x8] sm:$0xff]
  %v362 = vld [vmem:[%s2 + $0x10] sm:$0xff]
  %v363 = vld [vmem:[%s2 + $0x18] sm:$0xff]
  %v364 = vld [vmem:[%s2 + $0x20] sm:$0xff]
  %v365 = vld [vmem:[%s2 + $0x28] sm:$0xff]
  %v366 = vld [vmem:[%s2 + $0x30] sm:$0xff]
  %v367 = vld [vmem:[%s2 + $0x38] sm:$0xff]
  %v368 = vld [vmem:[%s2 + $0x40] sm:$0xff]
  %v369 = vld [vmem:[%s2 + $0x48] sm:$0xff]
  %v370 = vld [vmem:[%s2 + $0x50] sm:$0xff]
  %v371 = vld [vmem:[%s2 + $0x58] sm:$0xff]
  %v372 = vld [vmem:[%s2 + $0x60] sm:$0xff]
  %v373 = vld [vmem:[%s2 + $0x68] sm:$0xff]
  %v374 = vld [vmem:[%s2 + $0x70] sm:$0xff]
  %v375 = vld [vmem:[%s2 + $0x78] sm:$0xff]
  %v376 = vld [vmem:[%s2 + $0x80] sm:$0xff]
  %v377 = vld [vmem:[%s2 + $0x88] sm:$0xff]
  %v378 = vld [vmem:[%s2 + $0x90] sm:$0xff]
  %v379 = vld [vmem:[%s2 + $0x98] sm:$0xff]
  %v380 = vld [vmem:[%s2 + $0xa0] sm:$0xff]
  %v381 = vld [vmem:[%s2 + $0xa8] sm:$0xff]
  %v382 = vld [vmem:[%s2 + $0xb0] sm:$0xff]
  %v383 = vld [vmem:[%s2 + $0xb8] sm:$0xff]
  %v384 = vld [vmem:[%s2 + $0xc0] sm:$0xff]
  %v385 = vld [vmem:[%s2 + $0xc8] sm:$0xff]
  %v386 = vld [vmem:[%s2 + $0xd0] sm:$0xff]
  %v387 = vld [vmem:[%s2 + $0xd8] sm:$0xff]
  %v388 = vld [vmem:[%s2 + $0xe0] sm:$0xff]
  %v389 = vld [vmem:[%s2 + $0xe8] sm:$0xff]
  %v390 = vld [vmem:[%s2 + $0xf0] sm:$0xff]
  %v391 = vld [vmem:[%s2 + $0xf8] sm:$0xff]
  %v392 = vld [vmem:[%s2 + $0x100] sm:$0xff]
  %v393 = vld [vmem:[%s2 + $0x108] sm:$0xff]
  %v394 = vld [vmem:[%s2 + $0x110] sm:$0xff]
  %v395 = vld [vmem:[%s2 + $0x118] sm:$0xff]
  %v396 = vld [vmem:[%s2 + $0x120] sm:$0xff]
  %v397 = vld [vmem:[%s2 + $0x128] sm:$0xff]
  %v398 = vld [vmem:[%s2 + $0x130] sm:$0xff]
  %v399 = vld [vmem:[%s2 + $0x138] sm:$0xff]
  %v400 = vld [vmem:[%s2 + $0x140] sm:$0xff]
  %v401 = vld [vmem:[%s2 + $0x148] sm:$0xff]
  %v402 = vld [vmem:[%s2 + $0x150] sm:$0xff]
  %v403 = vld [vmem:[%s2 + $0x158] sm:$0xff]
  %v404 = vld [vmem:[%s2 + $0x160] sm:$0xff]
  %v405 = vld [vmem:[%s2 + $0x168] sm:$0xff]
  %v406 = vld [vmem:[%s2 + $0x170] sm:$0xff]
  %v407 = vld [vmem:[%s2 + $0x178] sm:$0xff]
  %v408 = vld [vmem:[%s2 + $0x180] sm:$0xff]
  %v409 = vld [vmem:[%s2 + $0x188] sm:$0xff]
  %v410 = vld [vmem:[%s2 + $0x190] sm:$0xff]
  %v411 = vld [vmem:[%s2 + $0x198] sm:$0xff]
  %v412 = vld [vmem:[%s2 + $0x1a0] sm:$0xff]
  %v413 = vld [vmem:[%s2 + $0x1a8] sm:$0xff]
  %v414 = vld [vmem:[%s2 + $0x1b0] sm:$0xff]
  %v415 = vld [vmem:[%s2 + $0x1b8] sm:$0xff]
  %v416 = vld [vmem:[%s2 + $0x1c0] sm:$0xff]
  %v417 = vld [vmem:[%s2 + $0x1c8] sm:$0xff]
  %v418 = vld [vmem:[%s2 + $0x1d0] sm:$0xff]
  %v419 = vld [vmem:[%s2 + $0x1d8] sm:$0xff]
  %v420 = vld [vmem:[%s2 + $0x1e0] sm:$0xff]
  %v421 = vld [vmem:[%s2 + $0x1e8] sm:$0xff]
  %v422 = vld [vmem:[%s2 + $0x1f0] sm:$0xff]
  %v423 = vld [vmem:[%s2 + $0x1f8] sm:$0xff]
  %424 = vmatprep.subr.mxu0 %v361
  %425 = vmatpush1.msra.mxu0 %v360
  %426 = vmatprep.subr.mxu0 %v365
  %427 = vmatpush1.msra.mxu0 %v364
  %428 = vmatprep.subr.mxu0 %v369
  %429 = vmatpush1.msra.mxu0 %v368
  %430 = vmatprep.subr.mxu0 %v373
  %431 = vmatpush1.msra.mxu0 %v372
  %432 = vmatprep.subr.mxu0 %v377
  %433 = vmatpush1.msra.mxu0 %v376
  %434 = vmatprep.subr.mxu0 %v381
  %435 = vmatpush1.msra.mxu0 %v380
  %436 = vmatprep.subr.mxu0 %v385
  %437 = vmatpush1.msra.mxu0 %v384
  %438 = vmatprep.subr.mxu0 %v389
  %439 = vmatpush1.msra.mxu0 %v388
  %440 = vmatprep.subr.mxu0 %v393
  %441 = vmatpush1.msra.mxu0 %v392
  %442 = vmatprep.subr.mxu0 %v397
  %443 = vmatpush1.msra.mxu0 %v396
  %444 = vmatprep.subr.mxu0 %v401
  %445 = vmatpush1.msra.mxu0 %v400
  %446 = vmatprep.subr.mxu0 %v405
  %447 = vmatpush1.msra.mxu0 %v404
  %448 = vmatprep.subr.mxu0 %v409
  %449 = vmatpush1.msra.mxu0 %v408
  %450 = vmatprep.subr.mxu0 %v413
  %451 = vmatpush1.msra.mxu0 %v412
  %452 = vmatprep.subr.mxu0 %v417
  %453 = vmatpush1.msra.mxu0 %v416
  %454 = vmatprep.subr.mxu0 %v421
  %455 = vmatpush1.msra.mxu0 %v420
  %456 = vmatprep.subr.mxu0 0.0
  %457 = vmatpush1.msra.mxu0 0.0
  %458 = vmatprep.subr.mxu0 0.0
  %459 = vmatpush1.msra.mxu0 0.0
  %460 = vmatprep.subr.mxu0 0.0
  %461 = vmatpush1.msra.mxu0 0.0
  %462 = vmatprep.subr.mxu0 0.0
  %463 = vmatpush1.msra.mxu0 0.0
  %464 = vmatprep.subr.mxu0 0.0
  %465 = vmatpush1.msra.mxu0 0.0
  %466 = vmatprep.subr.mxu0 0.0
  %467 = vmatpush1.msra.mxu0 0.0
  %468 = vmatprep.subr.mxu0 0.0
  %469 = vmatpush1.msra.mxu0 0.0
  %470 = vmatprep.subr.mxu0 0.0
  %471 = vmatpush1.msra.mxu0 0.0
  %472 = vmatprep.subr.mxu0 0.0
  %473 = vmatpush1.msra.mxu0 0.0
  %474 = vmatprep.subr.mxu0 0.0
  %475 = vmatpush1.msra.mxu0 0.0
  %476 = vmatprep.subr.mxu0 0.0
  %477 = vmatpush1.msra.mxu0 0.0
  %478 = vmatprep.subr.mxu0 0.0
  %479 = vmatpush1.msra.mxu0 0.0
  %480 = vmatprep.subr.mxu0 0.0
  %481 = vmatpush1.msra.mxu0 0.0
  %482 = vmatprep.subr.mxu0 0.0
  %483 = vmatpush1.msra.mxu0 0.0
  %484 = vmatprep.subr.mxu0 0.0
  %485 = vmatpush1.msra.mxu0 0.0
  %486 = vmatprep.subr.mxu0 0.0
  %487 = vmatpush1.msra.mxu0 0.0
  %488 = vmatprep.mubr.f32.mxu0 0.0
  %489 = vmatmul.mubr.f32.gmra.mrb[0].mxu0 0.0
  %v490 = vpop.f32.mrb[0].mxu0
  %v491 = vadd.f32 0.0, %v490
  %v492 = vpop.f32.mrb[0].mxu0
  %v493 = vadd.f32 0.0, %v492
  %494 = vdwg.mxu0
  %495 = vmatprep.subr.mxu0 %v363
  %496 = vmatpush1.msra.mxu0 %v362
  %497 = vmatprep.subr.mxu0 %v367
  %498 = vmatpush1.msra.mxu0 %v366
  %499 = vmatprep.subr.mxu0 %v371
  %500 = vmatpush1.msra.mxu0 %v370
  %501 = vmatprep.subr.mxu0 %v375
  %502 = vmatpush1.msra.mxu0 %v374
  %503 = vmatprep.subr.mxu0 %v379
  %504 = vmatpush1.msra.mxu0 %v378
  %505 = vmatprep.subr.mxu0 %v383
  %506 = vmatpush1.msra.mxu0 %v382
  %507 = vmatprep.subr.mxu0 %v387
  %508 = vmatpush1.msra.mxu0 %v386
  %509 = vmatprep.subr.mxu0 %v391
  %510 = vmatpush1.msra.mxu0 %v390
  %511 = vmatprep.subr.mxu0 %v395
  %512 = vmatpush1.msra.mxu0 %v394
  %513 = vmatprep.subr.mxu0 %v399
  %514 = vmatpush1.msra.mxu0 %v398
  %515 = vmatprep.subr.mxu0 %v403
  %516 = vmatpush1.msra.mxu0 %v402
  %517 = vmatprep.subr.mxu0 %v407
  %518 = vmatpush1.msra.mxu0 %v406
  %519 = vmatprep.subr.mxu0 %v411
  %520 = vmatpush1.msra.mxu0 %v410
  %521 = vmatprep.subr.mxu0 %v415
  %522 = vmatpush1.msra.mxu0 %v414
  %523 = vmatprep.subr.mxu0 %v419
  %524 = vmatpush1.msra.mxu0 %v418
  %525 = vmatprep.subr.mxu0 %v423
  %526 = vmatpush1.msra.mxu0 %v422
  %527 = vmatprep.subr.mxu0 0.0
  %528 = vmatpush1.msra.mxu0 0.0
  %529 = vmatprep.subr.mxu0 0.0
  %530 = vmatpush1.msra.mxu0 0.0
  %531 = vmatprep.subr.mxu0 0.0
  %532 = vmatpush1.msra.mxu0 0.0
  %533 = vmatprep.subr.mxu0 0.0
  %534 = vmatpush1.msra.mxu0 0.0
  %535 = vmatprep.subr.mxu0 0.0
  %536 = vmatpush1.msra.mxu0 0.0
  %537 = vmatprep.subr.mxu0 0.0
  %538 = vmatpush1.msra.mxu0 0.0
  %539 = vmatprep.subr.mxu0 0.0
  %540 = vmatpush1.msra.mxu0 0.0
  %541 = vmatprep.subr.mxu0 0.0
  %542 = vmatpush1.msra.mxu0 0.0
  %543 = vmatprep.subr.mxu0 0.0
  %544 = vmatpush1.msra.mxu0 0.0
  %545 = vmatprep.subr.mxu0 0.0
  %546 = vmatpush1.msra.mxu0 0.0
  %547 = vmatprep.subr.mxu0 0.0
  %548 = vmatpush1.msra.mxu0 0.0
  %549 = vmatprep.subr.mxu0 0.0
  %550 = vmatpush1.msra.mxu0 0.0
  %551 = vmatprep.subr.mxu0 0.0
  %552 = vmatpush1.msra.mxu0 0.0
  %553 = vmatprep.subr.mxu0 0.0
  %554 = vmatpush1.msra.mxu0 0.0
  %555 = vmatprep.subr.mxu0 0.0
  %556 = vmatpush1.msra.mxu0 0.0
  %557 = vmatprep.subr.mxu0 0.0
  %558 = vmatpush1.msra.mxu0 0.0
  %559 = vmatprep.mubr.f32.mxu0 0.0
  %560 = vmatmul.mubr.f32.gmra.mrb[0].mxu0 0.0
  %v561 = vpop.f32.mrb[0].mxu0
  %v562 = vadd.f32 0.0, %v561
  %v563 = vpop.f32.mrb[0].mxu0
  %v564 = vadd.f32 0.0, %v563
  %565 = vdwg.mxu0
  %v566 = vadd.f32 %v356, %v491
  %v567 = vadd.f32 %v357, %v493
  %v568 = vadd.f32 %v358, %v562
  %v569 = vadd.f32 %v359, %v564
  %v570 = vxor.u32 %v566, 2147483648
  %v571 = vmul.f32 %v570, 1.442695
  %v572 = vpow.pop %v571
  %v573 = vadd.f32 %v572, 1.0
  %v574 = vrcp.pop %v573
  %v575 = vmul.f32 1.0, %v574
  %v576 = vxor.u32 %v567, 2147483648
  %v577 = vmul.f32 %v576, 1.442695
  %v578 = vpow.pop %v577
  %v579 = vadd.f32 %v578, 1.0
  %v580 = vrcp.pop %v579
  %v581 = vmul.f32 1.0, %v580
  %v582 = vtanh.pop %v568
  %v583 = vxor.u32 %v569, 2147483648
  %v584 = vmul.f32 %v583, 1.442695
  %v585 = vpow.pop %v584
  %v586 = vadd.f32 %v585, 1.0
  %v587 = vrcp.pop %v586
  %v588 = vmul.f32 1.0, %v587
  %v589 = vmul.f32 %v581, 0.0
  %v590 = vmul.f32 %v575, %v582
  %v591 = vadd.f32 %v589, %v590
  %v592 = vtanh.pop %v591
  %v593 = vmul.f32 %v588, %v592
  %594 = vst [vmem:[#allocation3] sm:$0xff] %v593
  %s595 = smul.u32 1, 4
  %s596 = smul.addr %s595, 8
  %s597 = scalar_lea.vmem [#allocation2], %s596
  %v598 = vld [vmem:[%s597] sm:$0xff]
  %v599 = vld [vmem:[%s597 + $0x8] sm:$0xff]
  %v600 = vld [vmem:[%s597 + $0x10] sm:$0xff]
  %v601 = vld [vmem:[%s597 + $0x18] sm:$0xff]
  %v602 = vld [vmem:[%s2] sm:$0xff]
  %v603 = vld [vmem:[%s2 + $0x8] sm:$0xff]
  %v604 = vld [vmem:[%s2 + $0x10] sm:$0xff]
  %v605 = vld [vmem:[%s2 + $0x18] sm:$0xff]
  %v606 = vld [vmem:[%s2 + $0x20] sm:$0xff]
  %v607 = vld [vmem:[%s2 + $0x28] sm:$0xff]
  %v608 = vld [vmem:[%s2 + $0x30] sm:$0xff]
  %v609 = vld [vmem:[%s2 + $0x38] sm:$0xff]
  %v610 = vld [vmem:[%s2 + $0x40] sm:$0xff]
  %v611 = vld [vmem:[%s2 + $0x48] sm:$0xff]
  %v612 = vld [vmem:[%s2 + $0x50] sm:$0xff]
  %v613 = vld [vmem:[%s2 + $0x58] sm:$0xff]
  %v614 = vld [vmem:[%s2 + $0x60] sm:$0xff]
  %v615 = vld [vmem:[%s2 + $0x68] sm:$0xff]
  %v616 = vld [vmem:[%s2 + $0x70] sm:$0xff]
  %v617 = vld [vmem:[%s2 + $0x78] sm:$0xff]
  %v618 = vld [vmem:[%s2 + $0x80] sm:$0xff]
  %v619 = vld [vmem:[%s2 + $0x88] sm:$0xff]
  %v620 = vld [vmem:[%s2 + $0x90] sm:$0xff]
  %v621 = vld [vmem:[%s2 + $0x98] sm:$0xff]
  %v622 = vld [vmem:[%s2 + $0xa0] sm:$0xff]
  %v623 = vld [vmem:[%s2 + $0xa8] sm:$0xff]
  %v624 = vld [vmem:[%s2 + $0xb0] sm:$0xff]
  %v625 = vld [vmem:[%s2 + $0xb8] sm:$0xff]
  %v626 = vld [vmem:[%s2 + $0xc0] sm:$0xff]
  %v627 = vld [vmem:[%s2 + $0xc8] sm:$0xff]
  %v628 = vld [vmem:[%s2 + $0xd0] sm:$0xff]
  %v629 = vld [vmem:[%s2 + $0xd8] sm:$0xff]
  %v630 = vld [vmem:[%s2 + $0xe0] sm:$0xff]
  %v631 = vld [vmem:[%s2 + $0xe8] sm:$0xff]
  %v632 = vld [vmem:[%s2 + $0xf0] sm:$0xff]
  %v633 = vld [vmem:[%s2 + $0xf8] sm:$0xff]
  %v634 = vld [vmem:[%s2 + $0x100] sm:$0xff]
  %v635 = vld [vmem:[%s2 + $0x108] sm:$0xff]
  %v636 = vld [vmem:[%s2 + $0x110] sm:$0xff]
  %v637 = vld [vmem:[%s2 + $0x118] sm:$0xff]
  %v638 = vld [vmem:[%s2 + $0x120] sm:$0xff]
  %v639 = vld [vmem:[%s2 + $0x128] sm:$0xff]
  %v640 = vld [vmem:[%s2 + $0x130] sm:$0xff]
  %v641 = vld [vmem:[%s2 + $0x138] sm:$0xff]
  %v642 = vld [vmem:[%s2 + $0x140] sm:$0xff]
  %v643 = vld [vmem:[%s2 + $0x148] sm:$0xff]
  %v644 = vld [vmem:[%s2 + $0x150] sm:$0xff]
  %v645 = vld [vmem:[%s2 + $0x158] sm:$0xff]
  %v646 = vld [vmem:[%s2 + $0x160] sm:$0xff]
  %v647 = vld [vmem:[%s2 + $0x168] sm:$0xff]
  %v648 = vld [vmem:[%s2 + $0x170] sm:$0xff]
  %v649 = vld [vmem:[%s2 + $0x178] sm:$0xff]
  %v650 = vld [vmem:[%s2 + $0x180] sm:$0xff]
  %v651 = vld [vmem:[%s2 + $0x188] sm:$0xff]
  %v652 = vld [vmem:[%s2 + $0x190] sm:$0xff]
  %v653 = vld [vmem:[%s2 + $0x198] sm:$0xff]
  %v654 = vld [vmem:[%s2 + $0x1a0] sm:$0xff]
  %v655 = vld [vmem:[%s2 + $0x1a8] sm:$0xff]
  %v656 = vld [vmem:[%s2 + $0x1b0] sm:$0xff]
  %v657 = vld [vmem:[%s2 + $0x1b8] sm:$0xff]
  %v658 = vld [vmem:[%s2 + $0x1c0] sm:$0xff]
  %v659 = vld [vmem:[%s2 + $0x1c8] sm:$0xff]
  %v660 = vld [vmem:[%s2 + $0x1d0] sm:$0xff]
  %v661 = vld [vmem:[%s2 + $0x1d8] sm:$0xff]
  %v662 = vld [vmem:[%s2 + $0x1e0] sm:$0xff]
  %v663 = vld [vmem:[%s2 + $0x1e8] sm:$0xff]
  %v664 = vld [vmem:[%s2 + $0x1f0] sm:$0xff]
  %v665 = vld [vmem:[%s2 + $0x1f8] sm:$0xff]
  %666 = vmatprep.subr.mxu0 %v603
  %667 = vmatpush1.msra.mxu0 %v602
  %668 = vmatprep.subr.mxu0 %v607
  %669 = vmatpush1.msra.mxu0 %v606
  %670 = vmatprep.subr.mxu0 %v611
  %671 = vmatpush1.msra.mxu0 %v610
  %672 = vmatprep.subr.mxu0 %v615
  %673 = vmatpush1.msra.mxu0 %v614
  %674 = vmatprep.subr.mxu0 %v619
  %675 = vmatpush1.msra.mxu0 %v618
  %676 = vmatprep.subr.mxu0 %v623
  %677 = vmatpush1.msra.mxu0 %v622
  %678 = vmatprep.subr.mxu0 %v627
  %679 = vmatpush1.msra.mxu0 %v626
  %680 = vmatprep.subr.mxu0 %v631
  %681 = vmatpush1.msra.mxu0 %v630
  %682 = vmatprep.subr.mxu0 %v635
  %683 = vmatpush1.msra.mxu0 %v634
  %684 = vmatprep.subr.mxu0 %v639
  %685 = vmatpush1.msra.mxu0 %v638
  %686 = vmatprep.subr.mxu0 %v643
  %687 = vmatpush1.msra.mxu0 %v642
  %688 = vmatprep.subr.mxu0 %v647
  %689 = vmatpush1.msra.mxu0 %v646
  %690 = vmatprep.subr.mxu0 %v651
  %691 = vmatpush1.msra.mxu0 %v650
  %692 = vmatprep.subr.mxu0 %v655
  %693 = vmatpush1.msra.mxu0 %v654
  %694 = vmatprep.subr.mxu0 %v659
  %695 = vmatpush1.msra.mxu0 %v658
  %696 = vmatprep.subr.mxu0 %v663
  %697 = vmatpush1.msra.mxu0 %v662
  %698 = vmatprep.subr.mxu0 0.0
  %699 = vmatpush1.msra.mxu0 0.0
  %700 = vmatprep.subr.mxu0 0.0
  %701 = vmatpush1.msra.mxu0 0.0
  %702 = vmatprep.subr.mxu0 0.0
  %703 = vmatpush1.msra.mxu0 0.0
  %704 = vmatprep.subr.mxu0 0.0
  %705 = vmatpush1.msra.mxu0 0.0
  %706 = vmatprep.subr.mxu0 0.0
  %707 = vmatpush1.msra.mxu0 0.0
  %708 = vmatprep.subr.mxu0 0.0
  %709 = vmatpush1.msra.mxu0 0.0
  %710 = vmatprep.subr.mxu0 0.0
  %711 = vmatpush1.msra.mxu0 0.0
  %712 = vmatprep.subr.mxu0 0.0
  %713 = vmatpush1.msra.mxu0 0.0
  %714 = vmatprep.subr.mxu0 0.0
  %715 = vmatpush1.msra.mxu0 0.0
  %716 = vmatprep.subr.mxu0 0.0
  %717 = vmatpush1.msra.mxu0 0.0
  %718 = vmatprep.subr.mxu0 0.0
  %719 = vmatpush1.msra.mxu0 0.0
  %720 = vmatprep.subr.mxu0 0.0
  %721 = vmatpush1.msra.mxu0 0.0
  %722 = vmatprep.subr.mxu0 0.0
  %723 = vmatpush1.msra.mxu0 0.0
  %724 = vmatprep.subr.mxu0 0.0
  %725 = vmatpush1.msra.mxu0 0.0
  %726 = vmatprep.subr.mxu0 0.0
  %727 = vmatpush1.msra.mxu0 0.0
  %728 = vmatprep.subr.mxu0 0.0
  %729 = vmatpush1.msra.mxu0 0.0
  %730 = vmatprep.mubr.f32.mxu0 0.0
  %731 = vmatmul.mubr.f32.gmra.mrb[0].mxu0 %v593
  %v732 = vpop.f32.mrb[0].mxu0
  %v733 = vadd.f32 0.0, %v732
  %v734 = vpop.f32.mrb[0].mxu0
  %v735 = vadd.f32 0.0, %v734
  %736 = vdwg.mxu0
  %737 = vmatprep.subr.mxu0 %v605
  %738 = vmatpush1.msra.mxu0 %v604
  %739 = vmatprep.subr.mxu0 %v609
  %740 = vmatpush1.msra.mxu0 %v608
  %741 = vmatprep.subr.mxu0 %v613
  %742 = vmatpush1.msra.mxu0 %v612
  %743 = vmatprep.subr.mxu0 %v617
  %744 = vmatpush1.msra.mxu0 %v616
  %745 = vmatprep.subr.mxu0 %v621
  %746 = vmatpush1.msra.mxu0 %v620
  %747 = vmatprep.subr.mxu0 %v625
  %748 = vmatpush1.msra.mxu0 %v624
  %749 = vmatprep.subr.mxu0 %v629
  %750 = vmatpush1.msra.mxu0 %v628
  %751 = vmatprep.subr.mxu0 %v633
  %752 = vmatpush1.msra.mxu0 %v632
  %753 = vmatprep.subr.mxu0 %v637
  %754 = vmatpush1.msra.mxu0 %v636
  %755 = vmatprep.subr.mxu0 %v641
  %756 = vmatpush1.msra.mxu0 %v640
  %757 = vmatprep.subr.mxu0 %v645
  %758 = vmatpush1.msra.mxu0 %v644
  %759 = vmatprep.subr.mxu0 %v649
  %760 = vmatpush1.msra.mxu0 %v648
  %761 = vmatprep.subr.mxu0 %v653
  %762 = vmatpush1.msra.mxu0 %v652
  %763 = vmatprep.subr.mxu0 %v657
  %764 = vmatpush1.msra.mxu0 %v656
  %765 = vmatprep.subr.mxu0 %v661
  %766 = vmatpush1.msra.mxu0 %v660
  %767 = vmatprep.subr.mxu0 %v665
  %768 = vmatpush1.msra.mxu0 %v664
  %769 = vmatprep.subr.mxu0 0.0
  %770 = vmatpush1.msra.mxu0 0.0
  %771 = vmatprep.subr.mxu0 0.0
  %772 = vmatpush1.msra.mxu0 0.0
  %773 = vmatprep.subr.mxu0 0.0
  %774 = vmatpush1.msra.mxu0 0.0
  %775 = vmatprep.subr.mxu0 0.0
  %776 = vmatpush1.msra.mxu0 0.0
  %777 = vmatprep.subr.mxu0 0.0
  %778 = vmatpush1.msra.mxu0 0.0
  %779 = vmatprep.subr.mxu0 0.0
  %780 = vmatpush1.msra.mxu0 0.0
  %781 = vmatprep.subr.mxu0 0.0
  %782 = vmatpush1.msra.mxu0 0.0
  %783 = vmatprep.subr.mxu0 0.0
  %784 = vmatpush1.msra.mxu0 0.0
  %785 = vmatprep.subr.mxu0 0.0
  %786 = vmatpush1.msra.mxu0 0.0
  %787 = vmatprep.subr.mxu0 0.0
  %788 = vmatpush1.msra.mxu0 0.0
  %789 = vmatprep.subr.mxu0 0.0
  %790 = vmatpush1.msra.mxu0 0.0
  %791 = vmatprep.subr.mxu0 0.0
  %792 = vmatpush1.msra.mxu0 0.0
  %793 = vmatprep.subr.mxu0 0.0
  %794 = vmatpush1.msra.mxu0 0.0
  %795 = vmatprep.subr.mxu0 0.0
  %796 = vmatpush1.msra.mxu0 0.0
  %797 = vmatprep.subr.mxu0 0.0
  %798 = vmatpush1.msra.mxu0 0.0
  %799 = vmatprep.subr.mxu0 0.0
  %800 = vmatpush1.msra.mxu0 0.0
  %801 = vmatprep.mubr.f32.mxu0 0.0
  %802 = vmatmul.mubr.f32.gmra.mrb[0].mxu0 %v593
  %v803 = vpop.f32.mrb[0].mxu0
  %v804 = vadd.f32 0.0, %v803
  %v805 = vpop.f32.mrb[0].mxu0
  %v806 = vadd.f32 0.0, %v805
  %807 = vdwg.mxu0
  %v808 = vadd.f32 %v598, %v733
  %v809 = vadd.f32 %v599, %v735
  %v810 = vadd.f32 %v600, %v804
  %v811 = vadd.f32 %v601, %v806
  %v812 = vxor.u32 %v808, 2147483648
  %v813 = vmul.f32 %v812, 1.442695
  %v814 = vpow.pop %v813
  %v815 = vadd.f32 %v814, 1.0
  %v816 = vrcp.pop %v815
  %v817 = vmul.f32 1.0, %v816
  %v818 = vxor.u32 %v809, 2147483648
  %v819 = vmul.f32 %v818, 1.442695
  %v820 = vpow.pop %v819
  %v821 = vadd.f32 %v820, 1.0
  %v822 = vrcp.pop %v821
  %v823 = vmul.f32 1.0, %v822
  %v824 = vtanh.pop %v810
  %v825 = vxor.u32 %v811, 2147483648
  %v826 = vmul.f32 %v825, 1.442695
  %v827 = vpow.pop %v826
  %v828 = vadd.f32 %v827, 1.0
  %v829 = vrcp.pop %v828
  %v830 = vmul.f32 1.0, %v829
  %v831 = vmul.f32 %v823, %v591
  %v832 = vmul.f32 %v817, %v824
  %v833 = vadd.f32 %v831, %v832
  %v834 = vtanh.pop %v833
  %v835 = vmul.f32 %v830, %v834
  %s836 = scalar_lea.vmem [#allocation3], 8
  %837 = vst [vmem:[%s836] sm:$0xff] %v835
  %s838 = smul.u32 2, 4
  %s839 = smul.addr %s838, 8
  %s840 = scalar_lea.vmem [#allocation2], %s839
  %v841 = vld [vmem:[%s840] sm:$0xff]
  %v842 = vld [vmem:[%s840 + $0x8] sm:$0xff]
  %v843 = vld [vmem:[%s840 + $0x10] sm:$0xff]
  %v844 = vld [vmem:[%s840 + $0x18] sm:$0xff]
  %v845 = vld [vmem:[%s2] sm:$0xff]
  %v846 = vld [vmem:[%s2 + $0x8] sm:$0xff]
  %v847 = vld [vmem:[%s2 + $0x10] sm:$0xff]
  %v848 = vld [vmem:[%s2 + $0x18] sm:$0xff]
  %v849 = vld [vmem:[%s2 + $0x20] sm:$0xff]
  %v850 = vld [vmem:[%s2 + $0x28] sm:$0xff]
  %v851 = vld [vmem:[%s2 + $0x30] sm:$0xff]
  %v852 = vld [vmem:[%s2 + $0x38] sm:$0xff]
  %v853 = vld [vmem:[%s2 + $0x40] sm:$0xff]
  %v854 = vld [vmem:[%s2 + $0x48] sm:$0xff]
  %v855 = vld [vmem:[%s2 + $0x50] sm:$0xff]
  %v856 = vld [vmem:[%s2 + $0x58] sm:$0xff]
  %v857 = vld [vmem:[%s2 + $0x60] sm:$0xff]
  %v858 = vld [vmem:[%s2 + $0x68] sm:$0xff]
  %v859 = vld [vmem:[%s2 + $0x70] sm:$0xff]
  %v860 = vld [vmem:[%s2 + $0x78] sm:$0xff]
  %v861 = vld [vmem:[%s2 + $0x80] sm:$0xff]
  %v862 = vld [vmem:[%s2 + $0x88] sm:$0xff]
  %v863 = vld [vmem:[%s2 + $0x90] sm:$0xff]
  %v864 = vld [vmem:[%s2 + $0x98] sm:$0xff]
  %v865 = vld [vmem:[%s2 + $0xa0] sm:$0xff]
  %v866 = vld [vmem:[%s2 + $0xa8] sm:$0xff]
  %v867 = vld [vmem:[%s2 + $0xb0] sm:$0xff]
  %v868 = vld [vmem:[%s2 + $0xb8] sm:$0xff]
  %v869 = vld [vmem:[%s2 + $0xc0] sm:$0xff]
  %v870 = vld [vmem:[%s2 + $0xc8] sm:$0xff]
  %v871 = vld [vmem:[%s2 + $0xd0] sm:$0xff]
  %v872 = vld [vmem:[%s2 + $0xd8] sm:$0xff]
  %v873 = vld [vmem:[%s2 + $0xe0] sm:$0xff]
  %v874 = vld [vmem:[%s2 + $0xe8] sm:$0xff]
  %v875 = vld [vmem:[%s2 + $0xf0] sm:$0xff]
  %v876 = vld [vmem:[%s2 + $0xf8] sm:$0xff]
  %v877 = vld [vmem:[%s2 + $0x100] sm:$0xff]
  %v878 = vld [vmem:[%s2 + $0x108] sm:$0xff]
  %v879 = vld [vmem:[%s2 + $0x110] sm:$0xff]
  %v880 = vld [vmem:[%s2 + $0x118] sm:$0xff]
  %v881 = vld [vmem:[%s2 + $0x120] sm:$0xff]
  %v882 = vld [vmem:[%s2 + $0x128] sm:$0xff]
  %v883 = vld [vmem:[%s2 + $0x130] sm:$0xff]
  %v884 = vld [vmem:[%s2 + $0x138] sm:$0xff]
  %v885 = vld [vmem:[%s2 + $0x140] sm:$0xff]
  %v886 = vld [vmem:[%s2 + $0x148] sm:$0xff]
  %v887 = vld [vmem:[%s2 + $0x150] sm:$0xff]
  %v888 = vld [vmem:[%s2 + $0x158] sm:$0xff]
  %v889 = vld [vmem:[%s2 + $0x160] sm:$0xff]
  %v890 = vld [vmem:[%s2 + $0x168] sm:$0xff]
  %v891 = vld [vmem:[%s2 + $0x170] sm:$0xff]
  %v892 = vld [vmem:[%s2 + $0x178] sm:$0xff]
  %v893 = vld [vmem:[%s2 + $0x180] sm:$0xff]
  %v894 = vld [vmem:[%s2 + $0x188] sm:$0xff]
  %v895 = vld [vmem:[%s2 + $0x190] sm:$0xff]
  %v896 = vld [vmem:[%s2 + $0x198] sm:$0xff]
  %v897 = vld [vmem:[%s2 + $0x1a0] sm:$0xff]
  %v898 = vld [vmem:[%s2 + $0x1a8] sm:$0xff]
  %v899 = vld [vmem:[%s2 + $0x1b0] sm:$0xff]
  %v900 = vld [vmem:[%s2 + $0x1b8] sm:$0xff]
  %v901 = vld [vmem:[%s2 + $0x1c0] sm:$0xff]
  %v902 = vld [vmem:[%s2 + $0x1c8] sm:$0xff]
  %v903 = vld [vmem:[%s2 + $0x1d0] sm:$0xff]
  %v904 = vld [vmem:[%s2 + $0x1d8] sm:$0xff]
  %v905 = vld [vmem:[%s2 + $0x1e0] sm:$0xff]
  %v906 = vld [vmem:[%s2 + $0x1e8] sm:$0xff]
  %v907 = vld [vmem:[%s2 + $0x1f0] sm:$0xff]
  %v908 = vld [vmem:[%s2 + $0x1f8] sm:$0xff]
  %909 = vmatprep.subr.mxu0 %v846
  %910 = vmatpush1.msra.mxu0 %v845
  %911 = vmatprep.subr.mxu0 %v850
  %912 = vmatpush1.msra.mxu0 %v849
  %913 = vmatprep.subr.mxu0 %v854
  %914 = vmatpush1.msra.mxu0 %v853
  %915 = vmatprep.subr.mxu0 %v858
  %916 = vmatpush1.msra.mxu0 %v857
  %917 = vmatprep.subr.mxu0 %v862
  %918 = vmatpush1.msra.mxu0 %v861
  %919 = vmatprep.subr.mxu0 %v866
  %920 = vmatpush1.msra.mxu0 %v865
  %921 = vmatprep.subr.mxu0 %v870
  %922 = vmatpush1.msra.mxu0 %v869
  %923 = vmatprep.subr.mxu0 %v874
  %924 = vmatpush1.msra.mxu0 %v873
  %925 = vmatprep.subr.mxu0 %v878
  %926 = vmatpush1.msra.mxu0 %v877
  %927 = vmatprep.subr.mxu0 %v882
  %928 = vmatpush1.msra.mxu0 %v881
  %929 = vmatprep.subr.mxu0 %v886
  %930 = vmatpush1.msra.mxu0 %v885
  %931 = vmatprep.subr.mxu0 %v890
  %932 = vmatpush1.msra.mxu0 %v889
  %933 = vmatprep.subr.mxu0 %v894
  %934 = vmatpush1.msra.mxu0 %v893
  %935 = vmatprep.subr.mxu0 %v898
  %936 = vmatpush1.msra.mxu0 %v897
  %937 = vmatprep.subr.mxu0 %v902
  %938 = vmatpush1.msra.mxu0 %v901
  %939 = vmatprep.subr.mxu0 %v906
  %940 = vmatpush1.msra.mxu0 %v905
  %941 = vmatprep.subr.mxu0 0.0
  %942 = vmatpush1.msra.mxu0 0.0
  %943 = vmatprep.subr.mxu0 0.0
  %944 = vmatpush1.msra.mxu0 0.0
  %945 = vmatprep.subr.mxu0 0.0
  %946 = vmatpush1.msra.mxu0 0.0
  %947 = vmatprep.subr.mxu0 0.0
  %948 = vmatpush1.msra.mxu0 0.0
  %949 = vmatprep.subr.mxu0 0.0
  %950 = vmatpush1.msra.mxu0 0.0
  %951 = vmatprep.subr.mxu0 0.0
  %952 = vmatpush1.msra.mxu0 0.0
  %953 = vmatprep.subr.mxu0 0.0
  %954 = vmatpush1.msra.mxu0 0.0
  %955 = vmatprep.subr.mxu0 0.0
  %956 = vmatpush1.msra.mxu0 0.0
  %957 = vmatprep.subr.mxu0 0.0
  %958 = vmatpush1.msra.mxu0 0.0
  %959 = vmatprep.subr.mxu0 0.0
  %960 = vmatpush1.msra.mxu0 0.0
  %961 = vmatprep.subr.mxu0 0.0
  %962 = vmatpush1.msra.mxu0 0.0
  %963 = vmatprep.subr.mxu0 0.0
  %964 = vmatpush1.msra.mxu0 0.0
  %965 = vmatprep.subr.mxu0 0.0
  %966 = vmatpush1.msra.mxu0 0.0
  %967 = vmatprep.subr.mxu0 0.0
  %968 = vmatpush1.msra.mxu0 0.0
  %969 = vmatprep.subr.mxu0 0.0
  %970 = vmatpush1.msra.mxu0 0.0
  %971 = vmatprep.subr.mxu0 0.0
  %972 = vmatpush1.msra.mxu0 0.0
  %973 = vmatprep.mubr.f32.mxu0 0.0
  %974 = vmatmul.mubr.f32.gmra.mrb[0].mxu0 %v835
  %v975 = vpop.f32.mrb[0].mxu0
  %v976 = vadd.f32 0.0, %v975
  %v977 = vpop.f32.mrb[0].mxu0
  %v978 = vadd.f32 0.0, %v977
  %979 = vdwg.mxu0
  %980 = vmatprep.subr.mxu0 %v848
  %981 = vmatpush1.msra.mxu0 %v847
  %982 = vmatprep.subr.mxu0 %v852
  %983 = vmatpush1.msra.mxu0 %v851
  %984 = vmatprep.subr.mxu0 %v856
  %985 = vmatpush1.msra.mxu0 %v855
  %986 = vmatprep.subr.mxu0 %v860
  %987 = vmatpush1.msra.mxu0 %v859
  %988 = vmatprep.subr.mxu0 %v864
  %989 = vmatpush1.msra.mxu0 %v863
  %990 = vmatprep.subr.mxu0 %v868
  %991 = vmatpush1.msra.mxu0 %v867
  %992 = vmatprep.subr.mxu0 %v872
  %993 = vmatpush1.msra.mxu0 %v871
  %994 = vmatprep.subr.mxu0 %v876
  %995 = vmatpush1.msra.mxu0 %v875
  %996 = vmatprep.subr.mxu0 %v880
  %997 = vmatpush1.msra.mxu0 %v879
  %998 = vmatprep.subr.mxu0 %v884
  %999 = vmatpush1.msra.mxu0 %v883
  %1000 = vmatprep.subr.mxu0 %v888
  %1001 = vmatpush1.msra.mxu0 %v887
  %1002 = vmatprep.subr.mxu0 %v892
  %1003 = vmatpush1.msra.mxu0 %v891
  %1004 = vmatprep.subr.mxu0 %v896
  %1005 = vmatpush1.msra.mxu0 %v895
  %1006 = vmatprep.subr.mxu0 %v900
  %1007 = vmatpush1.msra.mxu0 %v899
  %1008 = vmatprep.subr.mxu0 %v904
  %1009 = vmatpush1.msra.mxu0 %v903
  %1010 = vmatprep.subr.mxu0 %v908
  %1011 = vmatpush1.msra.mxu0 %v907
  %1012 = vmatprep.subr.mxu0 0.0
  %1013 = vmatpush1.msra.mxu0 0.0
  %1014 = vmatprep.subr.mxu0 0.0
  %1015 = vmatpush1.msra.mxu0 0.0
  %1016 = vmatprep.subr.mxu0 0.0
  %1017 = vmatpush1.msra.mxu0 0.0
  %1018 = vmatprep.subr.mxu0 0.0
  %1019 = vmatpush1.msra.mxu0 0.0
  %1020 = vmatprep.subr.mxu0 0.0
  %1021 = vmatpush1.msra.mxu0 0.0
  %1022 = vmatprep.subr.mxu0 0.0
  %1023 = vmatpush1.msra.mxu0 0.0
  %1024 = vmatprep.subr.mxu0 0.0
  %1025 = vmatpush1.msra.mxu0 0.0
  %1026 = vmatprep.subr.mxu0 0.0
  %1027 = vmatpush1.msra.mxu0 0.0
  %1028 = vmatprep.subr.mxu0 0.0
  %1029 = vmatpush1.msra.mxu0 0.0
  %1030 = vmatprep.subr.mxu0 0.0
  %1031 = vmatpush1.msra.mxu0 0.0
  %1032 = vmatprep.subr.mxu0 0.0
  %1033 = vmatpush1.msra.mxu0 0.0
  %1034 = vmatprep.subr.mxu0 0.0
  %1035 = vmatpush1.msra.mxu0 0.0
  %1036 = vmatprep.subr.mxu0 0.0
  %1037 = vmatpush1.msra.mxu0 0.0
  %1038 = vmatprep.subr.mxu0 0.0
  %1039 = vmatpush1.msra.mxu0 0.0
  %1040 = vmatprep.subr.mxu0 0.0
  %1041 = vmatpush1.msra.mxu0 0.0
  %1042 = vmatprep.subr.mxu0 0.0
  %1043 = vmatpush1.msra.mxu0 0.0
  %1044 = vmatprep.mubr.f32.mxu0 0.0
  %1045 = vmatmul.mubr.f32.gmra.mrb[0].mxu0 %v835
  %v1046 = vpop.f32.mrb[0].mxu0
  %v1047 = vadd.f32 0.0, %v1046
  %v1048 = vpop.f32.mrb[0].mxu0
  %v1049 = vadd.f32 0.0, %v1048
  %1050 = vdwg.mxu0
  %v1051 = vadd.f32 %v841, %v976
  %v1052 = vadd.f32 %v842, %v978
  %v1053 = vadd.f32 %v843, %v1047
  %v1054 = vadd.f32 %v844, %v1049
  %v1055 = vxor.u32 %v1051, 2147483648
  %v1056 = vmul.f32 %v1055, 1.442695
  %v1057 = vpow.pop %v1056
  %v1058 = vadd.f32 %v1057, 1.0
  %v1059 = vrcp.pop %v1058
  %v1060 = vmul.f32 1.0, %v1059
  %v1061 = vxor.u32 %v1052, 2147483648
  %v1062 = vmul.f32 %v1061, 1.442695
  %v1063 = vpow.pop %v1062
  %v1064 = vadd.f32 %v1063, 1.0
  %v1065 = vrcp.pop %v1064
  %v1066 = vmul.f32 1.0, %v1065
  %v1067 = vtanh.pop %v1053
  %v1068 = vxor.u32 %v1054, 2147483648
  %v1069 = vmul.f32 %v1068, 1.442695
  %v1070 = vpow.pop %v1069
  %v1071 = vadd.f32 %v1070, 1.0
  %v1072 = vrcp.pop %v1071
  %v1073 = vmul.f32 1.0, %v1072
  %v1074 = vmul.f32 %v1066, %v833
  %v1075 = vmul.f32 %v1060, %v1067
  %v1076 = vadd.f32 %v1074, %v1075
  %v1077 = vtanh.pop %v1076
  %v1078 = vmul.f32 %v1073, %v1077
  %s1079 = scalar_lea.vmem [#allocation3], 16
  %1080 = vst [vmem:[%s1079] sm:$0xff] %v1078
  %s1081 = smul.u32 3, 4
  %s1082 = smul.addr %s1081, 8
  %s1083 = scalar_lea.vmem [#allocation2], %s1082
  %v1084 = vld [vmem:[%s1083] sm:$0xff]
  %v1085 = vld [vmem:[%s1083 + $0x8] sm:$0xff]
  %v1086 = vld [vmem:[%s1083 + $0x10] sm:$0xff]
  %v1087 = vld [vmem:[%s1083 + $0x18] sm:$0xff]
  %v1088 = vld [vmem:[%s2] sm:$0xff]
  %v1089 = vld [vmem:[%s2 + $0x8] sm:$0xff]
  %v1090 = vld [vmem:[%s2 + $0x10] sm:$0xff]
  %v1091 = vld [vmem:[%s2 + $0x18] sm:$0xff]
  %v1092 = vld [vmem:[%s2 + $0x20] sm:$0xff]
  %v1093 = vld [vmem:[%s2 + $0x28] sm:$0xff]
  %v1094 = vld [vmem:[%s2 + $0x30] sm:$0xff]
  %v1095 = vld [vmem:[%s2 + $0x38] sm:$0xff]
  %v1096 = vld [vmem:[%s2 + $0x40] sm:$0xff]
  %v1097 = vld [vmem:[%s2 + $0x48] sm:$0xff]
  %v1098 = vld [vmem:[%s2 + $0x50] sm:$0xff]
  %v1099 = vld [vmem:[%s2 + $0x58] sm:$0xff]
  %v1100 = vld [vmem:[%s2 + $0x60] sm:$0xff]
  %v1101 = vld [vmem:[%s2 + $0x68] sm:$0xff]
  %v1102 = vld [vmem:[%s2 + $0x70] sm:$0xff]
  %v1103 = vld [vmem:[%s2 + $0x78] sm:$0xff]
  %v1104 = vld [vmem:[%s2 + $0x80] sm:$0xff]
  %v1105 = vld [vmem:[%s2 + $0x88] sm:$0xff]
  %v1106 = vld [vmem:[%s2 + $0x90] sm:$0xff]
  %v1107 = vld [vmem:[%s2 + $0x98] sm:$0xff]
  %v1108 = vld [vmem:[%s2 + $0xa0] sm:$0xff]
  %v1109 = vld [vmem:[%s2 + $0xa8] sm:$0xff]
  %v1110 = vld [vmem:[%s2 + $0xb0] sm:$0xff]
  %v1111 = vld [vmem:[%s2 + $0xb8] sm:$0xff]
  %v1112 = vld [vmem:[%s2 + $0xc0] sm:$0xff]
  %v1113 = vld [vmem:[%s2 + $0xc8] sm:$0xff]
  %v1114 = vld [vmem:[%s2 + $0xd0] sm:$0xff]
  %v1115 = vld [vmem:[%s2 + $0xd8] sm:$0xff]
  %v1116 = vld [vmem:[%s2 + $0xe0] sm:$0xff]
  %v1117 = vld [vmem:[%s2 + $0xe8] sm:$0xff]
  %v1118 = vld [vmem:[%s2 + $0xf0] sm:$0xff]
  %v1119 = vld [vmem:[%s2 + $0xf8] sm:$0xff]
  %v1120 = vld [vmem:[%s2 + $0x100] sm:$0xff]
  %v1121 = vld [vmem:[%s2 + $0x108] sm:$0xff]
  %v1122 = vld [vmem:[%s2 + $0x110] sm:$0xff]
  %v1123 = vld [vmem:[%s2 + $0x118] sm:$0xff]
  %v1124 = vld [vmem:[%s2 + $0x120] sm:$0xff]
  %v1125 = vld [vmem:[%s2 + $0x128] sm:$0xff]
  %v1126 = vld [vmem:[%s2 + $0x130] sm:$0xff]
  %v1127 = vld [vmem:[%s2 + $0x138] sm:$0xff]
  %v1128 = vld [vmem:[%s2 + $0x140] sm:$0xff]
  %v1129 = vld [vmem:[%s2 + $0x148] sm:$0xff]
  %v1130 = vld [vmem:[%s2 + $0x150] sm:$0xff]
  %v1131 = vld [vmem:[%s2 + $0x158] sm:$0xff]
  %v1132 = vld [vmem:[%s2 + $0x160] sm:$0xff]
  %v1133 = vld [vmem:[%s2 + $0x168] sm:$0xff]
  %v1134 = vld [vmem:[%s2 + $0x170] sm:$0xff]
  %v1135 = vld [vmem:[%s2 + $0x178] sm:$0xff]
  %v1136 = vld [vmem:[%s2 + $0x180] sm:$0xff]
  %v1137 = vld [vmem:[%s2 + $0x188] sm:$0xff]
  %v1138 = vld [vmem:[%s2 + $0x190] sm:$0xff]
  %v1139 = vld [vmem:[%s2 + $0x198] sm:$0xff]
  %v1140 = vld [vmem:[%s2 + $0x1a0] sm:$0xff]
  %v1141 = vld [vmem:[%s2 + $0x1a8] sm:$0xff]
  %v1142 = vld [vmem:[%s2 + $0x1b0] sm:$0xff]
  %v1143 = vld [vmem:[%s2 + $0x1b8] sm:$0xff]
  %v1144 = vld [vmem:[%s2 + $0x1c0] sm:$0xff]
  %v1145 = vld [vmem:[%s2 + $0x1c8] sm:$0xff]
  %v1146 = vld [vmem:[%s2 + $0x1d0] sm:$0xff]
  %v1147 = vld [vmem:[%s2 + $0x1d8] sm:$0xff]
  %v1148 = vld [vmem:[%s2 + $0x1e0] sm:$0xff]
  %v1149 = vld [vmem:[%s2 + $0x1e8] sm:$0xff]
  %v1150 = vld [vmem:[%s2 + $0x1f0] sm:$0xff]
  %v1151 = vld [vmem:[%s2 + $0x1f8] sm:$0xff]
  %1152 = vmatprep.subr.mxu0 %v1089
  %1153 = vmatpush1.msra.mxu0 %v1088
  %1154 = vmatprep.subr.mxu0 %v1093
  %1155 = vmatpush1.msra.mxu0 %v1092
  %1156 = vmatprep.subr.mxu0 %v1097
  %1157 = vmatpush1.msra.mxu0 %v1096
  %1158 = vmatprep.subr.mxu0 %v1101
  %1159 = vmatpush1.msra.mxu0 %v1100
  %1160 = vmatprep.subr.mxu0 %v1105
  %1161 = vmatpush1.msra.mxu0 %v1104
  %1162 = vmatprep.subr.mxu0 %v1109
  %1163 = vmatpush1.msra.mxu0 %v1108
  %1164 = vmatprep.subr.mxu0 %v1113
  %1165 = vmatpush1.msra.mxu0 %v1112
  %1166 = vmatprep.subr.mxu0 %v1117
  %1167 = vmatpush1.msra.mxu0 %v1116
  %1168 = vmatprep.subr.mxu0 %v1121
  %1169 = vmatpush1.msra.mxu0 %v1120
  %1170 = vmatprep.subr.mxu0 %v1125
  %1171 = vmatpush1.msra.mxu0 %v1124
  %1172 = vmatprep.subr.mxu0 %v1129
  %1173 = vmatpush1.msra.mxu0 %v1128
  %1174 = vmatprep.subr.mxu0 %v1133
  %1175 = vmatpush1.msra.mxu0 %v1132
  %1176 = vmatprep.subr.mxu0 %v1137
  %1177 = vmatpush1.msra.mxu0 %v1136
  %1178 = vmatprep.subr.mxu0 %v1141
  %1179 = vmatpush1.msra.mxu0 %v1140
  %1180 = vmatprep.subr.mxu0 %v1145
  %1181 = vmatpush1.msra.mxu0 %v1144
  %1182 = vmatprep.subr.mxu0 %v1149
  %1183 = vmatpush1.msra.mxu0 %v1148
  %1184 = vmatprep.subr.mxu0 0.0
  %1185 = vmatpush1.msra.mxu0 0.0
  %1186 = vmatprep.subr.mxu0 0.0
  %1187 = vmatpush1.msra.mxu0 0.0
  %1188 = vmatprep.subr.mxu0 0.0
  %1189 = vmatpush1.msra.mxu0 0.0
  %1190 = vmatprep.subr.mxu0 0.0
  %1191 = vmatpush1.msra.mxu0 0.0
  %1192 = vmatprep.subr.mxu0 0.0
  %1193 = vmatpush1.msra.mxu0 0.0
  %1194 = vmatprep.subr.mxu0 0.0
  %1195 = vmatpush1.msra.mxu0 0.0
  %1196 = vmatprep.subr.mxu0 0.0
  %1197 = vmatpush1.msra.mxu0 0.0
  %1198 = vmatprep.subr.mxu0 0.0
  %1199 = vmatpush1.msra.mxu0 0.0
  %1200 = vmatprep.subr.mxu0 0.0
  %1201 = vmatpush1.msra.mxu0 0.0
  %1202 = vmatprep.subr.mxu0 0.0
  %1203 = vmatpush1.msra.mxu0 0.0
  %1204 = vmatprep.subr.mxu0 0.0
  %1205 = vmatpush1.msra.mxu0 0.0
  %1206 = vmatprep.subr.mxu0 0.0
  %1207 = vmatpush1.msra.mxu0 0.0
  %1208 = vmatprep.subr.mxu0 0.0
  %1209 = vmatpush1.msra.mxu0 0.0
  %1210 = vmatprep.subr.mxu0 0.0
  %1211 = vmatpush1.msra.mxu0 0.0
  %1212 = vmatprep.subr.mxu0 0.0
  %1213 = vmatpush1.msra.mxu0 0.0
  %1214 = vmatprep.subr.mxu0 0.0
  %1215 = vmatpush1.msra.mxu0 0.0
  %1216 = vmatprep.mubr.f32.mxu0 0.0
  %1217 = vmatmul.mubr.f32.gmra.mrb[0].mxu0 %v1078
  %v1218 = vpop.f32.mrb[0].mxu0
  %v1219 = vadd.f32 0.0, %v1218
  %v1220 = vpop.f32.mrb[0].mxu0
  %v1221 = vadd.f32 0.0, %v1220
  %1222 = vdwg.mxu0
  %1223 = vmatprep.subr.mxu0 %v1091
  %1224 = vmatpush1.msra.mxu0 %v1090
  %1225 = vmatprep.subr.mxu0 %v1095
  %1226 = vmatpush1.msra.mxu0 %v1094
  %1227 = vmatprep.subr.mxu0 %v1099
  %1228 = vmatpush1.msra.mxu0 %v1098
  %1229 = vmatprep.subr.mxu0 %v1103
  %1230 = vmatpush1.msra.mxu0 %v1102
  %1231 = vmatprep.subr.mxu0 %v1107
  %1232 = vmatpush1.msra.mxu0 %v1106
  %1233 = vmatprep.subr.mxu0 %v1111
  %1234 = vmatpush1.msra.mxu0 %v1110
  %1235 = vmatprep.subr.mxu0 %v1115
  %1236 = vmatpush1.msra.mxu0 %v1114
  %1237 = vmatprep.subr.mxu0 %v1119
  %1238 = vmatpush1.msra.mxu0 %v1118
  %1239 = vmatprep.subr.mxu0 %v1123
  %1240 = vmatpush1.msra.mxu0 %v1122
  %1241 = vmatprep.subr.mxu0 %v1127
  %1242 = vmatpush1.msra.mxu0 %v1126
  %1243 = vmatprep.subr.mxu0 %v1131
  %1244 = vmatpush1.msra.mxu0 %v1130
  %1245 = vmatprep.subr.mxu0 %v1135
  %1246 = vmatpush1.msra.mxu0 %v1134
  %1247 = vmatprep.subr.mxu0 %v1139
  %1248 = vmatpush1.msra.mxu0 %v1138
  %1249 = vmatprep.subr.mxu0 %v1143
  %1250 = vmatpush1.msra.mxu0 %v1142
  %1251 = vmatprep.subr.mxu0 %v1147
  %1252 = vmatpush1.msra.mxu0 %v1146
  %1253 = vmatprep.subr.mxu0 %v1151
  %1254 = vmatpush1.msra.mxu0 %v1150
  %1255 = vmatprep.subr.mxu0 0.0
  %1256 = vmatpush1.msra.mxu0 0.0
  %1257 = vmatprep.subr.mxu0 0.0
  %1258 = vmatpush1.msra.mxu0 0.0
  %1259 = vmatprep.subr.mxu0 0.0
  %1260 = vmatpush1.msra.mxu0 0.0
  %1261 = vmatprep.subr.mxu0 0.0
  %1262 = vmatpush1.msra.mxu0 0.0
  %1263 = vmatprep.subr.mxu0 0.0
  %1264 = vmatpush1.msra.mxu0 0.0
  %1265 = vmatprep.subr.mxu0 0.0
  %1266 = vmatpush1.msra.mxu0 0.0
  %1267 = vmatprep.subr.mxu0 0.0
  %1268 = vmatpush1.msra.mxu0 0.0
  %1269 = vmatprep.subr.mxu0 0.0
  %1270 = vmatpush1.msra.mxu0 0.0
  %1271 = vmatprep.subr.mxu0 0.0
  %1272 = vmatpush1.msra.mxu0 0.0
  %1273 = vmatprep.subr.mxu0 0.0
  %1274 = vmatpush1.msra.mxu0 0.0
  %1275 = vmatprep.subr.mxu0 0.0
  %1276 = vmatpush1.msra.mxu0 0.0
  %1277 = vmatprep.subr.mxu0 0.0
  %1278 = vmatpush1.msra.mxu0 0.0
  %1279 = vmatprep.subr.mxu0 0.0
  %1280 = vmatpush1.msra.mxu0 0.0
  %1281 = vmatprep.subr.mxu0 0.0
  %1282 = vmatpush1.msra.mxu0 0.0
  %1283 = vmatprep.subr.mxu0 0.0
  %1284 = vmatpush1.msra.mxu0 0.0
  %1285 = vmatprep.subr.mxu0 0.0
  %1286 = vmatpush1.msra.mxu0 0.0
  %1287 = vmatprep.mubr.f32.mxu0 0.0
  %1288 = vmatmul.mubr.f32.gmra.mrb[0].mxu0 %v1078
  %v1289 = vpop.f32.mrb[0].mxu0
  %v1290 = vadd.f32 0.0, %v1289
  %v1291 = vpop.f32.mrb[0].mxu0
  %v1292 = vadd.f32 0.0, %v1291
  %1293 = vdwg.mxu0
  %v1294 = vadd.f32 %v1084, %v1219
  %v1295 = vadd.f32 %v1085, %v1221
  %v1296 = vadd.f32 %v1086, %v1290
  %v1297 = vadd.f32 %v1087, %v1292
  %v1298 = vxor.u32 %v1294, 2147483648
  %v1299 = vmul.f32 %v1298, 1.442695
  %v1300 = vpow.pop %v1299
  %v1301 = vadd.f32 %v1300, 1.0
  %v1302 = vrcp.pop %v1301
  %v1303 = vmul.f32 1.0, %v1302
  %v1304 = vxor.u32 %v1295, 2147483648
  %v1305 = vmul.f32 %v1304, 1.442695
  %v1306 = vpow.pop %v1305
  %v1307 = vadd.f32 %v1306, 1.0
  %v1308 = vrcp.pop %v1307
  %v1309 = vmul.f32 1.0, %v1308
  %v1310 = vtanh.pop %v1296
  %v1311 = vxor.u32 %v1297, 2147483648
  %v1312 = vmul.f32 %v1311, 1.442695
  %v1313 = vpow.pop %v1312
  %v1314 = vadd.f32 %v1313, 1.0
  %v1315 = vrcp.pop %v1314
  %v1316 = vmul.f32 1.0, %v1315
  %v1317 = vmul.f32 %v1309, %v1076
  %v1318 = vmul.f32 %v1303, %v1310
  %v1319 = vadd.f32 %v1317, %v1318
  %v1320 = vtanh.pop %v1319
  %v1321 = vmul.f32 %v1316, %v1320
  %s1322 = scalar_lea.vmem [#allocation3], 24
  %1323 = vst [vmem:[%s1322] sm:$0xff] %v1321
  %s1324 = smul.u32 4, 4
  %s1325 = smul.addr %s1324, 8
  %s1326 = scalar_lea.vmem [#allocation2], %s1325
  %v1327 = vld [vmem:[%s1326] sm:$0xff]
  %v1328 = vld [vmem:[%s1326 + $0x8] sm:$0xff]
  %v1329 = vld [vmem:[%s1326 + $0x10] sm:$0xff]
  %v1330 = vld [vmem:[%s1326 + $0x18] sm:$0xff]
  %v1331 = vld [vmem:[%s2] sm:$0xff]
  %v1332 = vld [vmem:[%s2 + $0x8] sm:$0xff]
  %v1333 = vld [vmem:[%s2 + $0x10] sm:$0xff]
  %v1334 = vld [vmem:[%s2 + $0x18] sm:$0xff]
  %v1335 = vld [vmem:[%s2 + $0x20] sm:$0xff]
  %v1336 = vld [vmem:[%s2 + $0x28] sm:$0xff]
  %v1337 = vld [vmem:[%s2 + $0x30] sm:$0xff]
  %v1338 = vld [vmem:[%s2 + $0x38] sm:$0xff]
  %v1339 = vld [vmem:[%s2 + $0x40] sm:$0xff]
  %v1340 = vld [vmem:[%s2 + $0x48] sm:$0xff]
  %v1341 = vld [vmem:[%s2 + $0x50] sm:$0xff]
  %v1342 = vld [vmem:[%s2 + $0x58] sm:$0xff]
  %v1343 = vld [vmem:[%s2 + $0x60] sm:$0xff]
  %v1344 = vld [vmem:[%s2 + $0x68] sm:$0xff]
  %v1345 = vld [vmem:[%s2 + $0x70] sm:$0xff]
  %v1346 = vld [vmem:[%s2 + $0x78] sm:$0xff]
  %v1347 = vld [vmem:[%s2 + $0x80] sm:$0xff]
  %v1348 = vld [vmem:[%s2 + $0x88] sm:$0xff]
  %v1349 = vld [vmem:[%s2 + $0x90] sm:$0xff]
  %v1350 = vld [vmem:[%s2 + $0x98] sm:$0xff]
  %v1351 = vld [vmem:[%s2 + $0xa0] sm:$0xff]
  %v1352 = vld [vmem:[%s2 + $0xa8] sm:$0xff]
  %v1353 = vld [vmem:[%s2 + $0xb0] sm:$0xff]
  %v1354 = vld [vmem:[%s2 + $0xb8] sm:$0xff]
  %v1355 = vld [vmem:[%s2 + $0xc0] sm:$0xff]
  %v1356 = vld [vmem:[%s2 + $0xc8] sm:$0xff]
  %v1357 = vld [vmem:[%s2 + $0xd0] sm:$0xff]
  %v1358 = vld [vmem:[%s2 + $0xd8] sm:$0xff]
  %v1359 = vld [vmem:[%s2 + $0xe0] sm:$0xff]
  %v1360 = vld [vmem:[%s2 + $0xe8] sm:$0xff]
  %v1361 = vld [vmem:[%s2 + $0xf0] sm:$0xff]
  %v1362 = vld [vmem:[%s2 + $0xf8] sm:$0xff]
  %v1363 = vld [vmem:[%s2 + $0x100] sm:$0xff]
  %v1364 = vld [vmem:[%s2 + $0x108] sm:$0xff]
  %v1365 = vld [vmem:[%s2 + $0x110] sm:$0xff]
  %v1366 = vld [vmem:[%s2 + $0x118] sm:$0xff]
  %v1367 = vld [vmem:[%s2 + $0x120] sm:$0xff]
  %v1368 = vld [vmem:[%s2 + $0x128] sm:$0xff]
  %v1369 = vld [vmem:[%s2 + $0x130] sm:$0xff]
  %v1370 = vld [vmem:[%s2 + $0x138] sm:$0xff]
  %v1371 = vld [vmem:[%s2 + $0x140] sm:$0xff]
  %v1372 = vld [vmem:[%s2 + $0x148] sm:$0xff]
  %v1373 = vld [vmem:[%s2 + $0x150] sm:$0xff]
  %v1374 = vld [vmem:[%s2 + $0x158] sm:$0xff]
  %v1375 = vld [vmem:[%s2 + $0x160] sm:$0xff]
  %v1376 = vld [vmem:[%s2 + $0x168] sm:$0xff]
  %v1377 = vld [vmem:[%s2 + $0x170] sm:$0xff]
  %v1378 = vld [vmem:[%s2 + $0x178] sm:$0xff]
  %v1379 = vld [vmem:[%s2 + $0x180] sm:$0xff]
  %v1380 = vld [vmem:[%s2 + $0x188] sm:$0xff]
  %v1381 = vld [vmem:[%s2 + $0x190] sm:$0xff]
  %v1382 = vld [vmem:[%s2 + $0x198] sm:$0xff]
  %v1383 = vld [vmem:[%s2 + $0x1a0] sm:$0xff]
  %v1384 = vld [vmem:[%s2 + $0x1a8] sm:$0xff]
  %v1385 = vld [vmem:[%s2 + $0x1b0] sm:$0xff]
  %v1386 = vld [vmem:[%s2 + $0x1b8] sm:$0xff]
  %v1387 = vld [vmem:[%s2 + $0x1c0] sm:$0xff]
  %v1388 = vld [vmem:[%s2 + $0x1c8] sm:$0xff]
  %v1389 = vld [vmem:[%s2 + $0x1d0] sm:$0xff]
  %v1390 = vld [vmem:[%s2 + $0x1d8] sm:$0xff]
  %v1391 = vld [vmem:[%s2 + $0x1e0] sm:$0xff]
  %v1392 = vld [vmem:[%s2 + $0x1e8] sm:$0xff]
  %v1393 = vld [vmem:[%s2 + $0x1f0] sm:$0xff]
  %v1394 = vld [vmem:[%s2 + $0x1f8] sm:$0xff]
  %1395 = vmatprep.subr.mxu0 %v1332
  %1396 = vmatpush1.msra.mxu0 %v1331
  %1397 = vmatprep.subr.mxu0 %v1336
  %1398 = vmatpush1.msra.mxu0 %v1335
  %1399 = vmatprep.subr.mxu0 %v1340
  %1400 = vmatpush1.msra.mxu0 %v1339
  %1401 = vmatprep.subr.mxu0 %v1344
  %1402 = vmatpush1.msra.mxu0 %v1343
  %1403 = vmatprep.subr.mxu0 %v1348
  %1404 = vmatpush1.msra.mxu0 %v1347
  %1405 = vmatprep.subr.mxu0 %v1352
  %1406 = vmatpush1.msra.mxu0 %v1351
  %1407 = vmatprep.subr.mxu0 %v1356
  %1408 = vmatpush1.msra.mxu0 %v1355
  %1409 = vmatprep.subr.mxu0 %v1360
  %1410 = vmatpush1.msra.mxu0 %v1359
  %1411 = vmatprep.subr.mxu0 %v1364
  %1412 = vmatpush1.msra.mxu0 %v1363
  %1413 = vmatprep.subr.mxu0 %v1368
  %1414 = vmatpush1.msra.mxu0 %v1367
  %1415 = vmatprep.subr.mxu0 %v1372
  %1416 = vmatpush1.msra.mxu0 %v1371
  %1417 = vmatprep.subr.mxu0 %v1376
  %1418 = vmatpush1.msra.mxu0 %v1375
  %1419 = vmatprep.subr.mxu0 %v1380
  %1420 = vmatpush1.msra.mxu0 %v1379
  %1421 = vmatprep.subr.mxu0 %v1384
  %1422 = vmatpush1.msra.mxu0 %v1383
  %1423 = vmatprep.subr.mxu0 %v1388
  %1424 = vmatpush1.msra.mxu0 %v1387
  %1425 = vmatprep.subr.mxu0 %v1392
  %1426 = vmatpush1.msra.mxu0 %v1391
  %1427 = vmatprep.subr.mxu0 0.0
  %1428 = vmatpush1.msra.mxu0 0.0
  %1429 = vmatprep.subr.mxu0 0.0
  %1430 = vmatpush1.msra.mxu0 0.0
  %1431 = vmatprep.subr.mxu0 0.0
  %1432 = vmatpush1.msra.mxu0 0.0
  %1433 = vmatprep.subr.mxu0 0.0
  %1434 = vmatpush1.msra.mxu0 0.0
  %1435 = vmatprep.subr.mxu0 0.0
  %1436 = vmatpush1.msra.mxu0 0.0
  %1437 = vmatprep.subr.mxu0 0.0
  %1438 = vmatpush1.msra.mxu0 0.0
  %1439 = vmatprep.subr.mxu0 0.0
  %1440 = vmatpush1.msra.mxu0 0.0
  %1441 = vmatprep.subr.mxu0 0.0
  %1442 = vmatpush1.msra.mxu0 0.0
  %1443 = vmatprep.subr.mxu0 0.0
  %1444 = vmatpush1.msra.mxu0 0.0
  %1445 = vmatprep.subr.mxu0 0.0
  %1446 = vmatpush1.msra.mxu0 0.0
  %1447 = vmatprep.subr.mxu0 0.0
  %1448 = vmatpush1.msra.mxu0 0.0
  %1449 = vmatprep.subr.mxu0 0.0
  %1450 = vmatpush1.msra.mxu0 0.0
  %1451 = vmatprep.subr.mxu0 0.0
  %1452 = vmatpush1.msra.mxu0 0.0
  %1453 = vmatprep.subr.mxu0 0.0
  %1454 = vmatpush1.msra.mxu0 0.0
  %1455 = vmatprep.subr.mxu0 0.0
  %1456 = vmatpush1.msra.mxu0 0.0
  %1457 = vmatprep.subr.mxu0 0.0
  %1458 = vmatpush1.msra.mxu0 0.0
  %1459 = vmatprep.mubr.f32.mxu0 0.0
  %1460 = vmatmul.mubr.f32.gmra.mrb[0].mxu0 %v1321
  %v1461 = vpop.f32.mrb[0].mxu0
  %v1462 = vadd.f32 0.0, %v1461
  %v1463 = vpop.f32.mrb[0].mxu0
  %v1464 = vadd.f32 0.0, %v1463
  %1465 = vdwg.mxu0
  %1466 = vmatprep.subr.mxu0 %v1334
  %1467 = vmatpush1.msra.mxu0 %v1333
  %1468 = vmatprep.subr.mxu0 %v1338
  %1469 = vmatpush1.msra.mxu0 %v1337
  %1470 = vmatprep.subr.mxu0 %v1342
  %1471 = vmatpush1.msra.mxu0 %v1341
  %1472 = vmatprep.subr.mxu0 %v1346
  %1473 = vmatpush1.msra.mxu0 %v1345
  %1474 = vmatprep.subr.mxu0 %v1350
  %1475 = vmatpush1.msra.mxu0 %v1349
  %1476 = vmatprep.subr.mxu0 %v1354
  %1477 = vmatpush1.msra.mxu0 %v1353
  %1478 = vmatprep.subr.mxu0 %v1358
  %1479 = vmatpush1.msra.mxu0 %v1357
  %1480 = vmatprep.subr.mxu0 %v1362
  %1481 = vmatpush1.msra.mxu0 %v1361
  %1482 = vmatprep.subr.mxu0 %v1366
  %1483 = vmatpush1.msra.mxu0 %v1365
  %1484 = vmatprep.subr.mxu0 %v1370
  %1485 = vmatpush1.msra.mxu0 %v1369
  %1486 = vmatprep.subr.mxu0 %v1374
  %1487 = vmatpush1.msra.mxu0 %v1373
  %1488 = vmatprep.subr.mxu0 %v1378
  %1489 = vmatpush1.msra.mxu0 %v1377
  %1490 = vmatprep.subr.mxu0 %v1382
  %1491 = vmatpush1.msra.mxu0 %v1381
  %1492 = vmatprep.subr.mxu0 %v1386
  %1493 = vmatpush1.msra.mxu0 %v1385
  %1494 = vmatprep.subr.mxu0 %v1390
  %1495 = vmatpush1.msra.mxu0 %v1389
  %1496 = vmatprep.subr.mxu0 %v1394
  %1497 = vmatpush1.msra.mxu0 %v1393
  %1498 = vmatprep.subr.mxu0 0.0
  %1499 = vmatpush1.msra.mxu0 0.0
  %1500 = vmatprep.subr.mxu0 0.0
  %1501 = vmatpush1.msra.mxu0 0.0
  %1502 = vmatprep.subr.mxu0 0.0
  %1503 = vmatpush1.msra.mxu0 0.0
  %1504 = vmatprep.subr.mxu0 0.0
  %1505 = vmatpush1.msra.mxu0 0.0
  %1506 = vmatprep.subr.mxu0 0.0
  %1507 = vmatpush1.msra.mxu0 0.0
  %1508 = vmatprep.subr.mxu0 0.0
  %1509 = vmatpush1.msra.mxu0 0.0
  %1510 = vmatprep.subr.mxu0 0.0
  %1511 = vmatpush1.msra.mxu0 0.0
  %1512 = vmatprep.subr.mxu0 0.0
  %1513 = vmatpush1.msra.mxu0 0.0
  %1514 = vmatprep.subr.mxu0 0.0
  %1515 = vmatpush1.msra.mxu0 0.0
  %1516 = vmatprep.subr.mxu0 0.0
  %1517 = vmatpush1.msra.mxu0 0.0
  %1518 = vmatprep.subr.mxu0 0.0
  %1519 = vmatpush1.msra.mxu0 0.0
  %1520 = vmatprep.subr.mxu0 0.0
  %1521 = vmatpush1.msra.mxu0 0.0
  %1522 = vmatprep.subr.mxu0 0.0
  %1523 = vmatpush1.msra.mxu0 0.0
  %1524 = vmatprep.subr.mxu0 0.0
  %1525 = vmatpush1.msra.mxu0 0.0
  %1526 = vmatprep.subr.mxu0 0.0
  %1527 = vmatpush1.msra.mxu0 0.0
  %1528 = vmatprep.subr.mxu0 0.0
  %1529 = vmatpush1.msra.mxu0 0.0
  %1530 = vmatprep.mubr.f32.mxu0 0.0
  %1531 = vmatmul.mubr.f32.gmra.mrb[0].mxu0 %v1321
  %v1532 = vpop.f32.mrb[0].mxu0
  %v1533 = vadd.f32 0.0, %v1532
  %v1534 = vpop.f32.mrb[0].mxu0
  %v1535 = vadd.f32 0.0, %v1534
  %1536 = vdwg.mxu0
  %v1537 = vadd.f32 %v1327, %v1462
  %v1538 = vadd.f32 %v1328, %v1464
  %v1539 = vadd.f32 %v1329, %v1533
  %v1540 = vadd.f32 %v1330, %v1535
  %v1541 = vxor.u32 %v1537, 2147483648
  %v1542 = vmul.f32 %v1541, 1.442695
  %v1543 = vpow.pop %v1542
  %v1544 = vadd.f32 %v1543, 1.0
  %v1545 = vrcp.pop %v1544
  %v1546 = vmul.f32 1.0, %v1545
  %v1547 = vxor.u32 %v1538, 2147483648
  %v1548 = vmul.f32 %v1547, 1.442695
  %v1549 = vpow.pop %v1548
  %v1550 = vadd.f32 %v1549, 1.0
  %v1551 = vrcp.pop %v1550
  %v1552 = vmul.f32 1.0, %v1551
  %v1553 = vtanh.pop %v1539
  %v1554 = vxor.u32 %v1540, 2147483648
  %v1555 = vmul.f32 %v1554, 1.442695
  %v1556 = vpow.pop %v1555
  %v1557 = vadd.f32 %v1556, 1.0
  %v1558 = vrcp.pop %v1557
  %v1559 = vmul.f32 1.0, %v1558
  %v1560 = vmul.f32 %v1552, %v1319
  %v1561 = vmul.f32 %v1546, %v1553
  %v1562 = vadd.f32 %v1560, %v1561
  %v1563 = vtanh.pop %v1562
  %v1564 = vmul.f32 %v1559, %v1563
  %s1565 = scalar_lea.vmem [#allocation3], 32
  %1566 = vst [vmem:[%s1565] sm:$0xff] %v1564
  %s1567 = smul.u32 5, 4
  %s1568 = smul.addr %s1567, 8
  %s1569 = scalar_lea.vmem [#allocation2], %s1568
  %v1570 = vld [vmem:[%s1569] sm:$0xff]
  %v1571 = vld [vmem:[%s1569 + $0x8] sm:$0xff]
  %v1572 = vld [vmem:[%s1569 + $0x10] sm:$0xff]
  %v1573 = vld [vmem:[%s1569 + $0x18] sm:$0xff]
  %v1574 = vld [vmem:[%s2] sm:$0xff]
  %v1575 = vld [vmem:[%s2 + $0x8] sm:$0xff]
  %v1576 = vld [vmem:[%s2 + $0x10] sm:$0xff]
  %v1577 = vld [vmem:[%s2 + $0x18] sm:$0xff]
  %v1578 = vld [vmem:[%s2 + $0x20] sm:$0xff]
  %v1579 = vld [vmem:[%s2 + $0x28] sm:$0xff]
  %v1580 = vld [vmem:[%s2 + $0x30] sm:$0xff]
  %v1581 = vld [vmem:[%s2 + $0x38] sm:$0xff]
  %v1582 = vld [vmem:[%s2 + $0x40] sm:$0xff]
  %v1583 = vld [vmem:[%s2 + $0x48] sm:$0xff]
  %v1584 = vld [vmem:[%s2 + $0x50] sm:$0xff]
  %v1585 = vld [vmem:[%s2 + $0x58] sm:$0xff]
  %v1586 = vld [vmem:[%s2 + $0x60] sm:$0xff]
  %v1587 = vld [vmem:[%s2 + $0x68] sm:$0xff]
  %v1588 = vld [vmem:[%s2 + $0x70] sm:$0xff]
  %v1589 = vld [vmem:[%s2 + $0x78] sm:$0xff]
  %v1590 = vld [vmem:[%s2 + $0x80] sm:$0xff]
  %v1591 = vld [vmem:[%s2 + $0x88] sm:$0xff]
  %v1592 = vld [vmem:[%s2 + $0x90] sm:$0xff]
  %v1593 = vld [vmem:[%s2 + $0x98] sm:$0xff]
  %v1594 = vld [vmem:[%s2 + $0xa0] sm:$0xff]
  %v1595 = vld [vmem:[%s2 + $0xa8] sm:$0xff]
  %v1596 = vld [vmem:[%s2 + $0xb0] sm:$0xff]
  %v1597 = vld [vmem:[%s2 + $0xb8] sm:$0xff]
  %v1598 = vld [vmem:[%s2 + $0xc0] sm:$0xff]
  %v1599 = vld [vmem:[%s2 + $0xc8] sm:$0xff]
  %v1600 = vld [vmem:[%s2 + $0xd0] sm:$0xff]
  %v1601 = vld [vmem:[%s2 + $0xd8] sm:$0xff]
  %v1602 = vld [vmem:[%s2 + $0xe0] sm:$0xff]
  %v1603 = vld [vmem:[%s2 + $0xe8] sm:$0xff]
  %v1604 = vld [vmem:[%s2 + $0xf0] sm:$0xff]
  %v1605 = vld [vmem:[%s2 + $0xf8] sm:$0xff]
  %v1606 = vld [vmem:[%s2 + $0x100] sm:$0xff]
  %v1607 = vld [vmem:[%s2 + $0x108] sm:$0xff]
  %v1608 = vld [vmem:[%s2 + $0x110] sm:$0xff]
  %v1609 = vld [vmem:[%s2 + $0x118] sm:$0xff]
  %v1610 = vld [vmem:[%s2 + $0x120] sm:$0xff]
  %v1611 = vld [vmem:[%s2 + $0x128] sm:$0xff]
  %v1612 = vld [vmem:[%s2 + $0x130] sm:$0xff]
  %v1613 = vld [vmem:[%s2 + $0x138] sm:$0xff]
  %v1614 = vld [vmem:[%s2 + $0x140] sm:$0xff]
  %v1615 = vld [vmem:[%s2 + $0x148] sm:$0xff]
  %v1616 = vld [vmem:[%s2 + $0x150] sm:$0xff]
  %v1617 = vld [vmem:[%s2 + $0x158] sm:$0xff]
  %v1618 = vld [vmem:[%s2 + $0x160] sm:$0xff]
  %v1619 = vld [vmem:[%s2 + $0x168] sm:$0xff]
  %v1620 = vld [vmem:[%s2 + $0x170] sm:$0xff]
  %v1621 = vld [vmem:[%s2 + $0x178] sm:$0xff]
  %v1622 = vld [vmem:[%s2 + $0x180] sm:$0xff]
  %v1623 = vld [vmem:[%s2 + $0x188] sm:$0xff]
  %v1624 = vld [vmem:[%s2 + $0x190] sm:$0xff]
  %v1625 = vld [vmem:[%s2 + $0x198] sm:$0xff]
  %v1626 = vld [vmem:[%s2 + $0x1a0] sm:$0xff]
  %v1627 = vld [vmem:[%s2 + $0x1a8] sm:$0xff]
  %v1628 = vld [vmem:[%s2 + $0x1b0] sm:$0xff]
  %v1629 = vld [vmem:[%s2 + $0x1b8] sm:$0xff]
  %v1630 = vld [vmem:[%s2 + $0x1c0] sm:$0xff]
  %v1631 = vld [vmem:[%s2 + $0x1c8] sm:$0xff]
  %v1632 = vld [vmem:[%s2 + $0x1d0] sm:$0xff]
  %v1633 = vld [vmem:[%s2 + $0x1d8] sm:$0xff]
  %v1634 = vld [vmem:[%s2 + $0x1e0] sm:$0xff]
  %v1635 = vld [vmem:[%s2 + $0x1e8] sm:$0xff]
  %v1636 = vld [vmem:[%s2 + $0x1f0] sm:$0xff]
  %v1637 = vld [vmem:[%s2 + $0x1f8] sm:$0xff]
  %1638 = vmatprep.subr.mxu0 %v1575
  %1639 = vmatpush1.msra.mxu0 %v1574
  %1640 = vmatprep.subr.mxu0 %v1579
  %1641 = vmatpush1.msra.mxu0 %v1578
  %1642 = vmatprep.subr.mxu0 %v1583
  %1643 = vmatpush1.msra.mxu0 %v1582
  %1644 = vmatprep.subr.mxu0 %v1587
  %1645 = vmatpush1.msra.mxu0 %v1586
  %1646 = vmatprep.subr.mxu0 %v1591
  %1647 = vmatpush1.msra.mxu0 %v1590
  %1648 = vmatprep.subr.mxu0 %v1595
  %1649 = vmatpush1.msra.mxu0 %v1594
  %1650 = vmatprep.subr.mxu0 %v1599
  %1651 = vmatpush1.msra.mxu0 %v1598
  %1652 = vmatprep.subr.mxu0 %v1603
  %1653 = vmatpush1.msra.mxu0 %v1602
  %1654 = vmatprep.subr.mxu0 %v1607
  %1655 = vmatpush1.msra.mxu0 %v1606
  %1656 = vmatprep.subr.mxu0 %v1611
  %1657 = vmatpush1.msra.mxu0 %v1610
  %1658 = vmatprep.subr.mxu0 %v1615
  %1659 = vmatpush1.msra.mxu0 %v1614
  %1660 = vmatprep.subr.mxu0 %v1619
  %1661 = vmatpush1.msra.mxu0 %v1618
  %1662 = vmatprep.subr.mxu0 %v1623
  %1663 = vmatpush1.msra.mxu0 %v1622
  %1664 = vmatprep.subr.mxu0 %v1627
  %1665 = vmatpush1.msra.mxu0 %v1626
  %1666 = vmatprep.subr.mxu0 %v1631
  %1667 = vmatpush1.msra.mxu0 %v1630
  %1668 = vmatprep.subr.mxu0 %v1635
  %1669 = vmatpush1.msra.mxu0 %v1634
  %1670 = vmatprep.subr.mxu0 0.0
  %1671 = vmatpush1.msra.mxu0 0.0
  %1672 = vmatprep.subr.mxu0 0.0
  %1673 = vmatpush1.msra.mxu0 0.0
  %1674 = vmatprep.subr.mxu0 0.0
  %1675 = vmatpush1.msra.mxu0 0.0
  %1676 = vmatprep.subr.mxu0 0.0
  %1677 = vmatpush1.msra.mxu0 0.0
  %1678 = vmatprep.subr.mxu0 0.0
  %1679 = vmatpush1.msra.mxu0 0.0
  %1680 = vmatprep.subr.mxu0 0.0
  %1681 = vmatpush1.msra.mxu0 0.0
  %1682 = vmatprep.subr.mxu0 0.0
  %1683 = vmatpush1.msra.mxu0 0.0
  %1684 = vmatprep.subr.mxu0 0.0
  %1685 = vmatpush1.msra.mxu0 0.0
  %1686 = vmatprep.subr.mxu0 0.0
  %1687 = vmatpush1.msra.mxu0 0.0
  %1688 = vmatprep.subr.mxu0 0.0
  %1689 = vmatpush1.msra.mxu0 0.0
  %1690 = vmatprep.subr.mxu0 0.0
  %1691 = vmatpush1.msra.mxu0 0.0
  %1692 = vmatprep.subr.mxu0 0.0
  %1693 = vmatpush1.msra.mxu0 0.0
  %1694 = vmatprep.subr.mxu0 0.0
  %1695 = vmatpush1.msra.mxu0 0.0
  %1696 = vmatprep.subr.mxu0 0.0
  %1697 = vmatpush1.msra.mxu0 0.0
  %1698 = vmatprep.subr.mxu0 0.0
  %1699 = vmatpush1.msra.mxu0 0.0
  %1700 = vmatprep.subr.mxu0 0.0
  %1701 = vmatpush1.msra.mxu0 0.0
  %1702 = vmatprep.mubr.f32.mxu0 0.0
  %1703 = vmatmul.mubr.f32.gmra.mrb[0].mxu0 %v1564
  %v1704 = vpop.f32.mrb[0].mxu0
  %v1705 = vadd.f32 0.0, %v1704
  %v1706 = vpop.f32.mrb[0].mxu0
  %v1707 = vadd.f32 0.0, %v1706
  %1708 = vdwg.mxu0
  %1709 = vmatprep.subr.mxu0 %v1577
  %1710 = vmatpush1.msra.mxu0 %v1576
  %1711 = vmatprep.subr.mxu0 %v1581
  %1712 = vmatpush1.msra.mxu0 %v1580
  %1713 = vmatprep.subr.mxu0 %v1585
  %1714 = vmatpush1.msra.mxu0 %v1584
  %1715 = vmatprep.subr.mxu0 %v1589
  %1716 = vmatpush1.msra.mxu0 %v1588
  %1717 = vmatprep.subr.mxu0 %v1593
  %1718 = vmatpush1.msra.mxu0 %v1592
  %1719 = vmatprep.subr.mxu0 %v1597
  %1720 = vmatpush1.msra.mxu0 %v1596
  %1721 = vmatprep.subr.mxu0 %v1601
  %1722 = vmatpush1.msra.mxu0 %v1600
  %1723 = vmatprep.subr.mxu0 %v1605
  %1724 = vmatpush1.msra.mxu0 %v1604
  %1725 = vmatprep.subr.mxu0 %v1609
  %1726 = vmatpush1.msra.mxu0 %v1608
  %1727 = vmatprep.subr.mxu0 %v1613
  %1728 = vmatpush1.msra.mxu0 %v1612
  %1729 = vmatprep.subr.mxu0 %v1617
  %1730 = vmatpush1.msra.mxu0 %v1616
  %1731 = vmatprep.subr.mxu0 %v1621
  %1732 = vmatpush1.msra.mxu0 %v1620
  %1733 = vmatprep.subr.mxu0 %v1625
  %1734 = vmatpush1.msra.mxu0 %v1624
  %1735 = vmatprep.subr.mxu0 %v1629
  %1736 = vmatpush1.msra.mxu0 %v1628
  %1737 = vmatprep.subr.mxu0 %v1633
  %1738 = vmatpush1.msra.mxu0 %v1632
  %1739 = vmatprep.subr.mxu0 %v1637
  %1740 = vmatpush1.msra.mxu0 %v1636
  %1741 = vmatprep.subr.mxu0 0.0
  %1742 = vmatpush1.msra.mxu0 0.0
  %1743 = vmatprep.subr.mxu0 0.0
  %1744 = vmatpush1.msra.mxu0 0.0
  %1745 = vmatprep.subr.mxu0 0.0
  %1746 = vmatpush1.msra.mxu0 0.0
  %1747 = vmatprep.subr.mxu0 0.0
  %1748 = vmatpush1.msra.mxu0 0.0
  %1749 = vmatprep.subr.mxu0 0.0
  %1750 = vmatpush1.msra.mxu0 0.0
  %1751 = vmatprep.subr.mxu0 0.0
  %1752 = vmatpush1.msra.mxu0 0.0
  %1753 = vmatprep.subr.mxu0 0.0
  %1754 = vmatpush1.msra.mxu0 0.0
  %1755 = vmatprep.subr.mxu0 0.0
  %1756 = vmatpush1.msra.mxu0 0.0
  %1757 = vmatprep.subr.mxu0 0.0
  %1758 = vmatpush1.msra.mxu0 0.0
  %1759 = vmatprep.subr.mxu0 0.0
  %1760 = vmatpush1.msra.mxu0 0.0
  %1761 = vmatprep.subr.mxu0 0.0
  %1762 = vmatpush1.msra.mxu0 0.0
  %1763 = vmatprep.subr.mxu0 0.0
  %1764 = vmatpush1.msra.mxu0 0.0
  %1765 = vmatprep.subr.mxu0 0.0
  %1766 = vmatpush1.msra.mxu0 0.0
  %1767 = vmatprep.subr.mxu0 0.0
  %1768 = vmatpush1.msra.mxu0 0.0
  %1769 = vmatprep.subr.mxu0 0.0
  %1770 = vmatpush1.msra.mxu0 0.0
  %1771 = vmatprep.subr.mxu0 0.0
  %1772 = vmatpush1.msra.mxu0 0.0
  %1773 = vmatprep.mubr.f32.mxu0 0.0
  %1774 = vmatmul.mubr.f32.gmra.mrb[0].mxu0 %v1564
  %v1775 = vpop.f32.mrb[0].mxu0
  %v1776 = vadd.f32 0.0, %v1775
  %v1777 = vpop.f32.mrb[0].mxu0
  %v1778 = vadd.f32 0.0, %v1777
  %1779 = vdwg.mxu0
  %v1780 = vadd.f32 %v1570, %v1705
  %v1781 = vadd.f32 %v1571, %v1707
  %v1782 = vadd.f32 %v1572, %v1776
  %v1783 = vadd.f32 %v1573, %v1778
  %v1784 = vxor.u32 %v1780, 2147483648
  %v1785 = vmul.f32 %v1784, 1.442695
  %v1786 = vpow.pop %v1785
  %v1787 = vadd.f32 %v1786, 1.0
  %v1788 = vrcp.pop %v1787
  %v1789 = vmul.f32 1.0, %v1788
  %v1790 = vxor.u32 %v1781, 2147483648
  %v1791 = vmul.f32 %v1790, 1.442695
  %v1792 = vpow.pop %v1791
  %v1793 = vadd.f32 %v1792, 1.0
  %v1794 = vrcp.pop %v1793
  %v1795 = vmul.f32 1.0, %v1794
  %v1796 = vtanh.pop %v1782
  %v1797 = vxor.u32 %v1783, 2147483648
  %v1798 = vmul.f32 %v1797, 1.442695
  %v1799 = vpow.pop %v1798
  %v1800 = vadd.f32 %v1799, 1.0
  %v1801 = vrcp.pop %v1800
  %v1802 = vmul.f32 1.0, %v1801
  %v1803 = vmul.f32 %v1795, %v1562
  %v1804 = vmul.f32 %v1789, %v1796
  %v1805 = vadd.f32 %v1803, %v1804
  %v1806 = vtanh.pop %v1805
  %v1807 = vmul.f32 %v1802, %v1806
  %s1808 = scalar_lea.vmem [#allocation3], 40
  %1809 = vst [vmem:[%s1808] sm:$0xff] %v1807
  %s1810 = smul.u32 6, 4
  %s1811 = smul.addr %s1810, 8
  %s1812 = scalar_lea.vmem [#allocation2], %s1811
  %v1813 = vld [vmem:[%s1812] sm:$0xff]
  %v1814 = vld [vmem:[%s1812 + $0x8] sm:$0xff]
  %v1815 = vld [vmem:[%s1812 + $0x10] sm:$0xff]
  %v1816 = vld [vmem:[%s1812 + $0x18] sm:$0xff]
  %v1817 = vld [vmem:[%s2] sm:$0xff]
  %v1818 = vld [vmem:[%s2 + $0x8] sm:$0xff]
  %v1819 = vld [vmem:[%s2 + $0x10] sm:$0xff]
  %v1820 = vld [vmem:[%s2 + $0x18] sm:$0xff]
  %v1821 = vld [vmem:[%s2 + $0x20] sm:$0xff]
  %v1822 = vld [vmem:[%s2 + $0x28] sm:$0xff]
  %v1823 = vld [vmem:[%s2 + $0x30] sm:$0xff]
  %v1824 = vld [vmem:[%s2 + $0x38] sm:$0xff]
  %v1825 = vld [vmem:[%s2 + $0x40] sm:$0xff]
  %v1826 = vld [vmem:[%s2 + $0x48] sm:$0xff]
  %v1827 = vld [vmem:[%s2 + $0x50] sm:$0xff]
  %v1828 = vld [vmem:[%s2 + $0x58] sm:$0xff]
  %v1829 = vld [vmem:[%s2 + $0x60] sm:$0xff]
  %v1830 = vld [vmem:[%s2 + $0x68] sm:$0xff]
  %v1831 = vld [vmem:[%s2 + $0x70] sm:$0xff]
  %v1832 = vld [vmem:[%s2 + $0x78] sm:$0xff]
  %v1833 = vld [vmem:[%s2 + $0x80] sm:$0xff]
  %v1834 = vld [vmem:[%s2 + $0x88] sm:$0xff]
  %v1835 = vld [vmem:[%s2 + $0x90] sm:$0xff]
  %v1836 = vld [vmem:[%s2 + $0x98] sm:$0xff]
  %v1837 = vld [vmem:[%s2 + $0xa0] sm:$0xff]
  %v1838 = vld [vmem:[%s2 + $0xa8] sm:$0xff]
  %v1839 = vld [vmem:[%s2 + $0xb0] sm:$0xff]
  %v1840 = vld [vmem:[%s2 + $0xb8] sm:$0xff]
  %v1841 = vld [vmem:[%s2 + $0xc0] sm:$0xff]
  %v1842 = vld [vmem:[%s2 + $0xc8] sm:$0xff]
  %v1843 = vld [vmem:[%s2 + $0xd0] sm:$0xff]
  %v1844 = vld [vmem:[%s2 + $0xd8] sm:$0xff]
  %v1845 = vld [vmem:[%s2 + $0xe0] sm:$0xff]
  %v1846 = vld [vmem:[%s2 + $0xe8] sm:$0xff]
  %v1847 = vld [vmem:[%s2 + $0xf0] sm:$0xff]
  %v1848 = vld [vmem:[%s2 + $0xf8] sm:$0xff]
  %v1849 = vld [vmem:[%s2 + $0x100] sm:$0xff]
  %v1850 = vld [vmem:[%s2 + $0x108] sm:$0xff]
  %v1851 = vld [vmem:[%s2 + $0x110] sm:$0xff]
  %v1852 = vld [vmem:[%s2 + $0x118] sm:$0xff]
  %v1853 = vld [vmem:[%s2 + $0x120] sm:$0xff]
  %v1854 = vld [vmem:[%s2 + $0x128] sm:$0xff]
  %v1855 = vld [vmem:[%s2 + $0x130] sm:$0xff]
  %v1856 = vld [vmem:[%s2 + $0x138] sm:$0xff]
  %v1857 = vld [vmem:[%s2 + $0x140] sm:$0xff]
  %v1858 = vld [vmem:[%s2 + $0x148] sm:$0xff]
  %v1859 = vld [vmem:[%s2 + $0x150] sm:$0xff]
  %v1860 = vld [vmem:[%s2 + $0x158] sm:$0xff]
  %v1861 = vld [vmem:[%s2 + $0x160] sm:$0xff]
  %v1862 = vld [vmem:[%s2 + $0x168] sm:$0xff]
  %v1863 = vld [vmem:[%s2 + $0x170] sm:$0xff]
  %v1864 = vld [vmem:[%s2 + $0x178] sm:$0xff]
  %v1865 = vld [vmem:[%s2 + $0x180] sm:$0xff]
  %v1866 = vld [vmem:[%s2 + $0x188] sm:$0xff]
  %v1867 = vld [vmem:[%s2 + $0x190] sm:$0xff]
  %v1868 = vld [vmem:[%s2 + $0x198] sm:$0xff]
  %v1869 = vld [vmem:[%s2 + $0x1a0] sm:$0xff]
  %v1870 = vld [vmem:[%s2 + $0x1a8] sm:$0xff]
  %v1871 = vld [vmem:[%s2 + $0x1b0] sm:$0xff]
  %v1872 = vld [vmem:[%s2 + $0x1b8] sm:$0xff]
  %v1873 = vld [vmem:[%s2 + $0x1c0] sm:$0xff]
  %v1874 = vld [vmem:[%s2 + $0x1c8] sm:$0xff]
  %v1875 = vld [vmem:[%s2 + $0x1d0] sm:$0xff]
  %v1876 = vld [vmem:[%s2 + $0x1d8] sm:$0xff]
  %v1877 = vld [vmem:[%s2 + $0x1e0] sm:$0xff]
  %v1878 = vld [vmem:[%s2 + $0x1e8] sm:$0xff]
  %v1879 = vld [vmem:[%s2 + $0x1f0] sm:$0xff]
  %v1880 = vld [vmem:[%s2 + $0x1f8] sm:$0xff]
  %1881 = vmatprep.subr.mxu0 %v1818
  %1882 = vmatpush1.msra.mxu0 %v1817
  %1883 = vmatprep.subr.mxu0 %v1822
  %1884 = vmatpush1.msra.mxu0 %v1821
  %1885 = vmatprep.subr.mxu0 %v1826
  %1886 = vmatpush1.msra.mxu0 %v1825
  %1887 = vmatprep.subr.mxu0 %v1830
  %1888 = vmatpush1.msra.mxu0 %v1829
  %1889 = vmatprep.subr.mxu0 %v1834
  %1890 = vmatpush1.msra.mxu0 %v1833
  %1891 = vmatprep.subr.mxu0 %v1838
  %1892 = vmatpush1.msra.mxu0 %v1837
  %1893 = vmatprep.subr.mxu0 %v1842
  %1894 = vmatpush1.msra.mxu0 %v1841
  %1895 = vmatprep.subr.mxu0 %v1846
  %1896 = vmatpush1.msra.mxu0 %v1845
  %1897 = vmatprep.subr.mxu0 %v1850
  %1898 = vmatpush1.msra.mxu0 %v1849
  %1899 = vmatprep.subr.mxu0 %v1854
  %1900 = vmatpush1.msra.mxu0 %v1853
  %1901 = vmatprep.subr.mxu0 %v1858
  %1902 = vmatpush1.msra.mxu0 %v1857
  %1903 = vmatprep.subr.mxu0 %v1862
  %1904 = vmatpush1.msra.mxu0 %v1861
  %1905 = vmatprep.subr.mxu0 %v1866
  %1906 = vmatpush1.msra.mxu0 %v1865
  %1907 = vmatprep.subr.mxu0 %v1870
  %1908 = vmatpush1.msra.mxu0 %v1869
  %1909 = vmatprep.subr.mxu0 %v1874
  %1910 = vmatpush1.msra.mxu0 %v1873
  %1911 = vmatprep.subr.mxu0 %v1878
  %1912 = vmatpush1.msra.mxu0 %v1877
  %1913 = vmatprep.subr.mxu0 0.0
  %1914 = vmatpush1.msra.mxu0 0.0
  %1915 = vmatprep.subr.mxu0 0.0
  %1916 = vmatpush1.msra.mxu0 0.0
  %1917 = vmatprep.subr.mxu0 0.0
  %1918 = vmatpush1.msra.mxu0 0.0
  %1919 = vmatprep.subr.mxu0 0.0
  %1920 = vmatpush1.msra.mxu0 0.0
  %1921 = vmatprep.subr.mxu0 0.0
  %1922 = vmatpush1.msra.mxu0 0.0
  %1923 = vmatprep.subr.mxu0 0.0
  %1924 = vmatpush1.msra.mxu0 0.0
  %1925 = vmatprep.subr.mxu0 0.0
  %1926 = vmatpush1.msra.mxu0 0.0
  %1927 = vmatprep.subr.mxu0 0.0
  %1928 = vmatpush1.msra.mxu0 0.0
  %1929 = vmatprep.subr.mxu0 0.0
  %1930 = vmatpush1.msra.mxu0 0.0
  %1931 = vmatprep.subr.mxu0 0.0
  %1932 = vmatpush1.msra.mxu0 0.0
  %1933 = vmatprep.subr.mxu0 0.0
  %1934 = vmatpush1.msra.mxu0 0.0
  %1935 = vmatprep.subr.mxu0 0.0
  %1936 = vmatpush1.msra.mxu0 0.0
  %1937 = vmatprep.subr.mxu0 0.0
  %1938 = vmatpush1.msra.mxu0 0.0
  %1939 = vmatprep.subr.mxu0 0.0
  %1940 = vmatpush1.msra.mxu0 0.0
  %1941 = vmatprep.subr.mxu0 0.0
  %1942 = vmatpush1.msra.mxu0 0.0
  %1943 = vmatprep.subr.mxu0 0.0
  %1944 = vmatpush1.msra.mxu0 0.0
  %1945 = vmatprep.mubr.f32.mxu0 0.0
  %1946 = vmatmul.mubr.f32.gmra.mrb[0].mxu0 %v1807
  %v1947 = vpop.f32.mrb[0].mxu0
  %v1948 = vadd.f32 0.0, %v1947
  %v1949 = vpop.f32.mrb[0].mxu0
  %v1950 = vadd.f32 0.0, %v1949
  %1951 = vdwg.mxu0
  %1952 = vmatprep.subr.mxu0 %v1820
  %1953 = vmatpush1.msra.mxu0 %v1819
  %1954 = vmatprep.subr.mxu0 %v1824
  %1955 = vmatpush1.msra.mxu0 %v1823
  %1956 = vmatprep.subr.mxu0 %v1828
  %1957 = vmatpush1.msra.mxu0 %v1827
  %1958 = vmatprep.subr.mxu0 %v1832
  %1959 = vmatpush1.msra.mxu0 %v1831
  %1960 = vmatprep.subr.mxu0 %v1836
  %1961 = vmatpush1.msra.mxu0 %v1835
  %1962 = vmatprep.subr.mxu0 %v1840
  %1963 = vmatpush1.msra.mxu0 %v1839
  %1964 = vmatprep.subr.mxu0 %v1844
  %1965 = vmatpush1.msra.mxu0 %v1843
  %1966 = vmatprep.subr.mxu0 %v1848
  %1967 = vmatpush1.msra.mxu0 %v1847
  %1968 = vmatprep.subr.mxu0 %v1852
  %1969 = vmatpush1.msra.mxu0 %v1851
  %1970 = vmatprep.subr.mxu0 %v1856
  %1971 = vmatpush1.msra.mxu0 %v1855
  %1972 = vmatprep.subr.mxu0 %v1860
  %1973 = vmatpush1.msra.mxu0 %v1859
  %1974 = vmatprep.subr.mxu0 %v1864
  %1975 = vmatpush1.msra.mxu0 %v1863
  %1976 = vmatprep.subr.mxu0 %v1868
  %1977 = vmatpush1.msra.mxu0 %v1867
  %1978 = vmatprep.subr.mxu0 %v1872
  %1979 = vmatpush1.msra.mxu0 %v1871
  %1980 = vmatprep.subr.mxu0 %v1876
  %1981 = vmatpush1.msra.mxu0 %v1875
  %1982 = vmatprep.subr.mxu0 %v1880
  %1983 = vmatpush1.msra.mxu0 %v1879
  %1984 = vmatprep.subr.mxu0 0.0
  %1985 = vmatpush1.msra.mxu0 0.0
  %1986 = vmatprep.subr.mxu0 0.0
  %1987 = vmatpush1.msra.mxu0 0.0
  %1988 = vmatprep.subr.mxu0 0.0
  %1989 = vmatpush1.msra.mxu0 0.0
  %1990 = vmatprep.subr.mxu0 0.0
  %1991 = vmatpush1.msra.mxu0 0.0
  %1992 = vmatprep.subr.mxu0 0.0
  %1993 = vmatpush1.msra.mxu0 0.0
  %1994 = vmatprep.subr.mxu0 0.0
  %1995 = vmatpush1.msra.mxu0 0.0
  %1996 = vmatprep.subr.mxu0 0.0
  %1997 = vmatpush1.msra.mxu0 0.0
  %1998 = vmatprep.subr.mxu0 0.0
  %1999 = vmatpush1.msra.mxu0 0.0
  %2000 = vmatprep.subr.mxu0 0.0
  %2001 = vmatpush1.msra.mxu0 0.0
  %2002 = vmatprep.subr.mxu0 0.0
  %2003 = vmatpush1.msra.mxu0 0.0
  %2004 = vmatprep.subr.mxu0 0.0
  %2005 = vmatpush1.msra.mxu0 0.0
  %2006 = vmatprep.subr.mxu0 0.0
  %2007 = vmatpush1.msra.mxu0 0.0
  %2008 = vmatprep.subr.mxu0 0.0
  %2009 = vmatpush1.msra.mxu0 0.0
  %2010 = vmatprep.subr.mxu0 0.0
  %2011 = vmatpush1.msra.mxu0 0.0
  %2012 = vmatprep.subr.mxu0 0.0
  %2013 = vmatpush1.msra.mxu0 0.0
  %2014 = vmatprep.subr.mxu0 0.0
  %2015 = vmatpush1.msra.mxu0 0.0
  %2016 = vmatprep.mubr.f32.mxu0 0.0
  %2017 = vmatmul.mubr.f32.gmra.mrb[0].mxu0 %v1807
  %v2018 = vpop.f32.mrb[0].mxu0
  %v2019 = vadd.f32 0.0, %v2018
  %v2020 = vpop.f32.mrb[0].mxu0
  %v2021 = vadd.f32 0.0, %v2020
  %2022 = vdwg.mxu0
  %v2023 = vadd.f32 %v1813, %v1948
  %v2024 = vadd.f32 %v1814, %v1950
  %v2025 = vadd.f32 %v1815, %v2019
  %v2026 = vadd.f32 %v1816, %v2021
  %v2027 = vxor.u32 %v2023, 2147483648
  %v2028 = vmul.f32 %v2027, 1.442695
  %v2029 = vpow.pop %v2028
  %v2030 = vadd.f32 %v2029, 1.0
  %v2031 = vrcp.pop %v2030
  %v2032 = vmul.f32 1.0, %v2031
  %v2033 = vxor.u32 %v2024, 2147483648
  %v2034 = vmul.f32 %v2033, 1.442695
  %v2035 = vpow.pop %v2034
  %v2036 = vadd.f32 %v2035, 1.0
  %v2037 = vrcp.pop %v2036
  %v2038 = vmul.f32 1.0, %v2037
  %v2039 = vtanh.pop %v2025
  %v2040 = vxor.u32 %v2026, 2147483648
  %v2041 = vmul.f32 %v2040, 1.442695
  %v2042 = vpow.pop %v2041
  %v2043 = vadd.f32 %v2042, 1.0
  %v2044 = vrcp.pop %v2043
  %v2045 = vmul.f32 1.0, %v2044
  %v2046 = vmul.f32 %v2038, %v1805
  %v2047 = vmul.f32 %v2032, %v2039
  %v2048 = vadd.f32 %v2046, %v2047
  %v2049 = vtanh.pop %v2048
  %v2050 = vmul.f32 %v2045, %v2049
  %s2051 = scalar_lea.vmem [#allocation3], 48
  %2052 = vst [vmem:[%s2051] sm:$0xff] %v2050
  %s2053 = smul.u32 7, 4
  %s2054 = smul.addr %s2053, 8
  %s2055 = scalar_lea.vmem [#allocation2], %s2054
  %v2056 = vld [vmem:[%s2055] sm:$0xff]
  %v2057 = vld [vmem:[%s2055 + $0x8] sm:$0xff]
  %v2058 = vld [vmem:[%s2055 + $0x10] sm:$0xff]
  %v2059 = vld [vmem:[%s2055 + $0x18] sm:$0xff]
  %v2060 = vld [vmem:[%s2] sm:$0xff]
  %v2061 = vld [vmem:[%s2 + $0x8] sm:$0xff]
  %v2062 = vld [vmem:[%s2 + $0x10] sm:$0xff]
  %v2063 = vld [vmem:[%s2 + $0x18] sm:$0xff]
  %v2064 = vld [vmem:[%s2 + $0x20] sm:$0xff]
  %v2065 = vld [vmem:[%s2 + $0x28] sm:$0xff]
  %v2066 = vld [vmem:[%s2 + $0x30] sm:$0xff]
  %v2067 = vld [vmem:[%s2 + $0x38] sm:$0xff]
  %v2068 = vld [vmem:[%s2 + $0x40] sm:$0xff]
  %v2069 = vld [vmem:[%s2 + $0x48] sm:$0xff]
  %v2070 = vld [vmem:[%s2 + $0x50] sm:$0xff]
  %v2071 = vld [vmem:[%s2 + $0x58] sm:$0xff]
  %v2072 = vld [vmem:[%s2 + $0x60] sm:$0xff]
  %v2073 = vld [vmem:[%s2 + $0x68] sm:$0xff]
  %v2074 = vld [vmem:[%s2 + $0x70] sm:$0xff]
  %v2075 = vld [vmem:[%s2 + $0x78] sm:$0xff]
  %v2076 = vld [vmem:[%s2 + $0x80] sm:$0xff]
  %v2077 = vld [vmem:[%s2 + $0x88] sm:$0xff]
  %v2078 = vld [vmem:[%s2 + $0x90] sm:$0xff]
  %v2079 = vld [vmem:[%s2 + $0x98] sm:$0xff]
  %v2080 = vld [vmem:[%s2 + $0xa0] sm:$0xff]
  %v2081 = vld [vmem:[%s2 + $0xa8] sm:$0xff]
  %v2082 = vld [vmem:[%s2 + $0xb0] sm:$0xff]
  %v2083 = vld [vmem:[%s2 + $0xb8] sm:$0xff]
  %v2084 = vld [vmem:[%s2 + $0xc0] sm:$0xff]
  %v2085 = vld [vmem:[%s2 + $0xc8] sm:$0xff]
  %v2086 = vld [vmem:[%s2 + $0xd0] sm:$0xff]
  %v2087 = vld [vmem:[%s2 + $0xd8] sm:$0xff]
  %v2088 = vld [vmem:[%s2 + $0xe0] sm:$0xff]
  %v2089 = vld [vmem:[%s2 + $0xe8] sm:$0xff]
  %v2090 = vld [vmem:[%s2 + $0xf0] sm:$0xff]
  %v2091 = vld [vmem:[%s2 + $0xf8] sm:$0xff]
  %v2092 = vld [vmem:[%s2 + $0x100] sm:$0xff]
  %v2093 = vld [vmem:[%s2 + $0x108] sm:$0xff]
  %v2094 = vld [vmem:[%s2 + $0x110] sm:$0xff]
  %v2095 = vld [vmem:[%s2 + $0x118] sm:$0xff]
  %v2096 = vld [vmem:[%s2 + $0x120] sm:$0xff]
  %v2097 = vld [vmem:[%s2 + $0x128] sm:$0xff]
  %v2098 = vld [vmem:[%s2 + $0x130] sm:$0xff]
  %v2099 = vld [vmem:[%s2 + $0x138] sm:$0xff]
  %v2100 = vld [vmem:[%s2 + $0x140] sm:$0xff]
  %v2101 = vld [vmem:[%s2 + $0x148] sm:$0xff]
  %v2102 = vld [vmem:[%s2 + $0x150] sm:$0xff]
  %v2103 = vld [vmem:[%s2 + $0x158] sm:$0xff]
  %v2104 = vld [vmem:[%s2 + $0x160] sm:$0xff]
  %v2105 = vld [vmem:[%s2 + $0x168] sm:$0xff]
  %v2106 = vld [vmem:[%s2 + $0x170] sm:$0xff]
  %v2107 = vld [vmem:[%s2 + $0x178] sm:$0xff]
  %v2108 = vld [vmem:[%s2 + $0x180] sm:$0xff]
  %v2109 = vld [vmem:[%s2 + $0x188] sm:$0xff]
  %v2110 = vld [vmem:[%s2 + $0x190] sm:$0xff]
  %v2111 = vld [vmem:[%s2 + $0x198] sm:$0xff]
  %v2112 = vld [vmem:[%s2 + $0x1a0] sm:$0xff]
  %v2113 = vld [vmem:[%s2 + $0x1a8] sm:$0xff]
  %v2114 = vld [vmem:[%s2 + $0x1b0] sm:$0xff]
  %v2115 = vld [vmem:[%s2 + $0x1b8] sm:$0xff]
  %v2116 = vld [vmem:[%s2 + $0x1c0] sm:$0xff]
  %v2117 = vld [vmem:[%s2 + $0x1c8] sm:$0xff]
  %v2118 = vld [vmem:[%s2 + $0x1d0] sm:$0xff]
  %v2119 = vld [vmem:[%s2 + $0x1d8] sm:$0xff]
  %v2120 = vld [vmem:[%s2 + $0x1e0] sm:$0xff]
  %v2121 = vld [vmem:[%s2 + $0x1e8] sm:$0xff]
  %v2122 = vld [vmem:[%s2 + $0x1f0] sm:$0xff]
  %v2123 = vld [vmem:[%s2 + $0x1f8] sm:$0xff]
  %2124 = vmatprep.subr.mxu0 %v2061
  %2125 = vmatpush1.msra.mxu0 %v2060
  %2126 = vmatprep.subr.mxu0 %v2065
  %2127 = vmatpush1.msra.mxu0 %v2064
  %2128 = vmatprep.subr.mxu0 %v2069
  %2129 = vmatpush1.msra.mxu0 %v2068
  %2130 = vmatprep.subr.mxu0 %v2073
  %2131 = vmatpush1.msra.mxu0 %v2072
  %2132 = vmatprep.subr.mxu0 %v2077
  %2133 = vmatpush1.msra.mxu0 %v2076
  %2134 = vmatprep.subr.mxu0 %v2081
  %2135 = vmatpush1.msra.mxu0 %v2080
  %2136 = vmatprep.subr.mxu0 %v2085
  %2137 = vmatpush1.msra.mxu0 %v2084
  %2138 = vmatprep.subr.mxu0 %v2089
  %2139 = vmatpush1.msra.mxu0 %v2088
  %2140 = vmatprep.subr.mxu0 %v2093
  %2141 = vmatpush1.msra.mxu0 %v2092
  %2142 = vmatprep.subr.mxu0 %v2097
  %2143 = vmatpush1.msra.mxu0 %v2096
  %2144 = vmatprep.subr.mxu0 %v2101
  %2145 = vmatpush1.msra.mxu0 %v2100
  %2146 = vmatprep.subr.mxu0 %v2105
  %2147 = vmatpush1.msra.mxu0 %v2104
  %2148 = vmatprep.subr.mxu0 %v2109
  %2149 = vmatpush1.msra.mxu0 %v2108
  %2150 = vmatprep.subr.mxu0 %v2113
  %2151 = vmatpush1.msra.mxu0 %v2112
  %2152 = vmatprep.subr.mxu0 %v2117
  %2153 = vmatpush1.msra.mxu0 %v2116
  %2154 = vmatprep.subr.mxu0 %v2121
  %2155 = vmatpush1.msra.mxu0 %v2120
  %2156 = vmatprep.subr.mxu0 0.0
  %2157 = vmatpush1.msra.mxu0 0.0
  %2158 = vmatprep.subr.mxu0 0.0
  %2159 = vmatpush1.msra.mxu0 0.0
  %2160 = vmatprep.subr.mxu0 0.0
  %2161 = vmatpush1.msra.mxu0 0.0
  %2162 = vmatprep.subr.mxu0 0.0
  %2163 = vmatpush1.msra.mxu0 0.0
  %2164 = vmatprep.subr.mxu0 0.0
  %2165 = vmatpush1.msra.mxu0 0.0
  %2166 = vmatprep.subr.mxu0 0.0
  %2167 = vmatpush1.msra.mxu0 0.0
  %2168 = vmatprep.subr.mxu0 0.0
  %2169 = vmatpush1.msra.mxu0 0.0
  %2170 = vmatprep.subr.mxu0 0.0
  %2171 = vmatpush1.msra.mxu0 0.0
  %2172 = vmatprep.subr.mxu0 0.0
  %2173 = vmatpush1.msra.mxu0 0.0
  %2174 = vmatprep.subr.mxu0 0.0
  %2175 = vmatpush1.msra.mxu0 0.0
  %2176 = vmatprep.subr.mxu0 0.0
  %2177 = vmatpush1.msra.mxu0 0.0
  %2178 = vmatprep.subr.mxu0 0.0
  %2179 = vmatpush1.msra.mxu0 0.0
  %2180 = vmatprep.subr.mxu0 0.0
  %2181 = vmatpush1.msra.mxu0 0.0
  %2182 = vmatprep.subr.mxu0 0.0
  %2183 = vmatpush1.msra.mxu0 0.0
  %2184 = vmatprep.subr.mxu0 0.0
  %2185 = vmatpush1.msra.mxu0 0.0
  %2186 = vmatprep.subr.mxu0 0.0
  %2187 = vmatpush1.msra.mxu0 0.0
  %2188 = vmatprep.mubr.f32.mxu0 0.0
  %2189 = vmatmul.mubr.f32.gmra.mrb[0].mxu0 %v2050
  %v2190 = vpop.f32.mrb[0].mxu0
  %v2191 = vadd.f32 0.0, %v2190
  %v2192 = vpop.f32.mrb[0].mxu0
  %v2193 = vadd.f32 0.0, %v2192
  %2194 = vdwg.mxu0
  %2195 = vmatprep.subr.mxu0 %v2063
  %2196 = vmatpush1.msra.mxu0 %v2062
  %2197 = vmatprep.subr.mxu0 %v2067
  %2198 = vmatpush1.msra.mxu0 %v2066
  %2199 = vmatprep.subr.mxu0 %v2071
  %2200 = vmatpush1.msra.mxu0 %v2070
  %2201 = vmatprep.subr.mxu0 %v2075
  %2202 = vmatpush1.msra.mxu0 %v2074
  %2203 = vmatprep.subr.mxu0 %v2079
  %2204 = vmatpush1.msra.mxu0 %v2078
  %2205 = vmatprep.subr.mxu0 %v2083
  %2206 = vmatpush1.msra.mxu0 %v2082
  %2207 = vmatprep.subr.mxu0 %v2087
  %2208 = vmatpush1.msra.mxu0 %v2086
  %2209 = vmatprep.subr.mxu0 %v2091
  %2210 = vmatpush1.msra.mxu0 %v2090
  %2211 = vmatprep.subr.mxu0 %v2095
  %2212 = vmatpush1.msra.mxu0 %v2094
  %2213 = vmatprep.subr.mxu0 %v2099
  %2214 = vmatpush1.msra.mxu0 %v2098
  %2215 = vmatprep.subr.mxu0 %v2103
  %2216 = vmatpush1.msra.mxu0 %v2102
  %2217 = vmatprep.subr.mxu0 %v2107
  %2218 = vmatpush1.msra.mxu0 %v2106
  %2219 = vmatprep.subr.mxu0 %v2111
  %2220 = vmatpush1.msra.mxu0 %v2110
  %2221 = vmatprep.subr.mxu0 %v2115
  %2222 = vmatpush1.msra.mxu0 %v2114
  %2223 = vmatprep.subr.mxu0 %v2119
  %2224 = vmatpush1.msra.mxu0 %v2118
  %2225 = vmatprep.subr.mxu0 %v2123
  %2226 = vmatpush1.msra.mxu0 %v2122
  %2227 = vmatprep.subr.mxu0 0.0
  %2228 = vmatpush1.msra.mxu0 0.0
  %2229 = vmatprep.subr.mxu0 0.0
  %2230 = vmatpush1.msra.mxu0 0.0
  %2231 = vmatprep.subr.mxu0 0.0
  %2232 = vmatpush1.msra.mxu0 0.0
  %2233 = vmatprep.subr.mxu0 0.0
  %2234 = vmatpush1.msra.mxu0 0.0
  %2235 = vmatprep.subr.mxu0 0.0
  %2236 = vmatpush1.msra.mxu0 0.0
  %2237 = vmatprep.subr.mxu0 0.0
  %2238 = vmatpush1.msra.mxu0 0.0
  %2239 = vmatprep.subr.mxu0 0.0
  %2240 = vmatpush1.msra.mxu0 0.0
  %2241 = vmatprep.subr.mxu0 0.0
  %2242 = vmatpush1.msra.mxu0 0.0
  %2243 = vmatprep.subr.mxu0 0.0
  %2244 = vmatpush1.msra.mxu0 0.0
  %2245 = vmatprep.subr.mxu0 0.0
  %2246 = vmatpush1.msra.mxu0 0.0
  %2247 = vmatprep.subr.mxu0 0.0
  %2248 = vmatpush1.msra.mxu0 0.0
  %2249 = vmatprep.subr.mxu0 0.0
  %2250 = vmatpush1.msra.mxu0 0.0
  %2251 = vmatprep.subr.mxu0 0.0
  %2252 = vmatpush1.msra.mxu0 0.0
  %2253 = vmatprep.subr.mxu0 0.0
  %2254 = vmatpush1.msra.mxu0 0.0
  %2255 = vmatprep.subr.mxu0 0.0
  %2256 = vmatpush1.msra.mxu0 0.0
  %2257 = vmatprep.subr.mxu0 0.0
  %2258 = vmatpush1.msra.mxu0 0.0
  %2259 = vmatprep.mubr.f32.mxu0 0.0
  %2260 = vmatmul.mubr.f32.gmra.mrb[0].mxu0 %v2050
  %v2261 = vpop.f32.mrb[0].mxu0
  %v2262 = vadd.f32 0.0, %v2261
  %v2263 = vpop.f32.mrb[0].mxu0
  %v2264 = vadd.f32 0.0, %v2263
  %2265 = vdwg.mxu0
  %v2266 = vadd.f32 %v2056, %v2191
  %v2267 = vadd.f32 %v2057, %v2193
  %v2268 = vadd.f32 %v2058, %v2262
  %v2269 = vadd.f32 %v2059, %v2264
  %v2270 = vxor.u32 %v2266, 2147483648
  %v2271 = vmul.f32 %v2270, 1.442695
  %v2272 = vpow.pop %v2271
  %v2273 = vadd.f32 %v2272, 1.0
  %v2274 = vrcp.pop %v2273
  %v2275 = vmul.f32 1.0, %v2274
  %v2276 = vxor.u32 %v2267, 2147483648
  %v2277 = vmul.f32 %v2276, 1.442695
  %v2278 = vpow.pop %v2277
  %v2279 = vadd.f32 %v2278, 1.0
  %v2280 = vrcp.pop %v2279
  %v2281 = vmul.f32 1.0, %v2280
  %v2282 = vtanh.pop %v2268
  %v2283 = vxor.u32 %v2269, 2147483648
  %v2284 = vmul.f32 %v2283, 1.442695
  %v2285 = vpow.pop %v2284
  %v2286 = vadd.f32 %v2285, 1.0
  %v2287 = vrcp.pop %v2286
  %v2288 = vmul.f32 1.0, %v2287
  %v2289 = vmul.f32 %v2281, %v2048
  %v2290 = vmul.f32 %v2275, %v2282
  %v2291 = vadd.f32 %v2289, %v2290
  %v2292 = vtanh.pop %v2291
  %v2293 = vmul.f32 %v2288, %v2292
  %s2294 = scalar_lea.vmem [#allocation3], 56
  %2295 = vst [vmem:[%s2294] sm:$0xff] %v2293
  %v2296 = vld [vmem:[#allocation3] sm:$0xff]
  %v2297 = vld [vmem:[#allocation3 + $0x8] sm:$0xff]
  %v2298 = vld [vmem:[#allocation3 + $0x10] sm:$0xff]
  %v2299 = vld [vmem:[#allocation3 + $0x18] sm:$0xff]
  %v2300 = vld [vmem:[#allocation3 + $0x20] sm:$0xff]
  %v2301 = vld [vmem:[#allocation3 + $0x28] sm:$0xff]
  %v2302 = vld [vmem:[#allocation3 + $0x30] sm:$0xff]
  %v2303 = vld [vmem:[#allocation3 + $0x38] sm:$0xff]
  %v2304 = vld [vmem:[%s4] sm:$0xff]
  %v2305 = vld [vmem:[%s4 + $0x8] sm:$0xff]
  %v2306 = vld [vmem:[%s4 + $0x10] sm:$0xff]
  %v2307 = vld [vmem:[%s4 + $0x18] sm:$0xff]
  %v2308 = vld [vmem:[%s4 + $0x20] sm:$0xff]
  %v2309 = vld [vmem:[%s4 + $0x28] sm:$0xff]
  %v2310 = vld [vmem:[%s4 + $0x30] sm:$0xff]
  %v2311 = vld [vmem:[%s4 + $0x38] sm:$0xff]
  %v2312 = vld [vmem:[%s4 + $0x40] sm:$0xff]
  %v2313 = vld [vmem:[%s4 + $0x48] sm:$0xff]
  %v2314 = vld [vmem:[%s4 + $0x50] sm:$0xff]
  %v2315 = vld [vmem:[%s4 + $0x58] sm:$0xff]
  %v2316 = vld [vmem:[%s4 + $0x60] sm:$0xff]
  %v2317 = vld [vmem:[%s4 + $0x68] sm:$0xff]
  %v2318 = vld [vmem:[%s4 + $0x70] sm:$0xff]
  %v2319 = vld [vmem:[%s4 + $0x78] sm:$0xff]
  %v2320 = vld [vmem:[%s4 + $0x80] sm:$0xff]
  %v2321 = vld [vmem:[%s4 + $0x88] sm:$0xff]
  %v2322 = vld [vmem:[%s4 + $0x90] sm:$0xff]
  %v2323 = vld [vmem:[%s4 + $0x98] sm:$0xff]
  %v2324 = vld [vmem:[%s4 + $0xa0] sm:$0xff]
  %v2325 = vld [vmem:[%s4 + $0xa8] sm:$0xff]
  %v2326 = vld [vmem:[%s4 + $0xb0] sm:$0xff]
  %v2327 = vld [vmem:[%s4 + $0xb8] sm:$0xff]
  %v2328 = vld [vmem:[%s4 + $0xc0] sm:$0xff]
  %v2329 = vld [vmem:[%s4 + $0xc8] sm:$0xff]
  %v2330 = vld [vmem:[%s4 + $0xd0] sm:$0xff]
  %v2331 = vld [vmem:[%s4 + $0xd8] sm:$0xff]
  %v2332 = vld [vmem:[%s4 + $0xe0] sm:$0xff]
  %v2333 = vld [vmem:[%s4 + $0xe8] sm:$0xff]
  %v2334 = vld [vmem:[%s4 + $0xf0] sm:$0xff]
  %v2335 = vld [vmem:[%s4 + $0xf8] sm:$0xff]
  %v2336 = vld [vmem:[%s4 + $0x100] sm:$0xff]
  %v2337 = vld [vmem:[%s4 + $0x108] sm:$0xff]
  %v2338 = vld [vmem:[%s4 + $0x110] sm:$0xff]
  %v2339 = vld [vmem:[%s4 + $0x118] sm:$0xff]
  %v2340 = vld [vmem:[%s4 + $0x120] sm:$0xff]
  %v2341 = vld [vmem:[%s4 + $0x128] sm:$0xff]
  %v2342 = vld [vmem:[%s4 + $0x130] sm:$0xff]
  %v2343 = vld [vmem:[%s4 + $0x138] sm:$0xff]
  %v2344 = vld [vmem:[%s4 + $0x140] sm:$0xff]
  %v2345 = vld [vmem:[%s4 + $0x148] sm:$0xff]
  %v2346 = vld [vmem:[%s4 + $0x150] sm:$0xff]
  %v2347 = vld [vmem:[%s4 + $0x158] sm:$0xff]
  %v2348 = vld [vmem:[%s4 + $0x160] sm:$0xff]
  %v2349 = vld [vmem:[%s4 + $0x168] sm:$0xff]
  %v2350 = vld [vmem:[%s4 + $0x170] sm:$0xff]
  %v2351 = vld [vmem:[%s4 + $0x178] sm:$0xff]
  %v2352 = vld [vmem:[%s4 + $0x180] sm:$0xff]
  %v2353 = vld [vmem:[%s4 + $0x188] sm:$0xff]
  %v2354 = vld [vmem:[%s4 + $0x190] sm:$0xff]
  %v2355 = vld [vmem:[%s4 + $0x198] sm:$0xff]
  %v2356 = vld [vmem:[%s4 + $0x1a0] sm:$0xff]
  %v2357 = vld [vmem:[%s4 + $0x1a8] sm:$0xff]
  %v2358 = vld [vmem:[%s4 + $0x1b0] sm:$0xff]
  %v2359 = vld [vmem:[%s4 + $0x1b8] sm:$0xff]
  %v2360 = vld [vmem:[%s4 + $0x1c0] sm:$0xff]
  %v2361 = vld [vmem:[%s4 + $0x1c8] sm:$0xff]
  %v2362 = vld [vmem:[%s4 + $0x1d0] sm:$0xff]
  %v2363 = vld [vmem:[%s4 + $0x1d8] sm:$0xff]
  %v2364 = vld [vmem:[%s4 + $0x1e0] sm:$0xff]
  %v2365 = vld [vmem:[%s4 + $0x1e8] sm:$0xff]
  %v2366 = vld [vmem:[%s4 + $0x1f0] sm:$0xff]
  %v2367 = vld [vmem:[%s4 + $0x1f8] sm:$0xff]
  %v2368 = vld [vmem:[%s6] sm:$0xf]
  %v2370 = vlaneseq
  %v2371 = vshrl.u32 %v2370, 7
  %v2372 = vsub.s32 0, %v2371
  %v2373 = vrot.slane %v2368, %v2372
  %v2374 = vlaneseq
  %v2375 = vshrl.u32 %v2374, 7
  %v2376 = vsub.s32 1, %v2375
  %v2377 = vrot.slane %v2368, %v2376
  %v2378 = vlaneseq
  %v2379 = vshrl.u32 %v2378, 7
  %v2380 = vsub.s32 2, %v2379
  %v2381 = vrot.slane %v2368, %v2380
  %v2382 = vlaneseq
  %v2383 = vshrl.u32 %v2382, 7
  %v2384 = vsub.s32 3, %v2383
  %v2385 = vrot.slane %v2368, %v2384
  %2390 = vmatprep.subr.mxu0 %v2305
  %2391 = vmatpush1.msra.mxu0 %v2304
  %2392 = vmatprep.subr.mxu0 %v2309
  %2393 = vmatpush1.msra.mxu0 %v2308
  %2394 = vmatprep.subr.mxu0 %v2313
  %2395 = vmatpush1.msra.mxu0 %v2312
  %2396 = vmatprep.subr.mxu0 %v2317
  %2397 = vmatpush1.msra.mxu0 %v2316
  %2398 = vmatprep.subr.mxu0 %v2321
  %2399 = vmatpush1.msra.mxu0 %v2320
  %2400 = vmatprep.subr.mxu0 %v2325
  %2401 = vmatpush1.msra.mxu0 %v2324
  %2402 = vmatprep.subr.mxu0 %v2329
  %2403 = vmatpush1.msra.mxu0 %v2328
  %2404 = vmatprep.subr.mxu0 %v2333
  %2405 = vmatpush1.msra.mxu0 %v2332
  %2406 = vmatprep.subr.mxu0 %v2337
  %2407 = vmatpush1.msra.mxu0 %v2336
  %2408 = vmatprep.subr.mxu0 %v2341
  %2409 = vmatpush1.msra.mxu0 %v2340
  %2410 = vmatprep.subr.mxu0 %v2345
  %2411 = vmatpush1.msra.mxu0 %v2344
  %2412 = vmatprep.subr.mxu0 %v2349
  %2413 = vmatpush1.msra.mxu0 %v2348
  %2414 = vmatprep.subr.mxu0 %v2353
  %2415 = vmatpush1.msra.mxu0 %v2352
  %2416 = vmatprep.subr.mxu0 %v2357
  %2417 = vmatpush1.msra.mxu0 %v2356
  %2418 = vmatprep.subr.mxu0 %v2361
  %2419 = vmatpush1.msra.mxu0 %v2360
  %2420 = vmatprep.subr.mxu0 %v2365
  %2421 = vmatpush1.msra.mxu0 %v2364
  %2422 = vmatprep.subr.mxu0 0.0
  %2423 = vmatpush1.msra.mxu0 0.0
  %2424 = vmatprep.subr.mxu0 0.0
  %2425 = vmatpush1.msra.mxu0 0.0
  %2426 = vmatprep.subr.mxu0 0.0
  %2427 = vmatpush1.msra.mxu0 0.0
  %2428 = vmatprep.subr.mxu0 0.0
  %2429 = vmatpush1.msra.mxu0 0.0
  %2430 = vmatprep.subr.mxu0 0.0
  %2431 = vmatpush1.msra.mxu0 0.0
  %2432 = vmatprep.subr.mxu0 0.0
  %2433 = vmatpush1.msra.mxu0 0.0
  %2434 = vmatprep.subr.mxu0 0.0
  %2435 = vmatpush1.msra.mxu0 0.0
  %2436 = vmatprep.subr.mxu0 0.0
  %2437 = vmatpush1.msra.mxu0 0.0
  %2438 = vmatprep.subr.mxu0 0.0
  %2439 = vmatpush1.msra.mxu0 0.0
  %2440 = vmatprep.subr.mxu0 0.0
  %2441 = vmatpush1.msra.mxu0 0.0
  %2442 = vmatprep.subr.mxu0 0.0
  %2443 = vmatpush1.msra.mxu0 0.0
  %2444 = vmatprep.subr.mxu0 0.0
  %2445 = vmatpush1.msra.mxu0 0.0
  %2446 = vmatprep.subr.mxu0 0.0
  %2447 = vmatpush1.msra.mxu0 0.0
  %2448 = vmatprep.subr.mxu0 0.0
  %2449 = vmatpush1.msra.mxu0 0.0
  %2450 = vmatprep.subr.mxu0 0.0
  %2451 = vmatpush1.msra.mxu0 0.0
  %2452 = vmatprep.subr.mxu0 0.0
  %2453 = vmatpush1.msra.mxu0 0.0
  %2454 = vmatprep.mubr.f32.mxu0 0.0
  %2455 = vmatmul.mubr.f32.gmra.mrb[0].mxu0 %v2296
  %v2456 = vpop.f32.mrb[0].mxu0
  %v2457 = vadd.f32 %v2373, %v2456
  %v2458 = vpop.f32.mrb[0].mxu0
  %v2459 = vadd.f32 %v2377, %v2458
  %2460 = vmatprep.mubr.f32.mxu0 0.0
  %2461 = vmatmul.mubr.f32.gmra.mrb[0].mxu0 %v2297
  %v2462 = vpop.f32.mrb[0].mxu0
  %v2463 = vadd.f32 %v2373, %v2462
  %v2464 = vpop.f32.mrb[0].mxu0
  %v2465 = vadd.f32 %v2377, %v2464
  %2466 = vmatprep.mubr.f32.mxu0 0.0
  %2467 = vmatmul.mubr.f32.gmra.mrb[0].mxu0 %v2298
  %v2468 = vpop.f32.mrb[0].mxu0
  %v2469 = vadd.f32 %v2373, %v2468
  %v2470 = vpop.f32.mrb[0].mxu0
  %v2471 = vadd.f32 %v2377, %v2470
  %2472 = vmatprep.mubr.f32.mxu0 0.0
  %2473 = vmatmul.mubr.f32.gmra.mrb[0].mxu0 %v2299
  %v2474 = vpop.f32.mrb[0].mxu0
  %v2475 = vadd.f32 %v2373, %v2474
  %v2476 = vpop.f32.mrb[0].mxu0
  %v2477 = vadd.f32 %v2377, %v2476
  %2478 = vmatprep.mubr.f32.mxu0 0.0
  %2479 = vmatmul.mubr.f32.gmra.mrb[0].mxu0 %v2300
  %v2480 = vpop.f32.mrb[0].mxu0
  %v2481 = vadd.f32 %v2373, %v2480
  %v2482 = vpop.f32.mrb[0].mxu0
  %v2483 = vadd.f32 %v2377, %v2482
  %2484 = vmatprep.mubr.f32.mxu0 0.0
  %2485 = vmatmul.mubr.f32.gmra.mrb[0].mxu0 %v2301
  %v2486 = vpop.f32.mrb[0].mxu0
  %v2487 = vadd.f32 %v2373, %v2486
  %v2488 = vpop.f32.mrb[0].mxu0
  %v2489 = vadd.f32 %v2377, %v2488
  %2490 = vmatprep.mubr.f32.mxu0 0.0
  %2491 = vmatmul.mubr.f32.gmra.mrb[0].mxu0 %v2302
  %v2492 = vpop.f32.mrb[0].mxu0
  %v2493 = vadd.f32 %v2373, %v2492
  %v2494 = vpop.f32.mrb[0].mxu0
  %v2495 = vadd.f32 %v2377, %v2494
  %2496 = vmatprep.mubr.f32.mxu0 0.0
  %2497 = vmatmul.mubr.f32.gmra.mrb[0].mxu0 %v2303
  %v2498 = vpop.f32.mrb[0].mxu0
  %v2499 = vadd.f32 %v2373, %v2498
  %v2500 = vpop.f32.mrb[0].mxu0
  %v2501 = vadd.f32 %v2377, %v2500
  %2502 = vdwg.mxu0
  %2503 = vmatprep.subr.mxu0 %v2307
  %2504 = vmatpush1.msra.mxu0 %v2306
  %2505 = vmatprep.subr.mxu0 %v2311
  %2506 = vmatpush1.msra.mxu0 %v2310
  %2507 = vmatprep.subr.mxu0 %v2315
  %2508 = vmatpush1.msra.mxu0 %v2314
  %2509 = vmatprep.subr.mxu0 %v2319
  %2510 = vmatpush1.msra.mxu0 %v2318
  %2511 = vmatprep.subr.mxu0 %v2323
  %2512 = vmatpush1.msra.mxu0 %v2322
  %2513 = vmatprep.subr.mxu0 %v2327
  %2514 = vmatpush1.msra.mxu0 %v2326
  %2515 = vmatprep.subr.mxu0 %v2331
  %2516 = vmatpush1.msra.mxu0 %v2330
  %2517 = vmatprep.subr.mxu0 %v2335
  %2518 = vmatpush1.msra.mxu0 %v2334
  %2519 = vmatprep.subr.mxu0 %v2339
  %2520 = vmatpush1.msra.mxu0 %v2338
  %2521 = vmatprep.subr.mxu0 %v2343
  %2522 = vmatpush1.msra.mxu0 %v2342
  %2523 = vmatprep.subr.mxu0 %v2347
  %2524 = vmatpush1.msra.mxu0 %v2346
  %2525 = vmatprep.subr.mxu0 %v2351
  %2526 = vmatpush1.msra.mxu0 %v2350
  %2527 = vmatprep.subr.mxu0 %v2355
  %2528 = vmatpush1.msra.mxu0 %v2354
  %2529 = vmatprep.subr.mxu0 %v2359
  %2530 = vmatpush1.msra.mxu0 %v2358
  %2531 = vmatprep.subr.mxu0 %v2363
  %2532 = vmatpush1.msra.mxu0 %v2362
  %2533 = vmatprep.subr.mxu0 %v2367
  %2534 = vmatpush1.msra.mxu0 %v2366
  %2535 = vmatprep.subr.mxu0 0.0
  %2536 = vmatpush1.msra.mxu0 0.0
  %2537 = vmatprep.subr.mxu0 0.0
  %2538 = vmatpush1.msra.mxu0 0.0
  %2539 = vmatprep.subr.mxu0 0.0
  %2540 = vmatpush1.msra.mxu0 0.0
  %2541 = vmatprep.subr.mxu0 0.0
  %2542 = vmatpush1.msra.mxu0 0.0
  %2543 = vmatprep.subr.mxu0 0.0
  %2544 = vmatpush1.msra.mxu0 0.0
  %2545 = vmatprep.subr.mxu0 0.0
  %2546 = vmatpush1.msra.mxu0 0.0
  %2547 = vmatprep.subr.mxu0 0.0
  %2548 = vmatpush1.msra.mxu0 0.0
  %2549 = vmatprep.subr.mxu0 0.0
  %2550 = vmatpush1.msra.mxu0 0.0
  %2551 = vmatprep.subr.mxu0 0.0
  %2552 = vmatpush1.msra.mxu0 0.0
  %2553 = vmatprep.subr.mxu0 0.0
  %2554 = vmatpush1.msra.mxu0 0.0
  %2555 = vmatprep.subr.mxu0 0.0
  %2556 = vmatpush1.msra.mxu0 0.0
  %2557 = vmatprep.subr.mxu0 0.0
  %2558 = vmatpush1.msra.mxu0 0.0
  %2559 = vmatprep.subr.mxu0 0.0
  %2560 = vmatpush1.msra.mxu0 0.0
  %2561 = vmatprep.subr.mxu0 0.0
  %2562 = vmatpush1.msra.mxu0 0.0
  %2563 = vmatprep.subr.mxu0 0.0
  %2564 = vmatpush1.msra.mxu0 0.0
  %2565 = vmatprep.subr.mxu0 0.0
  %2566 = vmatpush1.msra.mxu0 0.0
  %2567 = vmatprep.mubr.f32.mxu0 0.0
  %2568 = vmatmul.mubr.f32.gmra.mrb[0].mxu0 %v2296
  %v2569 = vpop.f32.mrb[0].mxu0
  %v2570 = vadd.f32 %v2381, %v2569
  %v2571 = vpop.f32.mrb[0].mxu0
  %v2572 = vadd.f32 %v2385, %v2571
  %2573 = vmatprep.mubr.f32.mxu0 0.0
  %2574 = vmatmul.mubr.f32.gmra.mrb[0].mxu0 %v2297
  %v2575 = vpop.f32.mrb[0].mxu0
  %v2576 = vadd.f32 %v2381, %v2575
  %v2577 = vpop.f32.mrb[0].mxu0
  %v2578 = vadd.f32 %v2385, %v2577
  %2579 = vmatprep.mubr.f32.mxu0 0.0
  %2580 = vmatmul.mubr.f32.gmra.mrb[0].mxu0 %v2298
  %v2581 = vpop.f32.mrb[0].mxu0
  %v2582 = vadd.f32 %v2381, %v2581
  %v2583 = vpop.f32.mrb[0].mxu0
  %v2584 = vadd.f32 %v2385, %v2583
  %2585 = vmatprep.mubr.f32.mxu0 0.0
  %2586 = vmatmul.mubr.f32.gmra.mrb[0].mxu0 %v2299
  %v2587 = vpop.f32.mrb[0].mxu0
  %v2588 = vadd.f32 %v2381, %v2587
  %v2589 = vpop.f32.mrb[0].mxu0
  %v2590 = vadd.f32 %v2385, %v2589
  %2591 = vmatprep.mubr.f32.mxu0 0.0
  %2592 = vmatmul.mubr.f32.gmra.mrb[0].mxu0 %v2300
  %v2593 = vpop.f32.mrb[0].mxu0
  %v2594 = vadd.f32 %v2381, %v2593
  %v2595 = vpop.f32.mrb[0].mxu0
  %v2596 = vadd.f32 %v2385, %v2595
  %2597 = vmatprep.mubr.f32.mxu0 0.0
  %2598 = vmatmul.mubr.f32.gmra.mrb[0].mxu0 %v2301
  %v2599 = vpop.f32.mrb[0].mxu0
  %v2600 = vadd.f32 %v2381, %v2599
  %v2601 = vpop.f32.mrb[0].mxu0
  %v2602 = vadd.f32 %v2385, %v2601
  %2603 = vmatprep.mubr.f32.mxu0 0.0
  %2604 = vmatmul.mubr.f32.gmra.mrb[0].mxu0 %v2302
  %v2605 = vpop.f32.mrb[0].mxu0
  %v2606 = vadd.f32 %v2381, %v2605
  %v2607 = vpop.f32.mrb[0].mxu0
  %v2608 = vadd.f32 %v2385, %v2607
  %2609 = vmatprep.mubr.f32.mxu0 0.0
  %2610 = vmatmul.mubr.f32.gmra.mrb[0].mxu0 %v2303
  %v2611 = vpop.f32.mrb[0].mxu0
  %v2612 = vadd.f32 %v2381, %v2611
  %v2613 = vpop.f32.mrb[0].mxu0
  %v2614 = vadd.f32 %v2385, %v2613
  %2615 = vdwg.mxu0
  %2616 = vst [vmem:[#allocation2] sm:$0xff] %v2457
  %2617 = vst [vmem:[#allocation2 + $0x8] sm:$0xff] %v2459
  %2618 = vst [vmem:[#allocation2 + $0x10] sm:$0xff] %v2570
  %2619 = vst [vmem:[#allocation2 + $0x18] sm:$0xff] %v2572
  %2620 = vst [vmem:[#allocation2 + $0x20] sm:$0xff] %v2463
  %2621 = vst [vmem:[#allocation2 + $0x28] sm:$0xff] %v2465
  %2622 = vst [vmem:[#allocation2 + $0x30] sm:$0xff] %v2576
  %2623 = vst [vmem:[#allocation2 + $0x38] sm:$0xff] %v2578
  %2624 = vst [vmem:[#allocation2 + $0x40] sm:$0xff] %v2469
  %2625 = vst [vmem:[#allocation2 + $0x48] sm:$0xff] %v2471
  %2626 = vst [vmem:[#allocation2 + $0x50] sm:$0xff] %v2582
  %2627 = vst [vmem:[#allocation2 + $0x58] sm:$0xff] %v2584
  %2628 = vst [vmem:[#allocation2 + $0x60] sm:$0xff] %v2475
  %2629 = vst [vmem:[#allocation2 + $0x68] sm:$0xff] %v2477
  %2630 = vst [vmem:[#allocation2 + $0x70] sm:$0xff] %v2588
  %2631 = vst [vmem:[#allocation2 + $0x78] sm:$0xff] %v2590
  %2632 = vst [vmem:[#allocation2 + $0x80] sm:$0xff] %v2481
  %2633 = vst [vmem:[#allocation2 + $0x88] sm:$0xff] %v2483
  %2634 = vst [vmem:[#allocation2 + $0x90] sm:$0xff] %v2594
  %2635 = vst [vmem:[#allocation2 + $0x98] sm:$0xff] %v2596
  %2636 = vst [vmem:[#allocation2 + $0xa0] sm:$0xff] %v2487
  %2637 = vst [vmem:[#allocation2 + $0xa8] sm:$0xff] %v2489
  %2638 = vst [vmem:[#allocation2 + $0xb0] sm:$0xff] %v2600
  %2639 = vst [vmem:[#allocation2 + $0xb8] sm:$0xff] %v2602
  %2640 = vst [vmem:[#allocation2 + $0xc0] sm:$0xff] %v2493
  %2641 = vst [vmem:[#allocation2 + $0xc8] sm:$0xff] %v2495
  %2642 = vst [vmem:[#allocation2 + $0xd0] sm:$0xff] %v2606
  %2643 = vst [vmem:[#allocation2 + $0xd8] sm:$0xff] %v2608
  %2644 = vst [vmem:[#allocation2 + $0xe0] sm:$0xff] %v2499
  %2645 = vst [vmem:[#allocation2 + $0xe8] sm:$0xff] %v2501
  %2646 = vst [vmem:[#allocation2 + $0xf0] sm:$0xff] %v2612
  %2647 = vst [vmem:[#allocation2 + $0xf8] sm:$0xff] %v2614
  %v2648 = vld [vmem:[%s355] sm:$0xff]
  %v2649 = vld [vmem:[%s355 + $0x8] sm:$0xff]
  %v2650 = vld [vmem:[%s355 + $0x10] sm:$0xff]
  %v2651 = vld [vmem:[%s355 + $0x18] sm:$0xff]
  %v2652 = vld [vmem:[%s5] sm:$0xff]
  %v2653 = vld [vmem:[%s5 + $0x8] sm:$0xff]
  %v2654 = vld [vmem:[%s5 + $0x10] sm:$0xff]
  %v2655 = vld [vmem:[%s5 + $0x18] sm:$0xff]
  %v2656 = vld [vmem:[%s5 + $0x20] sm:$0xff]
  %v2657 = vld [vmem:[%s5 + $0x28] sm:$0xff]
  %v2658 = vld [vmem:[%s5 + $0x30] sm:$0xff]
  %v2659 = vld [vmem:[%s5 + $0x38] sm:$0xff]
  %v2660 = vld [vmem:[%s5 + $0x40] sm:$0xff]
  %v2661 = vld [vmem:[%s5 + $0x48] sm:$0xff]
  %v2662 = vld [vmem:[%s5 + $0x50] sm:$0xff]
  %v2663 = vld [vmem:[%s5 + $0x58] sm:$0xff]
  %v2664 = vld [vmem:[%s5 + $0x60] sm:$0xff]
  %v2665 = vld [vmem:[%s5 + $0x68] sm:$0xff]
  %v2666 = vld [vmem:[%s5 + $0x70] sm:$0xff]
  %v2667 = vld [vmem:[%s5 + $0x78] sm:$0xff]
  %v2668 = vld [vmem:[%s5 + $0x80] sm:$0xff]
  %v2669 = vld [vmem:[%s5 + $0x88] sm:$0xff]
  %v2670 = vld [vmem:[%s5 + $0x90] sm:$0xff]
  %v2671 = vld [vmem:[%s5 + $0x98] sm:$0xff]
  %v2672 = vld [vmem:[%s5 + $0xa0] sm:$0xff]
  %v2673 = vld [vmem:[%s5 + $0xa8] sm:$0xff]
  %v2674 = vld [vmem:[%s5 + $0xb0] sm:$0xff]
  %v2675 = vld [vmem:[%s5 + $0xb8] sm:$0xff]
  %v2676 = vld [vmem:[%s5 + $0xc0] sm:$0xff]
  %v2677 = vld [vmem:[%s5 + $0xc8] sm:$0xff]
  %v2678 = vld [vmem:[%s5 + $0xd0] sm:$0xff]
  %v2679 = vld [vmem:[%s5 + $0xd8] sm:$0xff]
  %v2680 = vld [vmem:[%s5 + $0xe0] sm:$0xff]
  %v2681 = vld [vmem:[%s5 + $0xe8] sm:$0xff]
  %v2682 = vld [vmem:[%s5 + $0xf0] sm:$0xff]
  %v2683 = vld [vmem:[%s5 + $0xf8] sm:$0xff]
  %v2684 = vld [vmem:[%s5 + $0x100] sm:$0xff]
  %v2685 = vld [vmem:[%s5 + $0x108] sm:$0xff]
  %v2686 = vld [vmem:[%s5 + $0x110] sm:$0xff]
  %v2687 = vld [vmem:[%s5 + $0x118] sm:$0xff]
  %v2688 = vld [vmem:[%s5 + $0x120] sm:$0xff]
  %v2689 = vld [vmem:[%s5 + $0x128] sm:$0xff]
  %v2690 = vld [vmem:[%s5 + $0x130] sm:$0xff]
  %v2691 = vld [vmem:[%s5 + $0x138] sm:$0xff]
  %v2692 = vld [vmem:[%s5 + $0x140] sm:$0xff]
  %v2693 = vld [vmem:[%s5 + $0x148] sm:$0xff]
  %v2694 = vld [vmem:[%s5 + $0x150] sm:$0xff]
  %v2695 = vld [vmem:[%s5 + $0x158] sm:$0xff]
  %v2696 = vld [vmem:[%s5 + $0x160] sm:$0xff]
  %v2697 = vld [vmem:[%s5 + $0x168] sm:$0xff]
  %v2698 = vld [vmem:[%s5 + $0x170] sm:$0xff]
  %v2699 = vld [vmem:[%s5 + $0x178] sm:$0xff]
  %v2700 = vld [vmem:[%s5 + $0x180] sm:$0xff]
  %v2701 = vld [vmem:[%s5 + $0x188] sm:$0xff]
  %v2702 = vld [vmem:[%s5 + $0x190] sm:$0xff]
  %v2703 = vld [vmem:[%s5 + $0x198] sm:$0xff]
  %v2704 = vld [vmem:[%s5 + $0x1a0] sm:$0xff]
  %v2705 = vld [vmem:[%s5 + $0x1a8] sm:$0xff]
  %v2706 = vld [vmem:[%s5 + $0x1b0] sm:$0xff]
  %v2707 = vld [vmem:[%s5 + $0x1b8] sm:$0xff]
  %v2708 = vld [vmem:[%s5 + $0x1c0] sm:$0xff]
  %v2709 = vld [vmem:[%s5 + $0x1c8] sm:$0xff]
  %v2710 = vld [vmem:[%s5 + $0x1d0] sm:$0xff]
  %v2711 = vld [vmem:[%s5 + $0x1d8] sm:$0xff]
  %v2712 = vld [vmem:[%s5 + $0x1e0] sm:$0xff]
  %v2713 = vld [vmem:[%s5 + $0x1e8] sm:$0xff]
  %v2714 = vld [vmem:[%s5 + $0x1f0] sm:$0xff]
  %v2715 = vld [vmem:[%s5 + $0x1f8] sm:$0xff]
  %2716 = vmatprep.subr.mxu0 %v2653
  %2717 = vmatpush1.msra.mxu0 %v2652
  %2718 = vmatprep.subr.mxu0 %v2657
  %2719 = vmatpush1.msra.mxu0 %v2656
  %2720 = vmatprep.subr.mxu0 %v2661
  %2721 = vmatpush1.msra.mxu0 %v2660
  %2722 = vmatprep.subr.mxu0 %v2665
  %2723 = vmatpush1.msra.mxu0 %v2664
  %2724 = vmatprep.subr.mxu0 %v2669
  %2725 = vmatpush1.msra.mxu0 %v2668
  %2726 = vmatprep.subr.mxu0 %v2673
  %2727 = vmatpush1.msra.mxu0 %v2672
  %2728 = vmatprep.subr.mxu0 %v2677
  %2729 = vmatpush1.msra.mxu0 %v2676
  %2730 = vmatprep.subr.mxu0 %v2681
  %2731 = vmatpush1.msra.mxu0 %v2680
  %2732 = vmatprep.subr.mxu0 %v2685
  %2733 = vmatpush1.msra.mxu0 %v2684
  %2734 = vmatprep.subr.mxu0 %v2689
  %2735 = vmatpush1.msra.mxu0 %v2688
  %2736 = vmatprep.subr.mxu0 %v2693
  %2737 = vmatpush1.msra.mxu0 %v2692
  %2738 = vmatprep.subr.mxu0 %v2697
  %2739 = vmatpush1.msra.mxu0 %v2696
  %2740 = vmatprep.subr.mxu0 %v2701
  %2741 = vmatpush1.msra.mxu0 %v2700
  %2742 = vmatprep.subr.mxu0 %v2705
  %2743 = vmatpush1.msra.mxu0 %v2704
  %2744 = vmatprep.subr.mxu0 %v2709
  %2745 = vmatpush1.msra.mxu0 %v2708
  %2746 = vmatprep.subr.mxu0 %v2713
  %2747 = vmatpush1.msra.mxu0 %v2712
  %2748 = vmatprep.subr.mxu0 0.0
  %2749 = vmatpush1.msra.mxu0 0.0
  %2750 = vmatprep.subr.mxu0 0.0
  %2751 = vmatpush1.msra.mxu0 0.0
  %2752 = vmatprep.subr.mxu0 0.0
  %2753 = vmatpush1.msra.mxu0 0.0
  %2754 = vmatprep.subr.mxu0 0.0
  %2755 = vmatpush1.msra.mxu0 0.0
  %2756 = vmatprep.subr.mxu0 0.0
  %2757 = vmatpush1.msra.mxu0 0.0
  %2758 = vmatprep.subr.mxu0 0.0
  %2759 = vmatpush1.msra.mxu0 0.0
  %2760 = vmatprep.subr.mxu0 0.0
  %2761 = vmatpush1.msra.mxu0 0.0
  %2762 = vmatprep.subr.mxu0 0.0
  %2763 = vmatpush1.msra.mxu0 0.0
  %2764 = vmatprep.subr.mxu0 0.0
  %2765 = vmatpush1.msra.mxu0 0.0
  %2766 = vmatprep.subr.mxu0 0.0
  %2767 = vmatpush1.msra.mxu0 0.0
  %2768 = vmatprep.subr.mxu0 0.0
  %2769 = vmatpush1.msra.mxu0 0.0
  %2770 = vmatprep.subr.mxu0 0.0
  %2771 = vmatpush1.msra.mxu0 0.0
  %2772 = vmatprep.subr.mxu0 0.0
  %2773 = vmatpush1.msra.mxu0 0.0
  %2774 = vmatprep.subr.mxu0 0.0
  %2775 = vmatpush1.msra.mxu0 0.0
  %2776 = vmatprep.subr.mxu0 0.0
  %2777 = vmatpush1.msra.mxu0 0.0
  %2778 = vmatprep.subr.mxu0 0.0
  %2779 = vmatpush1.msra.mxu0 0.0
  %2780 = vmatprep.mubr.f32.mxu0 0.0
  %2781 = vmatmul.mubr.f32.gmra.mrb[0].mxu0 0.0
  %v2782 = vpop.f32.mrb[0].mxu0
  %v2783 = vadd.f32 0.0, %v2782
  %v2784 = vpop.f32.mrb[0].mxu0
  %v2785 = vadd.f32 0.0, %v2784
  %2786 = vdwg.mxu0
  %2787 = vmatprep.subr.mxu0 %v2655
  %2788 = vmatpush1.msra.mxu0 %v2654
  %2789 = vmatprep.subr.mxu0 %v2659
  %2790 = vmatpush1.msra.mxu0 %v2658
  %2791 = vmatprep.subr.mxu0 %v2663
  %2792 = vmatpush1.msra.mxu0 %v2662
  %2793 = vmatprep.subr.mxu0 %v2667
  %2794 = vmatpush1.msra.mxu0 %v2666
  %2795 = vmatprep.subr.mxu0 %v2671
  %2796 = vmatpush1.msra.mxu0 %v2670
  %2797 = vmatprep.subr.mxu0 %v2675
  %2798 = vmatpush1.msra.mxu0 %v2674
  %2799 = vmatprep.subr.mxu0 %v2679
  %2800 = vmatpush1.msra.mxu0 %v2678
  %2801 = vmatprep.subr.mxu0 %v2683
  %2802 = vmatpush1.msra.mxu0 %v2682
  %2803 = vmatprep.subr.mxu0 %v2687
  %2804 = vmatpush1.msra.mxu0 %v2686
  %2805 = vmatprep.subr.mxu0 %v2691
  %2806 = vmatpush1.msra.mxu0 %v2690
  %2807 = vmatprep.subr.mxu0 %v2695
  %2808 = vmatpush1.msra.mxu0 %v2694
  %2809 = vmatprep.subr.mxu0 %v2699
  %2810 = vmatpush1.msra.mxu0 %v2698
  %2811 = vmatprep.subr.mxu0 %v2703
  %2812 = vmatpush1.msra.mxu0 %v2702
  %2813 = vmatprep.subr.mxu0 %v2707
  %2814 = vmatpush1.msra.mxu0 %v2706
  %2815 = vmatprep.subr.mxu0 %v2711
  %2816 = vmatpush1.msra.mxu0 %v2710
  %2817 = vmatprep.subr.mxu0 %v2715
  %2818 = vmatpush1.msra.mxu0 %v2714
  %2819 = vmatprep.subr.mxu0 0.0
  %2820 = vmatpush1.msra.mxu0 0.0
  %2821 = vmatprep.subr.mxu0 0.0
  %2822 = vmatpush1.msra.mxu0 0.0
  %2823 = vmatprep.subr.mxu0 0.0
  %2824 = vmatpush1.msra.mxu0 0.0
  %2825 = vmatprep.subr.mxu0 0.0
  %2826 = vmatpush1.msra.mxu0 0.0
  %2827 = vmatprep.subr.mxu0 0.0
  %2828 = vmatpush1.msra.mxu0 0.0
  %2829 = vmatprep.subr.mxu0 0.0
  %2830 = vmatpush1.msra.mxu0 0.0
  %2831 = vmatprep.subr.mxu0 0.0
  %2832 = vmatpush1.msra.mxu0 0.0
  %2833 = vmatprep.subr.mxu0 0.0
  %2834 = vmatpush1.msra.mxu0 0.0
  %2835 = vmatprep.subr.mxu0 0.0
  %2836 = vmatpush1.msra.mxu0 0.0
  %2837 = vmatprep.subr.mxu0 0.0
  %2838 = vmatpush1.msra.mxu0 0.0
  %2839 = vmatprep.subr.mxu0 0.0
  %2840 = vmatpush1.msra.mxu0 0.0
  %2841 = vmatprep.subr.mxu0 0.0
  %2842 = vmatpush1.msra.mxu0 0.0
  %2843 = vmatprep.subr.mxu0 0.0
  %2844 = vmatpush1.msra.mxu0 0.0
  %2845 = vmatprep.subr.mxu0 0.0
  %2846 = vmatpush1.msra.mxu0 0.0
  %2847 = vmatprep.subr.mxu0 0.0
  %2848 = vmatpush1.msra.mxu0 0.0
  %2849 = vmatprep.subr.mxu0 0.0
  %2850 = vmatpush1.msra.mxu0 0.0
  %2851 = vmatprep.mubr.f32.mxu0 0.0
  %2852 = vmatmul.mubr.f32.gmra.mrb[0].mxu0 0.0
  %v2853 = vpop.f32.mrb[0].mxu0
  %v2854 = vadd.f32 0.0, %v2853
  %v2855 = vpop.f32.mrb[0].mxu0
  %v2856 = vadd.f32 0.0, %v2855
  %2857 = vdwg.mxu0
  %v2858 = vadd.f32 %v2648, %v2783
  %v2859 = vadd.f32 %v2649, %v2785
  %v2860 = vadd.f32 %v2650, %v2854
  %v2861 = vadd.f32 %v2651, %v2856
  %v2862 = vxor.u32 %v2858, 2147483648
  %v2863 = vmul.f32 %v2862, 1.442695
  %v2864 = vpow.pop %v2863
  %v2865 = vadd.f32 %v2864, 1.0
  %v2866 = vrcp.pop %v2865
  %v2867 = vmul.f32 1.0, %v2866
  %v2868 = vxor.u32 %v2859, 2147483648
  %v2869 = vmul.f32 %v2868, 1.442695
  %v2870 = vpow.pop %v2869
  %v2871 = vadd.f32 %v2870, 1.0
  %v2872 = vrcp.pop %v2871
  %v2873 = vmul.f32 1.0, %v2872
  %v2874 = vtanh.pop %v2860
  %v2875 = vxor.u32 %v2861, 2147483648
  %v2876 = vmul.f32 %v2875, 1.442695
  %v2877 = vpow.pop %v2876
  %v2878 = vadd.f32 %v2877, 1.0
  %v2879 = vrcp.pop %v2878
  %v2880 = vmul.f32 1.0, %v2879
  %v2881 = vmul.f32 %v2873, 0.0
  %v2882 = vmul.f32 %v2867, %v2874
  %v2883 = vadd.f32 %v2881, %v2882
  %v2884 = vtanh.pop %v2883
  %v2885 = vmul.f32 %v2880, %v2884
  %v2886 = vld [vmem:[%s597] sm:$0xff]
  %v2887 = vld [vmem:[%s597 + $0x8] sm:$0xff]
  %v2888 = vld [vmem:[%s597 + $0x10] sm:$0xff]
  %v2889 = vld [vmem:[%s597 + $0x18] sm:$0xff]
  %2890 = vmatprep.subr.mxu0 %v2653
  %2891 = vmatpush1.msra.mxu0 %v2652
  %2892 = vmatprep.subr.mxu0 %v2657
  %2893 = vmatpush1.msra.mxu0 %v2656
  %2894 = vmatprep.subr.mxu0 %v2661
  %2895 = vmatpush1.msra.mxu0 %v2660
  %2896 = vmatprep.subr.mxu0 %v2665
  %2897 = vmatpush1.msra.mxu0 %v2664
  %2898 = vmatprep.subr.mxu0 %v2669
  %2899 = vmatpush1.msra.mxu0 %v2668
  %2900 = vmatprep.subr.mxu0 %v2673
  %2901 = vmatpush1.msra.mxu0 %v2672
  %2902 = vmatprep.subr.mxu0 %v2677
  %2903 = vmatpush1.msra.mxu0 %v2676
  %2904 = vmatprep.subr.mxu0 %v2681
  %2905 = vmatpush1.msra.mxu0 %v2680
  %2906 = vmatprep.subr.mxu0 %v2685
  %2907 = vmatpush1.msra.mxu0 %v2684
  %2908 = vmatprep.subr.mxu0 %v2689
  %2909 = vmatpush1.msra.mxu0 %v2688
  %2910 = vmatprep.subr.mxu0 %v2693
  %2911 = vmatpush1.msra.mxu0 %v2692
  %2912 = vmatprep.subr.mxu0 %v2697
  %2913 = vmatpush1.msra.mxu0 %v2696
  %2914 = vmatprep.subr.mxu0 %v2701
  %2915 = vmatpush1.msra.mxu0 %v2700
  %2916 = vmatprep.subr.mxu0 %v2705
  %2917 = vmatpush1.msra.mxu0 %v2704
  %2918 = vmatprep.subr.mxu0 %v2709
  %2919 = vmatpush1.msra.mxu0 %v2708
  %2920 = vmatprep.subr.mxu0 %v2713
  %2921 = vmatpush1.msra.mxu0 %v2712
  %2922 = vmatprep.subr.mxu0 0.0
  %2923 = vmatpush1.msra.mxu0 0.0
  %2924 = vmatprep.subr.mxu0 0.0
  %2925 = vmatpush1.msra.mxu0 0.0
  %2926 = vmatprep.subr.mxu0 0.0
  %2927 = vmatpush1.msra.mxu0 0.0
  %2928 = vmatprep.subr.mxu0 0.0
  %2929 = vmatpush1.msra.mxu0 0.0
  %2930 = vmatprep.subr.mxu0 0.0
  %2931 = vmatpush1.msra.mxu0 0.0
  %2932 = vmatprep.subr.mxu0 0.0
  %2933 = vmatpush1.msra.mxu0 0.0
  %2934 = vmatprep.subr.mxu0 0.0
  %2935 = vmatpush1.msra.mxu0 0.0
  %2936 = vmatprep.subr.mxu0 0.0
  %2937 = vmatpush1.msra.mxu0 0.0
  %2938 = vmatprep.subr.mxu0 0.0
  %2939 = vmatpush1.msra.mxu0 0.0
  %2940 = vmatprep.subr.mxu0 0.0
  %2941 = vmatpush1.msra.mxu0 0.0
  %2942 = vmatprep.subr.mxu0 0.0
  %2943 = vmatpush1.msra.mxu0 0.0
  %2944 = vmatprep.subr.mxu0 0.0
  %2945 = vmatpush1.msra.mxu0 0.0
  %2946 = vmatprep.subr.mxu0 0.0
  %2947 = vmatpush1.msra.mxu0 0.0
  %2948 = vmatprep.subr.mxu0 0.0
  %2949 = vmatpush1.msra.mxu0 0.0
  %2950 = vmatprep.subr.mxu0 0.0
  %2951 = vmatpush1.msra.mxu0 0.0
  %2952 = vmatprep.subr.mxu0 0.0
  %2953 = vmatpush1.msra.mxu0 0.0
  %2954 = vmatprep.mubr.f32.mxu0 0.0
  %2955 = vmatmul.mubr.f32.gmra.mrb[0].mxu0 %v2885
  %v2956 = vpop.f32.mrb[0].mxu0
  %v2957 = vadd.f32 0.0, %v2956
  %v2958 = vpop.f32.mrb[0].mxu0
  %v2959 = vadd.f32 0.0, %v2958
  %2960 = vdwg.mxu0
  %2961 = vmatprep.subr.mxu0 %v2655
  %2962 = vmatpush1.msra.mxu0 %v2654
  %2963 = vmatprep.subr.mxu0 %v2659
  %2964 = vmatpush1.msra.mxu0 %v2658
  %2965 = vmatprep.subr.mxu0 %v2663
  %2966 = vmatpush1.msra.mxu0 %v2662
  %2967 = vmatprep.subr.mxu0 %v2667
  %2968 = vmatpush1.msra.mxu0 %v2666
  %2969 = vmatprep.subr.mxu0 %v2671
  %2970 = vmatpush1.msra.mxu0 %v2670
  %2971 = vmatprep.subr.mxu0 %v2675
  %2972 = vmatpush1.msra.mxu0 %v2674
  %2973 = vmatprep.subr.mxu0 %v2679
  %2974 = vmatpush1.msra.mxu0 %v2678
  %2975 = vmatprep.subr.mxu0 %v2683
  %2976 = vmatpush1.msra.mxu0 %v2682
  %2977 = vmatprep.subr.mxu0 %v2687
  %2978 = vmatpush1.msra.mxu0 %v2686
  %2979 = vmatprep.subr.mxu0 %v2691
  %2980 = vmatpush1.msra.mxu0 %v2690
  %2981 = vmatprep.subr.mxu0 %v2695
  %2982 = vmatpush1.msra.mxu0 %v2694
  %2983 = vmatprep.subr.mxu0 %v2699
  %2984 = vmatpush1.msra.mxu0 %v2698
  %2985 = vmatprep.subr.mxu0 %v2703
  %2986 = vmatpush1.msra.mxu0 %v2702
  %2987 = vmatprep.subr.mxu0 %v2707
  %2988 = vmatpush1.msra.mxu0 %v2706
  %2989 = vmatprep.subr.mxu0 %v2711
  %2990 = vmatpush1.msra.mxu0 %v2710
  %2991 = vmatprep.subr.mxu0 %v2715
  %2992 = vmatpush1.msra.mxu0 %v2714
  %2993 = vmatprep.subr.mxu0 0.0
  %2994 = vmatpush1.msra.mxu0 0.0
  %2995 = vmatprep.subr.mxu0 0.0
  %2996 = vmatpush1.msra.mxu0 0.0
  %2997 = vmatprep.subr.mxu0 0.0
  %2998 = vmatpush1.msra.mxu0 0.0
  %2999 = vmatprep.subr.mxu0 0.0
  %3000 = vmatpush1.msra.mxu0 0.0
  %3001 = vmatprep.subr.mxu0 0.0
  %3002 = vmatpush1.msra.mxu0 0.0
  %3003 = vmatprep.subr.mxu0 0.0
  %3004 = vmatpush1.msra.mxu0 0.0
  %3005 = vmatprep.subr.mxu0 0.0
  %3006 = vmatpush1.msra.mxu0 0.0
  %3007 = vmatprep.subr.mxu0 0.0
  %3008 = vmatpush1.msra.mxu0 0.0
  %3009 = vmatprep.subr.mxu0 0.0
  %3010 = vmatpush1.msra.mxu0 0.0
  %3011 = vmatprep.subr.mxu0 0.0
  %3012 = vmatpush1.msra.mxu0 0.0
  %3013 = vmatprep.subr.mxu0 0.0
  %3014 = vmatpush1.msra.mxu0 0.0
  %3015 = vmatprep.subr.mxu0 0.0
  %3016 = vmatpush1.msra.mxu0 0.0
  %3017 = vmatprep.subr.mxu0 0.0
  %3018 = vmatpush1.msra.mxu0 0.0
  %3019 = vmatprep.subr.mxu0 0.0
  %3020 = vmatpush1.msra.mxu0 0.0
  %3021 = vmatprep.subr.mxu0 0.0
  %3022 = vmatpush1.msra.mxu0 0.0
  %3023 = vmatprep.subr.mxu0 0.0
  %3024 = vmatpush1.msra.mxu0 0.0
  %3025 = vmatprep.mubr.f32.mxu0 0.0
  %3026 = vmatmul.mubr.f32.gmra.mrb[0].mxu0 %v2885
  %v3027 = vpop.f32.mrb[0].mxu0
  %v3028 = vadd.f32 0.0, %v3027
  %v3029 = vpop.f32.mrb[0].mxu0
  %v3030 = vadd.f32 0.0, %v3029
  %3031 = vdwg.mxu0
  %v3032 = vadd.f32 %v2886, %v2957
  %v3033 = vadd.f32 %v2887, %v2959
  %v3034 = vadd.f32 %v2888, %v3028
  %v3035 = vadd.f32 %v2889, %v3030
  %v3036 = vxor.u32 %v3032, 2147483648
  %v3037 = vmul.f32 %v3036, 1.442695
  %v3038 = vpow.pop %v3037
  %v3039 = vadd.f32 %v3038, 1.0
  %v3040 = vrcp.pop %v3039
  %v3041 = vmul.f32 1.0, %v3040
  %v3042 = vxor.u32 %v3033, 2147483648
  %v3043 = vmul.f32 %v3042, 1.442695
  %v3044 = vpow.pop %v3043
  %v3045 = vadd.f32 %v3044, 1.0
  %v3046 = vrcp.pop %v3045
  %v3047 = vmul.f32 1.0, %v3046
  %v3048 = vtanh.pop %v3034
  %v3049 = vxor.u32 %v3035, 2147483648
  %v3050 = vmul.f32 %v3049, 1.442695
  %v3051 = vpow.pop %v3050
  %v3052 = vadd.f32 %v3051, 1.0
  %v3053 = vrcp.pop %v3052
  %v3054 = vmul.f32 1.0, %v3053
  %v3055 = vmul.f32 %v3047, %v2883
  %v3056 = vmul.f32 %v3041, %v3048
  %v3057 = vadd.f32 %v3055, %v3056
  %v3058 = vtanh.pop %v3057
  %v3059 = vmul.f32 %v3054, %v3058
  %v3060 = vld [vmem:[%s840] sm:$0xff]
  %v3061 = vld [vmem:[%s840 + $0x8] sm:$0xff]
  %v3062 = vld [vmem:[%s840 + $0x10] sm:$0xff]
  %v3063 = vld [vmem:[%s840 + $0x18] sm:$0xff]
  %3064 = vmatprep.subr.mxu0 %v2653
  %3065 = vmatpush1.msra.mxu0 %v2652
  %3066 = vmatprep.subr.mxu0 %v2657
  %3067 = vmatpush1.msra.mxu0 %v2656
  %3068 = vmatprep.subr.mxu0 %v2661
  %3069 = vmatpush1.msra.mxu0 %v2660
  %3070 = vmatprep.subr.mxu0 %v2665
  %3071 = vmatpush1.msra.mxu0 %v2664
  %3072 = vmatprep.subr.mxu0 %v2669
  %3073 = vmatpush1.msra.mxu0 %v2668
  %3074 = vmatprep.subr.mxu0 %v2673
  %3075 = vmatpush1.msra.mxu0 %v2672
  %3076 = vmatprep.subr.mxu0 %v2677
  %3077 = vmatpush1.msra.mxu0 %v2676
  %3078 = vmatprep.subr.mxu0 %v2681
  %3079 = vmatpush1.msra.mxu0 %v2680
  %3080 = vmatprep.subr.mxu0 %v2685
  %3081 = vmatpush1.msra.mxu0 %v2684
  %3082 = vmatprep.subr.mxu0 %v2689
  %3083 = vmatpush1.msra.mxu0 %v2688
  %3084 = vmatprep.subr.mxu0 %v2693
  %3085 = vmatpush1.msra.mxu0 %v2692
  %3086 = vmatprep.subr.mxu0 %v2697
  %3087 = vmatpush1.msra.mxu0 %v2696
  %3088 = vmatprep.subr.mxu0 %v2701
  %3089 = vmatpush1.msra.mxu0 %v2700
  %3090 = vmatprep.subr.mxu0 %v2705
  %3091 = vmatpush1.msra.mxu0 %v2704
  %3092 = vmatprep.subr.mxu0 %v2709
  %3093 = vmatpush1.msra.mxu0 %v2708
  %3094 = vmatprep.subr.mxu0 %v2713
  %3095 = vmatpush1.msra.mxu0 %v2712
  %3096 = vmatprep.subr.mxu0 0.0
  %3097 = vmatpush1.msra.mxu0 0.0
  %3098 = vmatprep.subr.mxu0 0.0
  %3099 = vmatpush1.msra.mxu0 0.0
  %3100 = vmatprep.subr.mxu0 0.0
  %3101 = vmatpush1.msra.mxu0 0.0
  %3102 = vmatprep.subr.mxu0 0.0
  %3103 = vmatpush1.msra.mxu0 0.0
  %3104 = vmatprep.subr.mxu0 0.0
  %3105 = vmatpush1.msra.mxu0 0.0
  %3106 = vmatprep.subr.mxu0 0.0
  %3107 = vmatpush1.msra.mxu0 0.0
  %3108 = vmatprep.subr.mxu0 0.0
  %3109 = vmatpush1.msra.mxu0 0.0
  %3110 = vmatprep.subr.mxu0 0.0
  %3111 = vmatpush1.msra.mxu0 0.0
  %3112 = vmatprep.subr.mxu0 0.0
  %3113 = vmatpush1.msra.mxu0 0.0
  %3114 = vmatprep.subr.mxu0 0.0
  %3115 = vmatpush1.msra.mxu0 0.0
  %3116 = vmatprep.subr.mxu0 0.0
  %3117 = vmatpush1.msra.mxu0 0.0
  %3118 = vmatprep.subr.mxu0 0.0
  %3119 = vmatpush1.msra.mxu0 0.0
  %3120 = vmatprep.subr.mxu0 0.0
  %3121 = vmatpush1.msra.mxu0 0.0
  %3122 = vmatprep.subr.mxu0 0.0
  %3123 = vmatpush1.msra.mxu0 0.0
  %3124 = vmatprep.subr.mxu0 0.0
  %3125 = vmatpush1.msra.mxu0 0.0
  %3126 = vmatprep.subr.mxu0 0.0
  %3127 = vmatpush1.msra.mxu0 0.0
  %3128 = vmatprep.mubr.f32.mxu0 0.0
  %3129 = vmatmul.mubr.f32.gmra.mrb[0].mxu0 %v3059
  %v3130 = vpop.f32.mrb[0].mxu0
  %v3131 = vadd.f32 0.0, %v3130
  %v3132 = vpop.f32.mrb[0].mxu0
  %v3133 = vadd.f32 0.0, %v3132
  %3134 = vdwg.mxu0
  %3135 = vmatprep.subr.mxu0 %v2655
  %3136 = vmatpush1.msra.mxu0 %v2654
  %3137 = vmatprep.subr.mxu0 %v2659
  %3138 = vmatpush1.msra.mxu0 %v2658
  %3139 = vmatprep.subr.mxu0 %v2663
  %3140 = vmatpush1.msra.mxu0 %v2662
  %3141 = vmatprep.subr.mxu0 %v2667
  %3142 = vmatpush1.msra.mxu0 %v2666
  %3143 = vmatprep.subr.mxu0 %v2671
  %3144 = vmatpush1.msra.mxu0 %v2670
  %3145 = vmatprep.subr.mxu0 %v2675
  %3146 = vmatpush1.msra.mxu0 %v2674
  %3147 = vmatprep.subr.mxu0 %v2679
  %3148 = vmatpush1.msra.mxu0 %v2678
  %3149 = vmatprep.subr.mxu0 %v2683
  %3150 = vmatpush1.msra.mxu0 %v2682
  %3151 = vmatprep.subr.mxu0 %v2687
  %3152 = vmatpush1.msra.mxu0 %v2686
  %3153 = vmatprep.subr.mxu0 %v2691
  %3154 = vmatpush1.msra.mxu0 %v2690
  %3155 = vmatprep.subr.mxu0 %v2695
  %3156 = vmatpush1.msra.mxu0 %v2694
  %3157 = vmatprep.subr.mxu0 %v2699
  %3158 = vmatpush1.msra.mxu0 %v2698
  %3159 = vmatprep.subr.mxu0 %v2703
  %3160 = vmatpush1.msra.mxu0 %v2702
  %3161 = vmatprep.subr.mxu0 %v2707
  %3162 = vmatpush1.msra.mxu0 %v2706
  %3163 = vmatprep.subr.mxu0 %v2711
  %3164 = vmatpush1.msra.mxu0 %v2710
  %3165 = vmatprep.subr.mxu0 %v2715
  %3166 = vmatpush1.msra.mxu0 %v2714
  %3167 = vmatprep.subr.mxu0 0.0
  %3168 = vmatpush1.msra.mxu0 0.0
  %3169 = vmatprep.subr.mxu0 0.0
  %3170 = vmatpush1.msra.mxu0 0.0
  %3171 = vmatprep.subr.mxu0 0.0
  %3172 = vmatpush1.msra.mxu0 0.0
  %3173 = vmatprep.subr.mxu0 0.0
  %3174 = vmatpush1.msra.mxu0 0.0
  %3175 = vmatprep.subr.mxu0 0.0
  %3176 = vmatpush1.msra.mxu0 0.0
  %3177 = vmatprep.subr.mxu0 0.0
  %3178 = vmatpush1.msra.mxu0 0.0
  %3179 = vmatprep.subr.mxu0 0.0
  %3180 = vmatpush1.msra.mxu0 0.0
  %3181 = vmatprep.subr.mxu0 0.0
  %3182 = vmatpush1.msra.mxu0 0.0
  %3183 = vmatprep.subr.mxu0 0.0
  %3184 = vmatpush1.msra.mxu0 0.0
  %3185 = vmatprep.subr.mxu0 0.0
  %3186 = vmatpush1.msra.mxu0 0.0
  %3187 = vmatprep.subr.mxu0 0.0
  %3188 = vmatpush1.msra.mxu0 0.0
  %3189 = vmatprep.subr.mxu0 0.0
  %3190 = vmatpush1.msra.mxu0 0.0
  %3191 = vmatprep.subr.mxu0 0.0
  %3192 = vmatpush1.msra.mxu0 0.0
  %3193 = vmatprep.subr.mxu0 0.0
  %3194 = vmatpush1.msra.mxu0 0.0
  %3195 = vmatprep.subr.mxu0 0.0
  %3196 = vmatpush1.msra.mxu0 0.0
  %3197 = vmatprep.subr.mxu0 0.0
  %3198 = vmatpush1.msra.mxu0 0.0
  %3199 = vmatprep.mubr.f32.mxu0 0.0
  %3200 = vmatmul.mubr.f32.gmra.mrb[0].mxu0 %v3059
  %v3201 = vpop.f32.mrb[0].mxu0
  %v3202 = vadd.f32 0.0, %v3201
  %v3203 = vpop.f32.mrb[0].mxu0
  %v3204 = vadd.f32 0.0, %v3203
  %3205 = vdwg.mxu0
  %v3206 = vadd.f32 %v3060, %v3131
  %v3207 = vadd.f32 %v3061, %v3133
  %v3208 = vadd.f32 %v3062, %v3202
  %v3209 = vadd.f32 %v3063, %v3204
  %v3210 = vxor.u32 %v3206, 2147483648
  %v3211 = vmul.f32 %v3210, 1.442695
  %v3212 = vpow.pop %v3211
  %v3213 = vadd.f32 %v3212, 1.0
  %v3214 = vrcp.pop %v3213
  %v3215 = vmul.f32 1.0, %v3214
  %v3216 = vxor.u32 %v3207, 2147483648
  %v3217 = vmul.f32 %v3216, 1.442695
  %v3218 = vpow.pop %v3217
  %v3219 = vadd.f32 %v3218, 1.0
  %v3220 = vrcp.pop %v3219
  %v3221 = vmul.f32 1.0, %v3220
  %v3222 = vtanh.pop %v3208
  %v3223 = vxor.u32 %v3209, 2147483648
  %v3224 = vmul.f32 %v3223, 1.442695
  %v3225 = vpow.pop %v3224
  %v3226 = vadd.f32 %v3225, 1.0
  %v3227 = vrcp.pop %v3226
  %v3228 = vmul.f32 1.0, %v3227
  %v3229 = vmul.f32 %v3221, %v3057
  %v3230 = vmul.f32 %v3215, %v3222
  %v3231 = vadd.f32 %v3229, %v3230
  %v3232 = vtanh.pop %v3231
  %v3233 = vmul.f32 %v3228, %v3232
  %v3234 = vld [vmem:[%s1083] sm:$0xff]
  %v3235 = vld [vmem:[%s1083 + $0x8] sm:$0xff]
  %v3236 = vld [vmem:[%s1083 + $0x10] sm:$0xff]
  %v3237 = vld [vmem:[%s1083 + $0x18] sm:$0xff]
  %3238 = vmatprep.subr.mxu0 %v2653
  %3239 = vmatpush1.msra.mxu0 %v2652
  %3240 = vmatprep.subr.mxu0 %v2657
  %3241 = vmatpush1.msra.mxu0 %v2656
  %3242 = vmatprep.subr.mxu0 %v2661
  %3243 = vmatpush1.msra.mxu0 %v2660
  %3244 = vmatprep.subr.mxu0 %v2665
  %3245 = vmatpush1.msra.mxu0 %v2664
  %3246 = vmatprep.subr.mxu0 %v2669
  %3247 = vmatpush1.msra.mxu0 %v2668
  %3248 = vmatprep.subr.mxu0 %v2673
  %3249 = vmatpush1.msra.mxu0 %v2672
  %3250 = vmatprep.subr.mxu0 %v2677
  %3251 = vmatpush1.msra.mxu0 %v2676
  %3252 = vmatprep.subr.mxu0 %v2681
  %3253 = vmatpush1.msra.mxu0 %v2680
  %3254 = vmatprep.subr.mxu0 %v2685
  %3255 = vmatpush1.msra.mxu0 %v2684
  %3256 = vmatprep.subr.mxu0 %v2689
  %3257 = vmatpush1.msra.mxu0 %v2688
  %3258 = vmatprep.subr.mxu0 %v2693
  %3259 = vmatpush1.msra.mxu0 %v2692
  %3260 = vmatprep.subr.mxu0 %v2697
  %3261 = vmatpush1.msra.mxu0 %v2696
  %3262 = vmatprep.subr.mxu0 %v2701
  %3263 = vmatpush1.msra.mxu0 %v2700
  %3264 = vmatprep.subr.mxu0 %v2705
  %3265 = vmatpush1.msra.mxu0 %v2704
  %3266 = vmatprep.subr.mxu0 %v2709
  %3267 = vmatpush1.msra.mxu0 %v2708
  %3268 = vmatprep.subr.mxu0 %v2713
  %3269 = vmatpush1.msra.mxu0 %v2712
  %3270 = vmatprep.subr.mxu0 0.0
  %3271 = vmatpush1.msra.mxu0 0.0
  %3272 = vmatprep.subr.mxu0 0.0
  %3273 = vmatpush1.msra.mxu0 0.0
  %3274 = vmatprep.subr.mxu0 0.0
  %3275 = vmatpush1.msra.mxu0 0.0
  %3276 = vmatprep.subr.mxu0 0.0
  %3277 = vmatpush1.msra.mxu0 0.0
  %3278 = vmatprep.subr.mxu0 0.0
  %3279 = vmatpush1.msra.mxu0 0.0
  %3280 = vmatprep.subr.mxu0 0.0
  %3281 = vmatpush1.msra.mxu0 0.0
  %3282 = vmatprep.subr.mxu0 0.0
  %3283 = vmatpush1.msra.mxu0 0.0
  %3284 = vmatprep.subr.mxu0 0.0
  %3285 = vmatpush1.msra.mxu0 0.0
  %3286 = vmatprep.subr.mxu0 0.0
  %3287 = vmatpush1.msra.mxu0 0.0
  %3288 = vmatprep.subr.mxu0 0.0
  %3289 = vmatpush1.msra.mxu0 0.0
  %3290 = vmatprep.subr.mxu0 0.0
  %3291 = vmatpush1.msra.mxu0 0.0
  %3292 = vmatprep.subr.mxu0 0.0
  %3293 = vmatpush1.msra.mxu0 0.0
  %3294 = vmatprep.subr.mxu0 0.0
  %3295 = vmatpush1.msra.mxu0 0.0
  %3296 = vmatprep.subr.mxu0 0.0
  %3297 = vmatpush1.msra.mxu0 0.0
  %3298 = vmatprep.subr.mxu0 0.0
  %3299 = vmatpush1.msra.mxu0 0.0
  %3300 = vmatprep.subr.mxu0 0.0
  %3301 = vmatpush1.msra.mxu0 0.0
  %3302 = vmatprep.mubr.f32.mxu0 0.0
  %3303 = vmatmul.mubr.f32.gmra.mrb[0].mxu0 %v3233
  %v3304 = vpop.f32.mrb[0].mxu0
  %v3305 = vadd.f32 0.0, %v3304
  %v3306 = vpop.f32.mrb[0].mxu0
  %v3307 = vadd.f32 0.0, %v3306
  %3308 = vdwg.mxu0
  %3309 = vmatprep.subr.mxu0 %v2655
  %3310 = vmatpush1.msra.mxu0 %v2654
  %3311 = vmatprep.subr.mxu0 %v2659
  %3312 = vmatpush1.msra.mxu0 %v2658
  %3313 = vmatprep.subr.mxu0 %v2663
  %3314 = vmatpush1.msra.mxu0 %v2662
  %3315 = vmatprep.subr.mxu0 %v2667
  %3316 = vmatpush1.msra.mxu0 %v2666
  %3317 = vmatprep.subr.mxu0 %v2671
  %3318 = vmatpush1.msra.mxu0 %v2670
  %3319 = vmatprep.subr.mxu0 %v2675
  %3320 = vmatpush1.msra.mxu0 %v2674
  %3321 = vmatprep.subr.mxu0 %v2679
  %3322 = vmatpush1.msra.mxu0 %v2678
  %3323 = vmatprep.subr.mxu0 %v2683
  %3324 = vmatpush1.msra.mxu0 %v2682
  %3325 = vmatprep.subr.mxu0 %v2687
  %3326 = vmatpush1.msra.mxu0 %v2686
  %3327 = vmatprep.subr.mxu0 %v2691
  %3328 = vmatpush1.msra.mxu0 %v2690
  %3329 = vmatprep.subr.mxu0 %v2695
  %3330 = vmatpush1.msra.mxu0 %v2694
  %3331 = vmatprep.subr.mxu0 %v2699
  %3332 = vmatpush1.msra.mxu0 %v2698
  %3333 = vmatprep.subr.mxu0 %v2703
  %3334 = vmatpush1.msra.mxu0 %v2702
  %3335 = vmatprep.subr.mxu0 %v2707
  %3336 = vmatpush1.msra.mxu0 %v2706
  %3337 = vmatprep.subr.mxu0 %v2711
  %3338 = vmatpush1.msra.mxu0 %v2710
  %3339 = vmatprep.subr.mxu0 %v2715
  %3340 = vmatpush1.msra.mxu0 %v2714
  %3341 = vmatprep.subr.mxu0 0.0
  %3342 = vmatpush1.msra.mxu0 0.0
  %3343 = vmatprep.subr.mxu0 0.0
  %3344 = vmatpush1.msra.mxu0 0.0
  %3345 = vmatprep.subr.mxu0 0.0
  %3346 = vmatpush1.msra.mxu0 0.0
  %3347 = vmatprep.subr.mxu0 0.0
  %3348 = vmatpush1.msra.mxu0 0.0
  %3349 = vmatprep.subr.mxu0 0.0
  %3350 = vmatpush1.msra.mxu0 0.0
  %3351 = vmatprep.subr.mxu0 0.0
  %3352 = vmatpush1.msra.mxu0 0.0
  %3353 = vmatprep.subr.mxu0 0.0
  %3354 = vmatpush1.msra.mxu0 0.0
  %3355 = vmatprep.subr.mxu0 0.0
  %3356 = vmatpush1.msra.mxu0 0.0
  %3357 = vmatprep.subr.mxu0 0.0
  %3358 = vmatpush1.msra.mxu0 0.0
  %3359 = vmatprep.subr.mxu0 0.0
  %3360 = vmatpush1.msra.mxu0 0.0
  %3361 = vmatprep.subr.mxu0 0.0
  %3362 = vmatpush1.msra.mxu0 0.0
  %3363 = vmatprep.subr.mxu0 0.0
  %3364 = vmatpush1.msra.mxu0 0.0
  %3365 = vmatprep.subr.mxu0 0.0
  %3366 = vmatpush1.msra.mxu0 0.0
  %3367 = vmatprep.subr.mxu0 0.0
  %3368 = vmatpush1.msra.mxu0 0.0
  %3369 = vmatprep.subr.mxu0 0.0
  %3370 = vmatpush1.msra.mxu0 0.0
  %3371 = vmatprep.subr.mxu0 0.0
  %3372 = vmatpush1.msra.mxu0 0.0
  %3373 = vmatprep.mubr.f32.mxu0 0.0
  %3374 = vmatmul.mubr.f32.gmra.mrb[0].mxu0 %v3233
  %v3375 = vpop.f32.mrb[0].mxu0
  %v3376 = vadd.f32 0.0, %v3375
  %v3377 = vpop.f32.mrb[0].mxu0
  %v3378 = vadd.f32 0.0, %v3377
  %3379 = vdwg.mxu0
  %v3380 = vadd.f32 %v3234, %v3305
  %v3381 = vadd.f32 %v3235, %v3307
  %v3382 = vadd.f32 %v3236, %v3376
  %v3383 = vadd.f32 %v3237, %v3378
  %v3384 = vxor.u32 %v3380, 2147483648
  %v3385 = vmul.f32 %v3384, 1.442695
  %v3386 = vpow.pop %v3385
  %v3387 = vadd.f32 %v3386, 1.0
  %v3388 = vrcp.pop %v3387
  %v3389 = vmul.f32 1.0, %v3388
  %v3390 = vxor.u32 %v3381, 2147483648
  %v3391 = vmul.f32 %v3390, 1.442695
  %v3392 = vpow.pop %v3391
  %v3393 = vadd.f32 %v3392, 1.0
  %v3394 = vrcp.pop %v3393
  %v3395 = vmul.f32 1.0, %v3394
  %v3396 = vtanh.pop %v3382
  %v3397 = vxor.u32 %v3383, 2147483648
  %v3398 = vmul.f32 %v3397, 1.442695
  %v3399 = vpow.pop %v3398
  %v3400 = vadd.f32 %v3399, 1.0
  %v3401 = vrcp.pop %v3400
  %v3402 = vmul.f32 1.0, %v3401
  %v3403 = vmul.f32 %v3395, %v3231
  %v3404 = vmul.f32 %v3389, %v3396
  %v3405 = vadd.f32 %v3403, %v3404
  %v3406 = vtanh.pop %v3405
  %v3407 = vmul.f32 %v3402, %v3406
  %v3408 = vld [vmem:[%s1326] sm:$0xff]
  %v3409 = vld [vmem:[%s1326 + $0x8] sm:$0xff]
  %v3410 = vld [vmem:[%s1326 + $0x10] sm:$0xff]
  %v3411 = vld [vmem:[%s1326 + $0x18] sm:$0xff]
  %3412 = vmatprep.subr.mxu0 %v2653
  %3413 = vmatpush1.msra.mxu0 %v2652
  %3414 = vmatprep.subr.mxu0 %v2657
  %3415 = vmatpush1.msra.mxu0 %v2656
  %3416 = vmatprep.subr.mxu0 %v2661
  %3417 = vmatpush1.msra.mxu0 %v2660
  %3418 = vmatprep.subr.mxu0 %v2665
  %3419 = vmatpush1.msra.mxu0 %v2664
  %3420 = vmatprep.subr.mxu0 %v2669
  %3421 = vmatpush1.msra.mxu0 %v2668
  %3422 = vmatprep.subr.mxu0 %v2673
  %3423 = vmatpush1.msra.mxu0 %v2672
  %3424 = vmatprep.subr.mxu0 %v2677
  %3425 = vmatpush1.msra.mxu0 %v2676
  %3426 = vmatprep.subr.mxu0 %v2681
  %3427 = vmatpush1.msra.mxu0 %v2680
  %3428 = vmatprep.subr.mxu0 %v2685
  %3429 = vmatpush1.msra.mxu0 %v2684
  %3430 = vmatprep.subr.mxu0 %v2689
  %3431 = vmatpush1.msra.mxu0 %v2688
  %3432 = vmatprep.subr.mxu0 %v2693
  %3433 = vmatpush1.msra.mxu0 %v2692
  %3434 = vmatprep.subr.mxu0 %v2697
  %3435 = vmatpush1.msra.mxu0 %v2696
  %3436 = vmatprep.subr.mxu0 %v2701
  %3437 = vmatpush1.msra.mxu0 %v2700
  %3438 = vmatprep.subr.mxu0 %v2705
  %3439 = vmatpush1.msra.mxu0 %v2704
  %3440 = vmatprep.subr.mxu0 %v2709
  %3441 = vmatpush1.msra.mxu0 %v2708
  %3442 = vmatprep.subr.mxu0 %v2713
  %3443 = vmatpush1.msra.mxu0 %v2712
  %3444 = vmatprep.subr.mxu0 0.0
  %3445 = vmatpush1.msra.mxu0 0.0
  %3446 = vmatprep.subr.mxu0 0.0
  %3447 = vmatpush1.msra.mxu0 0.0
  %3448 = vmatprep.subr.mxu0 0.0
  %3449 = vmatpush1.msra.mxu0 0.0
  %3450 = vmatprep.subr.mxu0 0.0
  %3451 = vmatpush1.msra.mxu0 0.0
  %3452 = vmatprep.subr.mxu0 0.0
  %3453 = vmatpush1.msra.mxu0 0.0
  %3454 = vmatprep.subr.mxu0 0.0
  %3455 = vmatpush1.msra.mxu0 0.0
  %3456 = vmatprep.subr.mxu0 0.0
  %3457 = vmatpush1.msra.mxu0 0.0
  %3458 = vmatprep.subr.mxu0 0.0
  %3459 = vmatpush1.msra.mxu0 0.0
  %3460 = vmatprep.subr.mxu0 0.0
  %3461 = vmatpush1.msra.mxu0 0.0
  %3462 = vmatprep.subr.mxu0 0.0
  %3463 = vmatpush1.msra.mxu0 0.0
  %3464 = vmatprep.subr.mxu0 0.0
  %3465 = vmatpush1.msra.mxu0 0.0
  %3466 = vmatprep.subr.mxu0 0.0
  %3467 = vmatpush1.msra.mxu0 0.0
  %3468 = vmatprep.subr.mxu0 0.0
  %3469 = vmatpush1.msra.mxu0 0.0
  %3470 = vmatprep.subr.mxu0 0.0
  %3471 = vmatpush1.msra.mxu0 0.0
  %3472 = vmatprep.subr.mxu0 0.0
  %3473 = vmatpush1.msra.mxu0 0.0
  %3474 = vmatprep.subr.mxu0 0.0
  %3475 = vmatpush1.msra.mxu0 0.0
  %3476 = vmatprep.mubr.f32.mxu0 0.0
  %3477 = vmatmul.mubr.f32.gmra.mrb[0].mxu0 %v3407
  %v3478 = vpop.f32.mrb[0].mxu0
  %v3479 = vadd.f32 0.0, %v3478
  %v3480 = vpop.f32.mrb[0].mxu0
  %v3481 = vadd.f32 0.0, %v3480
  %3482 = vdwg.mxu0
  %3483 = vmatprep.subr.mxu0 %v2655
  %3484 = vmatpush1.msra.mxu0 %v2654
  %3485 = vmatprep.subr.mxu0 %v2659
  %3486 = vmatpush1.msra.mxu0 %v2658
  %3487 = vmatprep.subr.mxu0 %v2663
  %3488 = vmatpush1.msra.mxu0 %v2662
  %3489 = vmatprep.subr.mxu0 %v2667
  %3490 = vmatpush1.msra.mxu0 %v2666
  %3491 = vmatprep.subr.mxu0 %v2671
  %3492 = vmatpush1.msra.mxu0 %v2670
  %3493 = vmatprep.subr.mxu0 %v2675
  %3494 = vmatpush1.msra.mxu0 %v2674
  %3495 = vmatprep.subr.mxu0 %v2679
  %3496 = vmatpush1.msra.mxu0 %v2678
  %3497 = vmatprep.subr.mxu0 %v2683
  %3498 = vmatpush1.msra.mxu0 %v2682
  %3499 = vmatprep.subr.mxu0 %v2687
  %3500 = vmatpush1.msra.mxu0 %v2686
  %3501 = vmatprep.subr.mxu0 %v2691
  %3502 = vmatpush1.msra.mxu0 %v2690
  %3503 = vmatprep.subr.mxu0 %v2695
  %3504 = vmatpush1.msra.mxu0 %v2694
  %3505 = vmatprep.subr.mxu0 %v2699
  %3506 = vmatpush1.msra.mxu0 %v2698
  %3507 = vmatprep.subr.mxu0 %v2703
  %3508 = vmatpush1.msra.mxu0 %v2702
  %3509 = vmatprep.subr.mxu0 %v2707
  %3510 = vmatpush1.msra.mxu0 %v2706
  %3511 = vmatprep.subr.mxu0 %v2711
  %3512 = vmatpush1.msra.mxu0 %v2710
  %3513 = vmatprep.subr.mxu0 %v2715
  %3514 = vmatpush1.msra.mxu0 %v2714
  %3515 = vmatprep.subr.mxu0 0.0
  %3516 = vmatpush1.msra.mxu0 0.0
  %3517 = vmatprep.subr.mxu0 0.0
  %3518 = vmatpush1.msra.mxu0 0.0
  %3519 = vmatprep.subr.mxu0 0.0
  %3520 = vmatpush1.msra.mxu0 0.0
  %3521 = vmatprep.subr.mxu0 0.0
  %3522 = vmatpush1.msra.mxu0 0.0
  %3523 = vmatprep.subr.mxu0 0.0
  %3524 = vmatpush1.msra.mxu0 0.0
  %3525 = vmatprep.subr.mxu0 0.0
  %3526 = vmatpush1.msra.mxu0 0.0
  %3527 = vmatprep.subr.mxu0 0.0
  %3528 = vmatpush1.msra.mxu0 0.0
  %3529 = vmatprep.subr.mxu0 0.0
  %3530 = vmatpush1.msra.mxu0 0.0
  %3531 = vmatprep.subr.mxu0 0.0
  %3532 = vmatpush1.msra.mxu0 0.0
  %3533 = vmatprep.subr.mxu0 0.0
  %3534 = vmatpush1.msra.mxu0 0.0
  %3535 = vmatprep.subr.mxu0 0.0
  %3536 = vmatpush1.msra.mxu0 0.0
  %3537 = vmatprep.subr.mxu0 0.0
  %3538 = vmatpush1.msra.mxu0 0.0
  %3539 = vmatprep.subr.mxu0 0.0
  %3540 = vmatpush1.msra.mxu0 0.0
  %3541 = vmatprep.subr.mxu0 0.0
  %3542 = vmatpush1.msra.mxu0 0.0
  %3543 = vmatprep.subr.mxu0 0.0
  %3544 = vmatpush1.msra.mxu0 0.0
  %3545 = vmatprep.subr.mxu0 0.0
  %3546 = vmatpush1.msra.mxu0 0.0
  %3547 = vmatprep.mubr.f32.mxu0 0.0
  %3548 = vmatmul.mubr.f32.gmra.mrb[0].mxu0 %v3407
  %v3549 = vpop.f32.mrb[0].mxu0
  %v3550 = vadd.f32 0.0, %v3549
  %v3551 = vpop.f32.mrb[0].mxu0
  %v3552 = vadd.f32 0.0, %v3551
  %3553 = vdwg.mxu0
  %v3554 = vadd.f32 %v3408, %v3479
  %v3555 = vadd.f32 %v3409, %v3481
  %v3556 = vadd.f32 %v3410, %v3550
  %v3557 = vadd.f32 %v3411, %v3552
  %v3558 = vxor.u32 %v3554, 2147483648
  %v3559 = vmul.f32 %v3558, 1.442695
  %v3560 = vpow.pop %v3559
  %v3561 = vadd.f32 %v3560, 1.0
  %v3562 = vrcp.pop %v3561
  %v3563 = vmul.f32 1.0, %v3562
  %v3564 = vxor.u32 %v3555, 2147483648
  %v3565 = vmul.f32 %v3564, 1.442695
  %v3566 = vpow.pop %v3565
  %v3567 = vadd.f32 %v3566, 1.0
  %v3568 = vrcp.pop %v3567
  %v3569 = vmul.f32 1.0, %v3568
  %v3570 = vtanh.pop %v3556
  %v3571 = vxor.u32 %v3557, 2147483648
  %v3572 = vmul.f32 %v3571, 1.442695
  %v3573 = vpow.pop %v3572
  %v3574 = vadd.f32 %v3573, 1.0
  %v3575 = vrcp.pop %v3574
  %v3576 = vmul.f32 1.0, %v3575
  %v3577 = vmul.f32 %v3569, %v3405
  %v3578 = vmul.f32 %v3563, %v3570
  %v3579 = vadd.f32 %v3577, %v3578
  %v3580 = vtanh.pop %v3579
  %v3581 = vmul.f32 %v3576, %v3580
  %v3582 = vld [vmem:[%s1569] sm:$0xff]
  %v3583 = vld [vmem:[%s1569 + $0x8] sm:$0xff]
  %v3584 = vld [vmem:[%s1569 + $0x10] sm:$0xff]
  %v3585 = vld [vmem:[%s1569 + $0x18] sm:$0xff]
  %3586 = vmatprep.subr.mxu0 %v2653
  %3587 = vmatpush1.msra.mxu0 %v2652
  %3588 = vmatprep.subr.mxu0 %v2657
  %3589 = vmatpush1.msra.mxu0 %v2656
  %3590 = vmatprep.subr.mxu0 %v2661
  %3591 = vmatpush1.msra.mxu0 %v2660
  %3592 = vmatprep.subr.mxu0 %v2665
  %3593 = vmatpush1.msra.mxu0 %v2664
  %3594 = vmatprep.subr.mxu0 %v2669
  %3595 = vmatpush1.msra.mxu0 %v2668
  %3596 = vmatprep.subr.mxu0 %v2673
  %3597 = vmatpush1.msra.mxu0 %v2672
  %3598 = vmatprep.subr.mxu0 %v2677
  %3599 = vmatpush1.msra.mxu0 %v2676
  %3600 = vmatprep.subr.mxu0 %v2681
  %3601 = vmatpush1.msra.mxu0 %v2680
  %3602 = vmatprep.subr.mxu0 %v2685
  %3603 = vmatpush1.msra.mxu0 %v2684
  %3604 = vmatprep.subr.mxu0 %v2689
  %3605 = vmatpush1.msra.mxu0 %v2688
  %3606 = vmatprep.subr.mxu0 %v2693
  %3607 = vmatpush1.msra.mxu0 %v2692
  %3608 = vmatprep.subr.mxu0 %v2697
  %3609 = vmatpush1.msra.mxu0 %v2696
  %3610 = vmatprep.subr.mxu0 %v2701
  %3611 = vmatpush1.msra.mxu0 %v2700
  %3612 = vmatprep.subr.mxu0 %v2705
  %3613 = vmatpush1.msra.mxu0 %v2704
  %3614 = vmatprep.subr.mxu0 %v2709
  %3615 = vmatpush1.msra.mxu0 %v2708
  %3616 = vmatprep.subr.mxu0 %v2713
  %3617 = vmatpush1.msra.mxu0 %v2712
  %3618 = vmatprep.subr.mxu0 0.0
  %3619 = vmatpush1.msra.mxu0 0.0
  %3620 = vmatprep.subr.mxu0 0.0
  %3621 = vmatpush1.msra.mxu0 0.0
  %3622 = vmatprep.subr.mxu0 0.0
  %3623 = vmatpush1.msra.mxu0 0.0
  %3624 = vmatprep.subr.mxu0 0.0
  %3625 = vmatpush1.msra.mxu0 0.0
  %3626 = vmatprep.subr.mxu0 0.0
  %3627 = vmatpush1.msra.mxu0 0.0
  %3628 = vmatprep.subr.mxu0 0.0
  %3629 = vmatpush1.msra.mxu0 0.0
  %3630 = vmatprep.subr.mxu0 0.0
  %3631 = vmatpush1.msra.mxu0 0.0
  %3632 = vmatprep.subr.mxu0 0.0
  %3633 = vmatpush1.msra.mxu0 0.0
  %3634 = vmatprep.subr.mxu0 0.0
  %3635 = vmatpush1.msra.mxu0 0.0
  %3636 = vmatprep.subr.mxu0 0.0
  %3637 = vmatpush1.msra.mxu0 0.0
  %3638 = vmatprep.subr.mxu0 0.0
  %3639 = vmatpush1.msra.mxu0 0.0
  %3640 = vmatprep.subr.mxu0 0.0
  %3641 = vmatpush1.msra.mxu0 0.0
  %3642 = vmatprep.subr.mxu0 0.0
  %3643 = vmatpush1.msra.mxu0 0.0
  %3644 = vmatprep.subr.mxu0 0.0
  %3645 = vmatpush1.msra.mxu0 0.0
  %3646 = vmatprep.subr.mxu0 0.0
  %3647 = vmatpush1.msra.mxu0 0.0
  %3648 = vmatprep.subr.mxu0 0.0
  %3649 = vmatpush1.msra.mxu0 0.0
  %3650 = vmatprep.mubr.f32.mxu0 0.0
  %3651 = vmatmul.mubr.f32.gmra.mrb[0].mxu0 %v3581
  %v3652 = vpop.f32.mrb[0].mxu0
  %v3653 = vadd.f32 0.0, %v3652
  %v3654 = vpop.f32.mrb[0].mxu0
  %v3655 = vadd.f32 0.0, %v3654
  %3656 = vdwg.mxu0
  %3657 = vmatprep.subr.mxu0 %v2655
  %3658 = vmatpush1.msra.mxu0 %v2654
  %3659 = vmatprep.subr.mxu0 %v2659
  %3660 = vmatpush1.msra.mxu0 %v2658
  %3661 = vmatprep.subr.mxu0 %v2663
  %3662 = vmatpush1.msra.mxu0 %v2662
  %3663 = vmatprep.subr.mxu0 %v2667
  %3664 = vmatpush1.msra.mxu0 %v2666
  %3665 = vmatprep.subr.mxu0 %v2671
  %3666 = vmatpush1.msra.mxu0 %v2670
  %3667 = vmatprep.subr.mxu0 %v2675
  %3668 = vmatpush1.msra.mxu0 %v2674
  %3669 = vmatprep.subr.mxu0 %v2679
  %3670 = vmatpush1.msra.mxu0 %v2678
  %3671 = vmatprep.subr.mxu0 %v2683
  %3672 = vmatpush1.msra.mxu0 %v2682
  %3673 = vmatprep.subr.mxu0 %v2687
  %3674 = vmatpush1.msra.mxu0 %v2686
  %3675 = vmatprep.subr.mxu0 %v2691
  %3676 = vmatpush1.msra.mxu0 %v2690
  %3677 = vmatprep.subr.mxu0 %v2695
  %3678 = vmatpush1.msra.mxu0 %v2694
  %3679 = vmatprep.subr.mxu0 %v2699
  %3680 = vmatpush1.msra.mxu0 %v2698
  %3681 = vmatprep.subr.mxu0 %v2703
  %3682 = vmatpush1.msra.mxu0 %v2702
  %3683 = vmatprep.subr.mxu0 %v2707
  %3684 = vmatpush1.msra.mxu0 %v2706
  %3685 = vmatprep.subr.mxu0 %v2711
  %3686 = vmatpush1.msra.mxu0 %v2710
  %3687 = vmatprep.subr.mxu0 %v2715
  %3688 = vmatpush1.msra.mxu0 %v2714
  %3689 = vmatprep.subr.mxu0 0.0
  %3690 = vmatpush1.msra.mxu0 0.0
  %3691 = vmatprep.subr.mxu0 0.0
  %3692 = vmatpush1.msra.mxu0 0.0
  %3693 = vmatprep.subr.mxu0 0.0
  %3694 = vmatpush1.msra.mxu0 0.0
  %3695 = vmatprep.subr.mxu0 0.0
  %3696 = vmatpush1.msra.mxu0 0.0
  %3697 = vmatprep.subr.mxu0 0.0
  %3698 = vmatpush1.msra.mxu0 0.0
  %3699 = vmatprep.subr.mxu0 0.0
  %3700 = vmatpush1.msra.mxu0 0.0
  %3701 = vmatprep.subr.mxu0 0.0
  %3702 = vmatpush1.msra.mxu0 0.0
  %3703 = vmatprep.subr.mxu0 0.0
  %3704 = vmatpush1.msra.mxu0 0.0
  %3705 = vmatprep.subr.mxu0 0.0
  %3706 = vmatpush1.msra.mxu0 0.0
  %3707 = vmatprep.subr.mxu0 0.0
  %3708 = vmatpush1.msra.mxu0 0.0
  %3709 = vmatprep.subr.mxu0 0.0
  %3710 = vmatpush1.msra.mxu0 0.0
  %3711 = vmatprep.subr.mxu0 0.0
  %3712 = vmatpush1.msra.mxu0 0.0
  %3713 = vmatprep.subr.mxu0 0.0
  %3714 = vmatpush1.msra.mxu0 0.0
  %3715 = vmatprep.subr.mxu0 0.0
  %3716 = vmatpush1.msra.mxu0 0.0
  %3717 = vmatprep.subr.mxu0 0.0
  %3718 = vmatpush1.msra.mxu0 0.0
  %3719 = vmatprep.subr.mxu0 0.0
  %3720 = vmatpush1.msra.mxu0 0.0
  %3721 = vmatprep.mubr.f32.mxu0 0.0
  %3722 = vmatmul.mubr.f32.gmra.mrb[0].mxu0 %v3581
  %v3723 = vpop.f32.mrb[0].mxu0
  %v3724 = vadd.f32 0.0, %v3723
  %v3725 = vpop.f32.mrb[0].mxu0
  %v3726 = vadd.f32 0.0, %v3725
  %3727 = vdwg.mxu0
  %v3728 = vadd.f32 %v3582, %v3653
  %v3729 = vadd.f32 %v3583, %v3655
  %v3730 = vadd.f32 %v3584, %v3724
  %v3731 = vadd.f32 %v3585, %v3726
  %v3732 = vxor.u32 %v3728, 2147483648
  %v3733 = vmul.f32 %v3732, 1.442695
  %v3734 = vpow.pop %v3733
  %v3735 = vadd.f32 %v3734, 1.0
  %v3736 = vrcp.pop %v3735
  %v3737 = vmul.f32 1.0, %v3736
  %v3738 = vxor.u32 %v3729, 2147483648
  %v3739 = vmul.f32 %v3738, 1.442695
  %v3740 = vpow.pop %v3739
  %v3741 = vadd.f32 %v3740, 1.0
  %v3742 = vrcp.pop %v3741
  %v3743 = vmul.f32 1.0, %v3742
  %v3744 = vtanh.pop %v3730
  %v3745 = vxor.u32 %v3731, 2147483648
  %v3746 = vmul.f32 %v3745, 1.442695
  %v3747 = vpow.pop %v3746
  %v3748 = vadd.f32 %v3747, 1.0
  %v3749 = vrcp.pop %v3748
  %v3750 = vmul.f32 1.0, %v3749
  %v3751 = vmul.f32 %v3743, %v3579
  %v3752 = vmul.f32 %v3737, %v3744
  %v3753 = vadd.f32 %v3751, %v3752
  %v3754 = vtanh.pop %v3753
  %v3755 = vmul.f32 %v3750, %v3754
  %v3756 = vld [vmem:[%s1812] sm:$0xff]
  %v3757 = vld [vmem:[%s1812 + $0x8] sm:$0xff]
  %v3758 = vld [vmem:[%s1812 + $0x10] sm:$0xff]
  %v3759 = vld [vmem:[%s1812 + $0x18] sm:$0xff]
  %3760 = vmatprep.subr.mxu0 %v2653
  %3761 = vmatpush1.msra.mxu0 %v2652
  %3762 = vmatprep.subr.mxu0 %v2657
  %3763 = vmatpush1.msra.mxu0 %v2656
  %3764 = vmatprep.subr.mxu0 %v2661
  %3765 = vmatpush1.msra.mxu0 %v2660
  %3766 = vmatprep.subr.mxu0 %v2665
  %3767 = vmatpush1.msra.mxu0 %v2664
  %3768 = vmatprep.subr.mxu0 %v2669
  %3769 = vmatpush1.msra.mxu0 %v2668
  %3770 = vmatprep.subr.mxu0 %v2673
  %3771 = vmatpush1.msra.mxu0 %v2672
  %3772 = vmatprep.subr.mxu0 %v2677
  %3773 = vmatpush1.msra.mxu0 %v2676
  %3774 = vmatprep.subr.mxu0 %v2681
  %3775 = vmatpush1.msra.mxu0 %v2680
  %3776 = vmatprep.subr.mxu0 %v2685
  %3777 = vmatpush1.msra.mxu0 %v2684
  %3778 = vmatprep.subr.mxu0 %v2689
  %3779 = vmatpush1.msra.mxu0 %v2688
  %3780 = vmatprep.subr.mxu0 %v2693
  %3781 = vmatpush1.msra.mxu0 %v2692
  %3782 = vmatprep.subr.mxu0 %v2697
  %3783 = vmatpush1.msra.mxu0 %v2696
  %3784 = vmatprep.subr.mxu0 %v2701
  %3785 = vmatpush1.msra.mxu0 %v2700
  %3786 = vmatprep.subr.mxu0 %v2705
  %3787 = vmatpush1.msra.mxu0 %v2704
  %3788 = vmatprep.subr.mxu0 %v2709
  %3789 = vmatpush1.msra.mxu0 %v2708
  %3790 = vmatprep.subr.mxu0 %v2713
  %3791 = vmatpush1.msra.mxu0 %v2712
  %3792 = vmatprep.subr.mxu0 0.0
  %3793 = vmatpush1.msra.mxu0 0.0
  %3794 = vmatprep.subr.mxu0 0.0
  %3795 = vmatpush1.msra.mxu0 0.0
  %3796 = vmatprep.subr.mxu0 0.0
  %3797 = vmatpush1.msra.mxu0 0.0
  %3798 = vmatprep.subr.mxu0 0.0
  %3799 = vmatpush1.msra.mxu0 0.0
  %3800 = vmatprep.subr.mxu0 0.0
  %3801 = vmatpush1.msra.mxu0 0.0
  %3802 = vmatprep.subr.mxu0 0.0
  %3803 = vmatpush1.msra.mxu0 0.0
  %3804 = vmatprep.subr.mxu0 0.0
  %3805 = vmatpush1.msra.mxu0 0.0
  %3806 = vmatprep.subr.mxu0 0.0
  %3807 = vmatpush1.msra.mxu0 0.0
  %3808 = vmatprep.subr.mxu0 0.0
  %3809 = vmatpush1.msra.mxu0 0.0
  %3810 = vmatprep.subr.mxu0 0.0
  %3811 = vmatpush1.msra.mxu0 0.0
  %3812 = vmatprep.subr.mxu0 0.0
  %3813 = vmatpush1.msra.mxu0 0.0
  %3814 = vmatprep.subr.mxu0 0.0
  %3815 = vmatpush1.msra.mxu0 0.0
  %3816 = vmatprep.subr.mxu0 0.0
  %3817 = vmatpush1.msra.mxu0 0.0
  %3818 = vmatprep.subr.mxu0 0.0
  %3819 = vmatpush1.msra.mxu0 0.0
  %3820 = vmatprep.subr.mxu0 0.0
  %3821 = vmatpush1.msra.mxu0 0.0
  %3822 = vmatprep.subr.mxu0 0.0
  %3823 = vmatpush1.msra.mxu0 0.0
  %3824 = vmatprep.mubr.f32.mxu0 0.0
  %3825 = vmatmul.mubr.f32.gmra.mrb[0].mxu0 %v3755
  %v3826 = vpop.f32.mrb[0].mxu0
  %v3827 = vadd.f32 0.0, %v3826
  %v3828 = vpop.f32.mrb[0].mxu0
  %v3829 = vadd.f32 0.0, %v3828
  %3830 = vdwg.mxu0
  %3831 = vmatprep.subr.mxu0 %v2655
  %3832 = vmatpush1.msra.mxu0 %v2654
  %3833 = vmatprep.subr.mxu0 %v2659
  %3834 = vmatpush1.msra.mxu0 %v2658
  %3835 = vmatprep.subr.mxu0 %v2663
  %3836 = vmatpush1.msra.mxu0 %v2662
  %3837 = vmatprep.subr.mxu0 %v2667
  %3838 = vmatpush1.msra.mxu0 %v2666
  %3839 = vmatprep.subr.mxu0 %v2671
  %3840 = vmatpush1.msra.mxu0 %v2670
  %3841 = vmatprep.subr.mxu0 %v2675
  %3842 = vmatpush1.msra.mxu0 %v2674
  %3843 = vmatprep.subr.mxu0 %v2679
  %3844 = vmatpush1.msra.mxu0 %v2678
  %3845 = vmatprep.subr.mxu0 %v2683
  %3846 = vmatpush1.msra.mxu0 %v2682
  %3847 = vmatprep.subr.mxu0 %v2687
  %3848 = vmatpush1.msra.mxu0 %v2686
  %3849 = vmatprep.subr.mxu0 %v2691
  %3850 = vmatpush1.msra.mxu0 %v2690
  %3851 = vmatprep.subr.mxu0 %v2695
  %3852 = vmatpush1.msra.mxu0 %v2694
  %3853 = vmatprep.subr.mxu0 %v2699
  %3854 = vmatpush1.msra.mxu0 %v2698
  %3855 = vmatprep.subr.mxu0 %v2703
  %3856 = vmatpush1.msra.mxu0 %v2702
  %3857 = vmatprep.subr.mxu0 %v2707
  %3858 = vmatpush1.msra.mxu0 %v2706
  %3859 = vmatprep.subr.mxu0 %v2711
  %3860 = vmatpush1.msra.mxu0 %v2710
  %3861 = vmatprep.subr.mxu0 %v2715
  %3862 = vmatpush1.msra.mxu0 %v2714
  %3863 = vmatprep.subr.mxu0 0.0
  %3864 = vmatpush1.msra.mxu0 0.0
  %3865 = vmatprep.subr.mxu0 0.0
  %3866 = vmatpush1.msra.mxu0 0.0
  %3867 = vmatprep.subr.mxu0 0.0
  %3868 = vmatpush1.msra.mxu0 0.0
  %3869 = vmatprep.subr.mxu0 0.0
  %3870 = vmatpush1.msra.mxu0 0.0
  %3871 = vmatprep.subr.mxu0 0.0
  %3872 = vmatpush1.msra.mxu0 0.0
  %3873 = vmatprep.subr.mxu0 0.0
  %3874 = vmatpush1.msra.mxu0 0.0
  %3875 = vmatprep.subr.mxu0 0.0
  %3876 = vmatpush1.msra.mxu0 0.0
  %3877 = vmatprep.subr.mxu0 0.0
  %3878 = vmatpush1.msra.mxu0 0.0
  %3879 = vmatprep.subr.mxu0 0.0
  %3880 = vmatpush1.msra.mxu0 0.0
  %3881 = vmatprep.subr.mxu0 0.0
  %3882 = vmatpush1.msra.mxu0 0.0
  %3883 = vmatprep.subr.mxu0 0.0
  %3884 = vmatpush1.msra.mxu0 0.0
  %3885 = vmatprep.subr.mxu0 0.0
  %3886 = vmatpush1.msra.mxu0 0.0
  %3887 = vmatprep.subr.mxu0 0.0
  %3888 = vmatpush1.msra.mxu0 0.0
  %3889 = vmatprep.subr.mxu0 0.0
  %3890 = vmatpush1.msra.mxu0 0.0
  %3891 = vmatprep.subr.mxu0 0.0
  %3892 = vmatpush1.msra.mxu0 0.0
  %3893 = vmatprep.subr.mxu0 0.0
  %3894 = vmatpush1.msra.mxu0 0.0
  %3895 = vmatprep.mubr.f32.mxu0 0.0
  %3896 = vmatmul.mubr.f32.gmra.mrb[0].mxu0 %v3755
  %v3897 = vpop.f32.mrb[0].mxu0
  %v3898 = vadd.f32 0.0, %v3897
  %v3899 = vpop.f32.mrb[0].mxu0
  %v3900 = vadd.f32 0.0, %v3899
  %3901 = vdwg.mxu0
  %v3902 = vadd.f32 %v3756, %v3827
  %v3903 = vadd.f32 %v3757, %v3829
  %v3904 = vadd.f32 %v3758, %v3898
  %v3905 = vadd.f32 %v3759, %v3900
  %v3906 = vxor.u32 %v3902, 2147483648
  %v3907 = vmul.f32 %v3906, 1.442695
  %v3908 = vpow.pop %v3907
  %v3909 = vadd.f32 %v3908, 1.0
  %v3910 = vrcp.pop %v3909
  %v3911 = vmul.f32 1.0, %v3910
  %v3912 = vxor.u32 %v3903, 2147483648
  %v3913 = vmul.f32 %v3912, 1.442695
  %v3914 = vpow.pop %v3913
  %v3915 = vadd.f32 %v3914, 1.0
  %v3916 = vrcp.pop %v3915
  %v3917 = vmul.f32 1.0, %v3916
  %v3918 = vtanh.pop %v3904
  %v3919 = vxor.u32 %v3905, 2147483648
  %v3920 = vmul.f32 %v3919, 1.442695
  %v3921 = vpow.pop %v3920
  %v3922 = vadd.f32 %v3921, 1.0
  %v3923 = vrcp.pop %v3922
  %v3924 = vmul.f32 1.0, %v3923
  %v3925 = vmul.f32 %v3917, %v3753
  %v3926 = vmul.f32 %v3911, %v3918
  %v3927 = vadd.f32 %v3925, %v3926
  %v3928 = vtanh.pop %v3927
  %v3929 = vmul.f32 %v3924, %v3928
  %v3930 = vld [vmem:[%s2055] sm:$0xff]
  %v3931 = vld [vmem:[%s2055 + $0x8] sm:$0xff]
  %v3932 = vld [vmem:[%s2055 + $0x10] sm:$0xff]
  %v3933 = vld [vmem:[%s2055 + $0x18] sm:$0xff]
  %3934 = vmatprep.subr.mxu0 %v2653
  %3935 = vmatpush1.msra.mxu0 %v2652
  %3936 = vmatprep.subr.mxu0 %v2657
  %3937 = vmatpush1.msra.mxu0 %v2656
  %3938 = vmatprep.subr.mxu0 %v2661
  %3939 = vmatpush1.msra.mxu0 %v2660
  %3940 = vmatprep.subr.mxu0 %v2665
  %3941 = vmatpush1.msra.mxu0 %v2664
  %3942 = vmatprep.subr.mxu0 %v2669
  %3943 = vmatpush1.msra.mxu0 %v2668
  %3944 = vmatprep.subr.mxu0 %v2673
  %3945 = vmatpush1.msra.mxu0 %v2672
  %3946 = vmatprep.subr.mxu0 %v2677
  %3947 = vmatpush1.msra.mxu0 %v2676
  %3948 = vmatprep.subr.mxu0 %v2681
  %3949 = vmatpush1.msra.mxu0 %v2680
  %3950 = vmatprep.subr.mxu0 %v2685
  %3951 = vmatpush1.msra.mxu0 %v2684
  %3952 = vmatprep.subr.mxu0 %v2689
  %3953 = vmatpush1.msra.mxu0 %v2688
  %3954 = vmatprep.subr.mxu0 %v2693
  %3955 = vmatpush1.msra.mxu0 %v2692
  %3956 = vmatprep.subr.mxu0 %v2697
  %3957 = vmatpush1.msra.mxu0 %v2696
  %3958 = vmatprep.subr.mxu0 %v2701
  %3959 = vmatpush1.msra.mxu0 %v2700
  %3960 = vmatprep.subr.mxu0 %v2705
  %3961 = vmatpush1.msra.mxu0 %v2704
  %3962 = vmatprep.subr.mxu0 %v2709
  %3963 = vmatpush1.msra.mxu0 %v2708
  %3964 = vmatprep.subr.mxu0 %v2713
  %3965 = vmatpush1.msra.mxu0 %v2712
  %3966 = vmatprep.subr.mxu0 0.0
  %3967 = vmatpush1.msra.mxu0 0.0
  %3968 = vmatprep.subr.mxu0 0.0
  %3969 = vmatpush1.msra.mxu0 0.0
  %3970 = vmatprep.subr.mxu0 0.0
  %3971 = vmatpush1.msra.mxu0 0.0
  %3972 = vmatprep.subr.mxu0 0.0
  %3973 = vmatpush1.msra.mxu0 0.0
  %3974 = vmatprep.subr.mxu0 0.0
  %3975 = vmatpush1.msra.mxu0 0.0
  %3976 = vmatprep.subr.mxu0 0.0
  %3977 = vmatpush1.msra.mxu0 0.0
  %3978 = vmatprep.subr.mxu0 0.0
  %3979 = vmatpush1.msra.mxu0 0.0
  %3980 = vmatprep.subr.mxu0 0.0
  %3981 = vmatpush1.msra.mxu0 0.0
  %3982 = vmatprep.subr.mxu0 0.0
  %3983 = vmatpush1.msra.mxu0 0.0
  %3984 = vmatprep.subr.mxu0 0.0
  %3985 = vmatpush1.msra.mxu0 0.0
  %3986 = vmatprep.subr.mxu0 0.0
  %3987 = vmatpush1.msra.mxu0 0.0
  %3988 = vmatprep.subr.mxu0 0.0
  %3989 = vmatpush1.msra.mxu0 0.0
  %3990 = vmatprep.subr.mxu0 0.0
  %3991 = vmatpush1.msra.mxu0 0.0
  %3992 = vmatprep.subr.mxu0 0.0
  %3993 = vmatpush1.msra.mxu0 0.0
  %3994 = vmatprep.subr.mxu0 0.0
  %3995 = vmatpush1.msra.mxu0 0.0
  %3996 = vmatprep.subr.mxu0 0.0
  %3997 = vmatpush1.msra.mxu0 0.0
  %3998 = vmatprep.mubr.f32.mxu0 0.0
  %3999 = vmatmul.mubr.f32.gmra.mrb[0].mxu0 %v3929
  %v4000 = vpop.f32.mrb[0].mxu0
  %v4001 = vadd.f32 0.0, %v4000
  %v4002 = vpop.f32.mrb[0].mxu0
  %v4003 = vadd.f32 0.0, %v4002
  %4004 = vdwg.mxu0
  %4005 = vmatprep.subr.mxu0 %v2655
  %4006 = vmatpush1.msra.mxu0 %v2654
  %4007 = vmatprep.subr.mxu0 %v2659
  %4008 = vmatpush1.msra.mxu0 %v2658
  %4009 = vmatprep.subr.mxu0 %v2663
  %4010 = vmatpush1.msra.mxu0 %v2662
  %4011 = vmatprep.subr.mxu0 %v2667
  %4012 = vmatpush1.msra.mxu0 %v2666
  %4013 = vmatprep.subr.mxu0 %v2671
  %4014 = vmatpush1.msra.mxu0 %v2670
  %4015 = vmatprep.subr.mxu0 %v2675
  %4016 = vmatpush1.msra.mxu0 %v2674
  %4017 = vmatprep.subr.mxu0 %v2679
  %4018 = vmatpush1.msra.mxu0 %v2678
  %4019 = vmatprep.subr.mxu0 %v2683
  %4020 = vmatpush1.msra.mxu0 %v2682
  %4021 = vmatprep.subr.mxu0 %v2687
  %4022 = vmatpush1.msra.mxu0 %v2686
  %4023 = vmatprep.subr.mxu0 %v2691
  %4024 = vmatpush1.msra.mxu0 %v2690
  %4025 = vmatprep.subr.mxu0 %v2695
  %4026 = vmatpush1.msra.mxu0 %v2694
  %4027 = vmatprep.subr.mxu0 %v2699
  %4028 = vmatpush1.msra.mxu0 %v2698
  %4029 = vmatprep.subr.mxu0 %v2703
  %4030 = vmatpush1.msra.mxu0 %v2702
  %4031 = vmatprep.subr.mxu0 %v2707
  %4032 = vmatpush1.msra.mxu0 %v2706
  %4033 = vmatprep.subr.mxu0 %v2711
  %4034 = vmatpush1.msra.mxu0 %v2710
  %4035 = vmatprep.subr.mxu0 %v2715
  %4036 = vmatpush1.msra.mxu0 %v2714
  %4037 = vmatprep.subr.mxu0 0.0
  %4038 = vmatpush1.msra.mxu0 0.0
  %4039 = vmatprep.subr.mxu0 0.0
  %4040 = vmatpush1.msra.mxu0 0.0
  %4041 = vmatprep.subr.mxu0 0.0
  %4042 = vmatpush1.msra.mxu0 0.0
  %4043 = vmatprep.subr.mxu0 0.0
  %4044 = vmatpush1.msra.mxu0 0.0
  %4045 = vmatprep.subr.mxu0 0.0
  %4046 = vmatpush1.msra.mxu0 0.0
  %4047 = vmatprep.subr.mxu0 0.0
  %4048 = vmatpush1.msra.mxu0 0.0
  %4049 = vmatprep.subr.mxu0 0.0
  %4050 = vmatpush1.msra.mxu0 0.0
  %4051 = vmatprep.subr.mxu0 0.0
  %4052 = vmatpush1.msra.mxu0 0.0
  %4053 = vmatprep.subr.mxu0 0.0
  %4054 = vmatpush1.msra.mxu0 0.0
  %4055 = vmatprep.subr.mxu0 0.0
  %4056 = vmatpush1.msra.mxu0 0.0
  %4057 = vmatprep.subr.mxu0 0.0
  %4058 = vmatpush1.msra.mxu0 0.0
  %4059 = vmatprep.subr.mxu0 0.0
  %4060 = vmatpush1.msra.mxu0 0.0
  %4061 = vmatprep.subr.mxu0 0.0
  %4062 = vmatpush1.msra.mxu0 0.0
  %4063 = vmatprep.subr.mxu0 0.0
  %4064 = vmatpush1.msra.mxu0 0.0
  %4065 = vmatprep.subr.mxu0 0.0
  %4066 = vmatpush1.msra.mxu0 0.0
  %4067 = vmatprep.subr.mxu0 0.0
  %4068 = vmatpush1.msra.mxu0 0.0
  %4069 = vmatprep.mubr.f32.mxu0 0.0
  %4070 = vmatmul.mubr.f32.gmra.mrb[0].mxu0 %v3929
  %v4071 = vpop.f32.mrb[0].mxu0
  %v4072 = vadd.f32 0.0, %v4071
  %v4073 = vpop.f32.mrb[0].mxu0
  %v4074 = vadd.f32 0.0, %v4073
  %4075 = vdwg.mxu0
  %v4076 = vadd.f32 %v3930, %v4001
  %v4077 = vadd.f32 %v3931, %v4003
  %v4078 = vadd.f32 %v3932, %v4072
  %v4079 = vadd.f32 %v3933, %v4074
  %v4080 = vxor.u32 %v4076, 2147483648
  %v4081 = vmul.f32 %v4080, 1.442695
  %v4082 = vpow.pop %v4081
  %v4083 = vadd.f32 %v4082, 1.0
  %v4084 = vrcp.pop %v4083
  %v4085 = vmul.f32 1.0, %v4084
  %v4086 = vxor.u32 %v4077, 2147483648
  %v4087 = vmul.f32 %v4086, 1.442695
  %v4088 = vpow.pop %v4087
  %v4089 = vadd.f32 %v4088, 1.0
  %v4090 = vrcp.pop %v4089
  %v4091 = vmul.f32 1.0, %v4090
  %v4092 = vtanh.pop %v4078
  %v4093 = vxor.u32 %v4079, 2147483648
  %v4094 = vmul.f32 %v4093, 1.442695
  %v4095 = vpow.pop %v4094
  %v4096 = vadd.f32 %v4095, 1.0
  %v4097 = vrcp.pop %v4096
  %v4098 = vmul.f32 1.0, %v4097
  %v4099 = vmul.f32 %v4091, %v3927
  %v4100 = vmul.f32 %v4085, %v4092
  %v4101 = vadd.f32 %v4099, %v4100
  %v4102 = vtanh.pop %v4101
  %v4103 = vmul.f32 %v4098, %v4102
  %v4104 = vld [vmem:[%s7] sm:$0xff]
  %v4105 = vld [vmem:[%s7 + $0x8] sm:$0xff]
  %v4106 = vld [vmem:[%s7 + $0x10] sm:$0xff]
  %v4107 = vld [vmem:[%s7 + $0x18] sm:$0xff]
  %v4108 = vld [vmem:[%s7 + $0x20] sm:$0xff]
  %v4109 = vld [vmem:[%s7 + $0x28] sm:$0xff]
  %v4110 = vld [vmem:[%s7 + $0x30] sm:$0xff]
  %v4111 = vld [vmem:[%s7 + $0x38] sm:$0xff]
  %v4112 = vld [vmem:[%s7 + $0x40] sm:$0xff]
  %v4113 = vld [vmem:[%s7 + $0x48] sm:$0xff]
  %v4114 = vld [vmem:[%s7 + $0x50] sm:$0xff]
  %v4115 = vld [vmem:[%s7 + $0x58] sm:$0xff]
  %v4116 = vld [vmem:[%s7 + $0x60] sm:$0xff]
  %v4117 = vld [vmem:[%s7 + $0x68] sm:$0xff]
  %v4118 = vld [vmem:[%s7 + $0x70] sm:$0xff]
  %v4119 = vld [vmem:[%s7 + $0x78] sm:$0xff]
  %v4120 = vld [vmem:[%s8] sm:$0x1]
  %v4122 = vlaneseq
  %v4123 = vshrl.u32 %v4122, 7
  %v4124 = vsub.s32 0, %v4123
  %v4125 = vrot.slane %v4120, %v4124
  %4127 = vmatprep.subr.mxu0 0.0
  %4128 = vmatpush1.msra.mxu0 %v4104
  %4129 = vmatprep.subr.mxu0 0.0
  %4130 = vmatpush1.msra.mxu0 %v4105
  %4131 = vmatprep.subr.mxu0 0.0
  %4132 = vmatpush1.msra.mxu0 %v4106
  %4133 = vmatprep.subr.mxu0 0.0
  %4134 = vmatpush1.msra.mxu0 %v4107
  %4135 = vmatprep.subr.mxu0 0.0
  %4136 = vmatpush1.msra.mxu0 %v4108
  %4137 = vmatprep.subr.mxu0 0.0
  %4138 = vmatpush1.msra.mxu0 %v4109
  %4139 = vmatprep.subr.mxu0 0.0
  %4140 = vmatpush1.msra.mxu0 %v4110
  %4141 = vmatprep.subr.mxu0 0.0
  %4142 = vmatpush1.msra.mxu0 %v4111
  %4143 = vmatprep.subr.mxu0 0.0
  %4144 = vmatpush1.msra.mxu0 %v4112
  %4145 = vmatprep.subr.mxu0 0.0
  %4146 = vmatpush1.msra.mxu0 %v4113
  %4147 = vmatprep.subr.mxu0 0.0
  %4148 = vmatpush1.msra.mxu0 %v4114
  %4149 = vmatprep.subr.mxu0 0.0
  %4150 = vmatpush1.msra.mxu0 %v4115
  %4151 = vmatprep.subr.mxu0 0.0
  %4152 = vmatpush1.msra.mxu0 %v4116
  %4153 = vmatprep.subr.mxu0 0.0
  %4154 = vmatpush1.msra.mxu0 %v4117
  %4155 = vmatprep.subr.mxu0 0.0
  %4156 = vmatpush1.msra.mxu0 %v4118
  %4157 = vmatprep.subr.mxu0 0.0
  %4158 = vmatpush1.msra.mxu0 %v4119
  %4159 = vmatprep.subr.mxu0 0.0
  %4160 = vmatpush1.msra.mxu0 0.0
  %4161 = vmatprep.subr.mxu0 0.0
  %4162 = vmatpush1.msra.mxu0 0.0
  %4163 = vmatprep.subr.mxu0 0.0
  %4164 = vmatpush1.msra.mxu0 0.0
  %4165 = vmatprep.subr.mxu0 0.0
  %4166 = vmatpush1.msra.mxu0 0.0
  %4167 = vmatprep.subr.mxu0 0.0
  %4168 = vmatpush1.msra.mxu0 0.0
  %4169 = vmatprep.subr.mxu0 0.0
  %4170 = vmatpush1.msra.mxu0 0.0
  %4171 = vmatprep.subr.mxu0 0.0
  %4172 = vmatpush1.msra.mxu0 0.0
  %4173 = vmatprep.subr.mxu0 0.0
  %4174 = vmatpush1.msra.mxu0 0.0
  %4175 = vmatprep.subr.mxu0 0.0
  %4176 = vmatpush1.msra.mxu0 0.0
  %4177 = vmatprep.subr.mxu0 0.0
  %4178 = vmatpush1.msra.mxu0 0.0
  %4179 = vmatprep.subr.mxu0 0.0
  %4180 = vmatpush1.msra.mxu0 0.0
  %4181 = vmatprep.subr.mxu0 0.0
  %4182 = vmatpush1.msra.mxu0 0.0
  %4183 = vmatprep.subr.mxu0 0.0
  %4184 = vmatpush1.msra.mxu0 0.0
  %4185 = vmatprep.subr.mxu0 0.0
  %4186 = vmatpush1.msra.mxu0 0.0
  %4187 = vmatprep.subr.mxu0 0.0
  %4188 = vmatpush1.msra.mxu0 0.0
  %4189 = vmatprep.subr.mxu0 0.0
  %4190 = vmatpush1.msra.mxu0 0.0
  %4191 = vmatprep.mubr.f32.mxu0 0.0
  %4192 = vmatmul.mubr.f32.gmra.mrb[0].mxu0 %v4103
  %v4193 = vpop.f32.mrb[0].mxu0
  %v4194 = vadd.f32 %v4125, %v4193
  %v4195 = vpop.f32.mrb[0].mxu0
  %4196 = vdwg.mxu0
  %4197 = vst [vmem:[%s9] sm:$0xff] %v4194
  // Predicated region
  $region38: #{lstm_anomaly_forward.1} parent=0 // pred_check
    _
  $region39: #{lstm_anomaly_forward.1} parent=0 // pred_check_branch
    %4199 = sbr.rel (0) target = $region41
  $region40: #{lstm_anomaly_forward.1} parent=0 // pred_region
    _
  $region41: #{lstm_anomaly_forward.1} parent=0 // pred_fallthru
    _
  // Predicated region
  $region42: #{lstm_anomaly_forward.1} parent=0 // pred_check
    _
  $region43: #{lstm_anomaly_forward.1} parent=0 // pred_check_branch
    %4201 = sbr.rel (0) target = $region45
  $region44: #{lstm_anomaly_forward.1} parent=0 // pred_region
    _
  $region45: #{lstm_anomaly_forward.1} parent=0 // pred_fallthru
    _

</llo_original>
